<compile_context>
chip_gen: v7x
topology: tpu7x:2x2x1
jax: 0.10.0
libtpu: 0.0.40
codegen_flags: <defaults>
</compile_context>

<pallas_src>
import functools

import jax
import jax.numpy as jnp
import numpy as np
from jax.experimental import pallas as pl
from jax.experimental.pallas import tpu as pltpu


# --------------------------------------------------------------------------- layout constants
_CF1 = 32          # fused conv1 channels (16 critic + 16 actor)
_CF2 = 64          # fused conv2 channels (32 critic + 32 actor)
_CF2P = 128        # conv2 channels padded to a full lane tile (zeros beyond 64)
_WIN = 10          # input receptive-field window per pool2 position
_PATCH1 = _WIN * _WIN * 2          # 200
_S1_COLS = 4 * 16 * _CF1           # 2048  (4 pool1 offsets x 4x4 window x 32 ch)
_S2_ROWS = 16 * _CF1               # 512   (4x4 pooled1 window x 32 ch)
_S2_COLS = 4 * _CF2P               # 512   (4 pool2 offsets x 128 padded ch)
_HEADW = 128                       # padded head width (32 critic + 64 actor + 32 zero)
# head slab row offsets
_R_MLP = 0                          # 4 blocks of 128 rows (per pool2 position)
_R_L1M = 4 * _CF2P                  # 512
_R_L1F = _R_L1M + _HEADW            # 640
_R_L2 = _R_L1F + _HEADW             # 768  (fused critic_l2 | actor_l2)
_R_FAIR = _R_L2 + _HEADW            # 896


def _full_spec(shape):
    nd = len(shape)
    return pl.BlockSpec(shape, lambda i, _nd=nd: (0,) * _nd)


# --------------------------------------------------------------------------- fused kernel
def _fused_forward_kernel(p1_ref, fair_ref, w1_ref, w2_ref, whead_ref,
                          bias1_ref, bias2_ref, out_ref, *, n_envs, n_actions):
    relu = lambda z: jnp.maximum(z, 0.0)
    dot = lambda a, b: jnp.dot(a, b, preferred_element_type=jnp.float32)
    bf16 = jnp.bfloat16

    # ---- stage 1: fused conv1 + bias + ReLU; pool1 = max over 4 aligned
    #      512-wide column blocks (pool offsets are baked into the columns).
    y1 = relu(dot(p1_ref[...], w1_ref[...]) + bias1_ref[0:1, :])            # [4N, 2048] f32
    pooled1 = jnp.maximum(jnp.maximum(y1[:, 0:512], y1[:, 512:1024]),
                          jnp.maximum(y1[:, 1024:1536], y1[:, 1536:2048]))  # [4N, 512]

    # ---- stage 2: fused conv2 + bias + ReLU; pool2 = max over 4 aligned
    #      128-wide column blocks.
    y2 = relu(dot(pooled1.astype(bf16), w2_ref[...]) + bias2_ref[0:1, 0:_S2_COLS])
    pooled2 = jnp.maximum(jnp.maximum(y2[:, 0:128], y2[:, 128:256]),
                          jnp.maximum(y2[:, 256:384], y2[:, 384:512]))      # [4N, 128] f32

    # ---- stage 3: branch MLPs on the flattened CNN features.  The NCHW
    #      flatten permutation + critic/actor split are baked into whead.
    n_pos = pooled2.shape[0] // n_envs          # 4 pool2 spatial positions
    mlp = bias2_ref[1:2, 0:_HEADW]
    for p in range(n_pos):
        mlp = mlp + dot(pooled2[p * n_envs:(p + 1) * n_envs, :].astype(bf16),
                        whead_ref[p * _CF2P:(p + 1) * _CF2P, :])
    mlp = relu(mlp).astype(bf16)                                            # [N, 128]

    # fair MLPs (critic -> cols 0:32, actor -> cols 32:64, rest zero)
    fair_h = relu(dot(fair_ref[...], whead_ref[_R_FAIR:_R_FAIR + n_actions, :])
                  + bias2_ref[2:3, 0:_HEADW]).astype(bf16)                  # [N, 128]

    # combined last hidden layer (torch.cat expressed as split-weight sum)
    h1 = relu(dot(mlp, whead_ref[_R_L1M:_R_L1M + _HEADW, :])
              + dot(fair_h, whead_ref[_R_L1F:_R_L1F + _HEADW, :])
              + bias2_ref[3:4, 0:_HEADW]).astype(bf16)                      # [N, 128]

    # fused final layer: col 0 = state value (no sigmoid), cols 1:1+n_actions
    # = sigmoid(actor logits).  One matmul, one lane-dense output store.
    z = dot(h1, whead_ref[_R_L2:_R_L2 + _HEADW, :]) + bias2_ref[4:5, 0:_HEADW]
    sig = pl.reciprocal(1.0 + jnp.exp(-z), approx=True)
    col = jax.lax.broadcasted_iota(jnp.int32, z.shape, 1)
    out_ref[...] = jnp.where(col == 0, z, sig)                              # [N, 128]


# --------------------------------------------------------------------------- forward wrapper
@jax.jit
def a2c_forward(packed, channel_nchw, fair):
    """Returns (state_values [n_envs, 1], action_logits [n_envs, n_actions])."""
    N = channel_nchw.shape[0]
    n_actions = int(np.prod(fair.shape[1:]))

    x = jnp.transpose(channel_nchw.astype(jnp.float32), (0, 2, 3, 1))   # NCHW -> NHWC
    # one host-side gather (fuses into a single XLA op): the 10x10x2 receptive
    # field of each of the 2x2 pool2 output positions; rows ordered (p, n).
    wins = [x[:, 4 * i2:4 * i2 + _WIN, 4 * j2:4 * j2 + _WIN, :].reshape(N, _PATCH1)
            for i2 in range(2) for j2 in range(2)]
    p1 = jnp.concatenate(wins, axis=0).astype(jnp.bfloat16)              # [4N, 200]
    fair_flat = fair.reshape(N, -1).astype(jnp.bfloat16)                 # [N, n_actions]

    kern = functools.partial(_fused_forward_kernel, n_envs=N, n_actions=n_actions)
    args = (p1, fair_flat, packed["w1"], packed["w2"], packed["whead"],
            packed["bias1"], packed["bias2"])

    flops = 2 * N * (4 * _PATCH1 * _S1_COLS + 4 * _S2_ROWS * _S2_COLS
                     + 4 * _CF2P * _HEADW + n_actions * _HEADW + 3 * _HEADW * _HEADW)
    bytes_accessed = sum(int(np.prod(a.shape)) * a.dtype.itemsize for a in args) \
        + N * _HEADW * 4

    out = pl.pallas_call(
        kern,
        out_shape=jax.ShapeDtypeStruct((N, _HEADW), jnp.float32),
        grid=(1,),
        in_specs=[_full_spec(a.shape) for a in args],
        out_specs=_full_spec((N, _HEADW)),
        compiler_params=pltpu.CompilerParams(dimension_semantics=("arbitrary",)),
        cost_estimate=pl.CostEstimate(flops=int(flops), transcendentals=int(N * _HEADW),
                                      bytes_accessed=int(bytes_accessed)),
    )(*args)
    return out[:, 0:1], out[:, 1:1 + n_actions]


# --------------------------------------------------------------------------- weight packing (once, at init)
def pack_params(params, n_actions):
    """Re-pack the per-layer PyTorch-style weights into fused bf16 slabs."""
    assert n_actions + 1 <= _HEADW
    P = {k: np.asarray(v, dtype=np.float32) for k, v in params.items()}

    c1w = np.concatenate([P["critic_conv1_w"], P["actor_conv1_w"]], axis=1)   # [18, 32]
    c1b = np.concatenate([P["critic_conv1_b"], P["actor_conv1_b"]], axis=1)   # [1, 32]

    # ---- stage 1 slab: conv1 + pool1 folded into one [200, 2048] matmul ----
    w1 = np.zeros((_PATCH1, _S1_COLS), np.float32)
    for a in range(2):
        for b in range(2):
            for u in range(4):
                for v in range(4):
                    col0 = ((a * 2 + b) * 16 + u * 4 + v) * _CF1
                    r, s = 2 * u + a, 2 * v + b        # conv1 pos within window
                    for kh in range(3):
                        for kw in range(3):
                            row0 = ((r + kh) * _WIN + (s + kw)) * 2
                            krow = (kh * 3 + kw) * 2
                            w1[row0:row0 + 2, col0:col0 + _CF1] = c1w[krow:krow + 2, :]
    bias1 = np.tile(c1b, (1, 64)).astype(np.float32)                          # [1, 2048]

    # ---- stage 2 slab: conv2 + pool2 folded into one [512, 512] matmul ----
    w2 = np.zeros((_S2_ROWS, _S2_COLS), np.float32)
    for a2 in range(2):
        for b2 in range(2):
            col0 = (a2 * 2 + b2) * _CF2P
            for kh in range(3):
                for kw in range(3):
                    u, v = a2 + kh, b2 + kw
                    row0 = (u * 4 + v) * _CF1
                    krow = (kh * 3 + kw) * 16
                    w2[row0:row0 + 16, col0:col0 + 32] = P["critic_conv2_w"][krow:krow + 16, :]
                    w2[row0 + 16:row0 + 32, col0 + 32:col0 + 64] = P["actor_conv2_w"][krow:krow + 16, :]

    # ---- head slab (width 128 = 32 critic hidden + 64 actor hidden + 32 pad) ----
    whead = np.zeros((_R_FAIR + n_actions, _HEADW), np.float32)
    # branch MLPs with the NCHW-flatten permutation baked in (row c*4 + p)
    for p in range(4):
        whead[p * _CF2P + 0:p * _CF2P + 32, 0:32] = P["critic_mlp_w"][p::4, :]
        whead[p * _CF2P + 32:p * _CF2P + 64, 32:96] = P["actor_mlp_w"][p::4, :]
    # combined L1 (split-weight form of torch.cat)
    whead[_R_L1M + 0:_R_L1M + 32, 0:32] = P["critic_l1_w"][0:32, :]
    whead[_R_L1M + 32:_R_L1M + 96, 32:96] = P["actor_l1_w"][0:64, :]
    whead[_R_L1F + 0:_R_L1F + 32, 0:32] = P["critic_l1_w"][32:64, :]
    whead[_R_L1F + 32:_R_L1F + 64, 32:96] = P["actor_l1_w"][64:96, :]
    # fused final layer: col 0 = critic value, cols 1:1+n_actions = actor logits
    whead[_R_L2 + 0:_R_L2 + 32, 0:1] = P["critic_l2_w"]
    whead[_R_L2 + 32:_R_L2 + 96, 1:1 + n_actions] = P["actor_l2_w"]
    # fair MLPs
    whead[_R_FAIR:_R_FAIR + n_actions, 0:32] = P["critic_fair_w"]
    whead[_R_FAIR:_R_FAIR + n_actions, 32:64] = P["actor_fair_w"]

    # ---- small bias slab (stage-2 conv bias + head biases) ----
    bias2 = np.zeros((8, _S2_COLS), np.float32)
    for blk in range(4):
        bias2[0, blk * _CF2P:blk * _CF2P + 32] = P["critic_conv2_b"][0]
        bias2[0, blk * _CF2P + 32:blk * _CF2P + 64] = P["actor_conv2_b"][0]
    bias2[1, 0:32] = P["critic_mlp_b"][0]
    bias2[1, 32:96] = P["actor_mlp_b"][0]
    bias2[2, 0:32] = P["critic_fair_b"][0]
    bias2[2, 32:64] = P["actor_fair_b"][0]
    bias2[3, 0:32] = P["critic_l1_b"][0]
    bias2[3, 32:96] = P["actor_l1_b"][0]
    bias2[4, 0:1] = P["critic_l2_b"][0]
    bias2[4, 1:1 + n_actions] = P["actor_l2_b"][0]

    return {"w1": jnp.asarray(w1, dtype=jnp.bfloat16),
            "w2": jnp.asarray(w2, dtype=jnp.bfloat16),
            "whead": jnp.asarray(whead, dtype=jnp.bfloat16),
            "bias1": jnp.asarray(bias1),
            "bias2": jnp.asarray(bias2)}


# --------------------------------------------------------------------------- pure-JAX reference
def im2col(x, kh, kw):
    """x: [N, H, W, C] NHWC -> patches [N*OH*OW, kh*kw*C] (patch order = kh, kw, C)."""
    N, H, W, C = x.shape
    oh, ow = H - kh + 1, W - kw + 1
    cols = [x[:, i:i + oh, j:j + ow, :] for i in range(kh) for j in range(kw)]
    patches = jnp.stack(cols, axis=3)  # [N, oh, ow, kh*kw, C]
    return patches.reshape(N * oh * ow, kh * kw * C), oh, ow


def a2c_forward_ref(params, channel_nchw, fair):
    relu = lambda z: jnp.maximum(z, 0.0)

    def conv(x, w, b, cout):
        patches, oh, ow = im2col(x, 3, 3)
        return relu(patches @ w + b).reshape(x.shape[0], oh, ow, cout)

    def pool(x):
        N, H, W, C = x.shape
        return x.reshape(N, H // 2, 2, W // 2, 2, C).max(axis=(2, 4))

    def cnn(x, pfx):
        y = pool(conv(x, params[pfx + "_conv1_w"], params[pfx + "_conv1_b"], 16))
        y = pool(conv(y, params[pfx + "_conv2_w"], params[pfx + "_conv2_b"], 32))
        return jnp.transpose(y, (0, 3, 1, 2)).reshape(x.shape[0], -1)

    x = jnp.transpose(channel_nchw.astype(jnp.float32), (0, 2, 3, 1))
    fair_flat = fair.astype(jnp.float32).reshape(fair.shape[0], -1)
    c1 = cnn(x, "critic")
    a1 = cnn(x, "actor")
    c2 = relu(c1 @ params["critic_mlp_w"] + params["critic_mlp_b"])
    f1 = relu(fair_flat @ params["critic_fair_w"] + params["critic_fair_b"])
    hc = relu(jnp.concatenate([c2, f1], axis=1) @ params["critic_l1_w"] + params["critic_l1_b"])
    sv = hc @ params["critic_l2_w"] + params["critic_l2_b"]
    a2 = relu(a1 @ params["actor_mlp_w"] + params["actor_mlp_b"])
    f2 = relu(fair_flat @ params["actor_fair_w"] + params["actor_fair_b"])
    ha = relu(jnp.concatenate([a2, f2], axis=1) @ params["actor_l1_w"] + params["actor_l1_b"])
    logits = jax.nn.sigmoid(ha @ params["actor_l2_w"] + params["actor_l2_b"])
    return sv, logits


# --------------------------------------------------------------------------- parameters
def _init_linear(key, fan_in, fan_out):
    kw, kb = jax.random.split(key)
    bound = 1.0 / float(np.sqrt(fan_in))
    w = jax.random.uniform(kw, (fan_in, fan_out), jnp.float32, -bound, bound)
    b = jax.random.uniform(kb, (1, fan_out), jnp.float32, -bound, bound)
    return w, b


def init_params(key, n_actions):
    cnn_flat = 32 * 2 * (n_actions - 8) // 4  # matches the PyTorch module
    names_dims = [
        ("critic_conv1", 3 * 3 * 2, 16), ("critic_conv2", 3 * 3 * 16, 32),
        ("actor_conv1", 3 * 3 * 2, 16), ("actor_conv2", 3 * 3 * 16, 32),
        ("critic_mlp", cnn_flat, 32), ("critic_fair", n_actions, 32),
        ("critic_l1", 64, 32), ("critic_l2", 32, 1),
        ("actor_mlp", cnn_flat, 64), ("actor_fair", n_actions, 32),
        ("actor_l1", 96, 64), ("actor_l2", 64, n_actions),
    ]
    keys = jax.random.split(key, len(names_dims))
    params = {}
    for k, (name, fi, fo) in zip(keys, names_dims):
        w, b = _init_linear(k, fi, fo)
        params[name + "_w"] = w
        params[name + "_b"] = b
    return params


# --------------------------------------------------------------------------- main
if __name__ == "__main__":
    n_envs = 4
    n_actions = 16          # => critic_mlp in-dim = 32*2*(16-8)//4 = 128
    H = W = 14              # 14 -> conv 12 -> pool 6 -> conv 4 -> pool 2  => 32*2*2 = 128

    root = jax.random.PRNGKey(0)
    k_par, k_ch, k_fair = jax.random.split(root, 3)
    params = init_params(k_par, n_actions)
    packed = pack_params(params, n_actions)       # one-time repack into fused bf16 slabs

    channel = jax.random.normal(k_ch, (n_envs, 2, H, W), jnp.float32)   # NCHW, like PyTorch
    fair = jax.random.uniform(k_fair, (n_envs, 1, n_actions), jnp.float32)

    state_values, action_logits = jax.block_until_ready(
        a2c_forward(packed, channel, fair))

    sv_ref, logits_ref = a2c_forward_ref(params, channel, fair)
    # bf16 weights/activations (f32 accumulate) -> slightly looser tolerance
    np.testing.assert_allclose(np.asarray(state_values), np.asarray(sv_ref),
                               rtol=2e-2, atol=2e-2)
    np.testing.assert_allclose(np.asarray(action_logits), np.asarray(logits_ref),
                               rtol=2e-2, atol=2e-2)

    assert state_values.shape == (n_envs, 1)
    assert action_logits.shape == (n_envs, n_actions)
    print("KERNEL_OK")
</pallas_src>

<mosaic_0001>
module attributes {stable_mosaic.version = 11 : i64} {
  func.func @_fused_forward_kernel(%arg0: i32, %arg1: memref<16x200xbf16, #tpu.memory_space<vmem>>, %arg2: memref<4x16xbf16, #tpu.memory_space<vmem>>, %arg3: memref<200x2048xbf16, #tpu.memory_space<vmem>>, %arg4: memref<512x512xbf16, #tpu.memory_space<vmem>>, %arg5: memref<912x128xbf16, #tpu.memory_space<vmem>>, %arg6: memref<1x2048xf32, #tpu.memory_space<vmem>>, %arg7: memref<8x512xf32, #tpu.memory_space<vmem>>, %arg8: memref<4x128xf32, #tpu.memory_space<vmem>>) attributes {dimension_semantics = [#tpu.dimension_semantics<arbitrary>], iteration_bounds = array<i64: 1>, scalar_prefetch = 0 : i64, scratch_operands = 0 : i64, tpu.core_type = #tpu.core_type<tc>, window_params = [{pipeline_mode = #tpu.pipeline_mode<synchronous>, transform_indices = @transform_0, window_bounds = array<i64: 16, 200>}, {pipeline_mode = #tpu.pipeline_mode<synchronous>, transform_indices = @transform_1, window_bounds = array<i64: 4, 16>}, {pipeline_mode = #tpu.pipeline_mode<synchronous>, transform_indices = @transform_2, window_bounds = array<i64: 200, 2048>}, {pipeline_mode = #tpu.pipeline_mode<synchronous>, transform_indices = @transform_3, window_bounds = array<i64: 512, 512>}, {pipeline_mode = #tpu.pipeline_mode<synchronous>, transform_indices = @transform_4, window_bounds = array<i64: 912, 128>}, {pipeline_mode = #tpu.pipeline_mode<synchronous>, transform_indices = @transform_5, window_bounds = array<i64: 1, 2048>}, {pipeline_mode = #tpu.pipeline_mode<synchronous>, transform_indices = @transform_6, window_bounds = array<i64: 8, 512>}, {pipeline_mode = #tpu.pipeline_mode<synchronous>, transform_indices = @transform_7, window_bounds = array<i64: 4, 128>}]} {
    %c0 = arith.constant 0 : index
    %c0_0 = arith.constant 0 : index
    %0 = vector.load %arg1[%c0, %c0_0] : memref<16x200xbf16, #tpu.memory_space<vmem>>, vector<16x200xbf16>
    %c0_1 = arith.constant 0 : index
    %c0_2 = arith.constant 0 : index
    %1 = vector.load %arg3[%c0_1, %c0_2] : memref<200x2048xbf16, #tpu.memory_space<vmem>>, vector<200x2048xbf16>
    %cst = arith.constant dense<0.000000e+00> : vector<16x2048xf32>
    %2 = tpu.matmul %0, %1, %cst {dimension_numbers = #tpu.dot_dimension_numbers<[1], [0], [0], [1], [0, 0, 1, 1], [], []>} : vector<16x200xbf16>, vector<200x2048xbf16>, vector<16x2048xf32> -> vector<16x2048xf32>
    %c0_3 = arith.constant 0 : index
    %c0_4 = arith.constant 0 : index
    %3 = vector.load %arg6[%c0_3, %c0_4] : memref<1x2048xf32, #tpu.memory_space<vmem>>, vector<1x2048xf32>
    %4 = vector.broadcast %3 : vector<1x2048xf32> to vector<16x2048xf32>
    %5 = arith.addf %2, %4 : vector<16x2048xf32>
    %cst_5 = arith.constant 0.000000e+00 : f32
    %6 = vector.broadcast %cst_5 : f32 to vector<16x2048xf32>
    %7 = arith.maximumf %5, %6 : vector<16x2048xf32>
    %8 = vector.extract_strided_slice %7 {offsets = [0, 0], sizes = [16, 512], strides = [1, 1]} : vector<16x2048xf32> to vector<16x512xf32>
    %9 = vector.extract_strided_slice %7 {offsets = [0, 512], sizes = [16, 512], strides = [1, 1]} : vector<16x2048xf32> to vector<16x512xf32>
    %10 = arith.maximumf %8, %9 : vector<16x512xf32>
    %11 = vector.extract_strided_slice %7 {offsets = [0, 1024], sizes = [16, 512], strides = [1, 1]} : vector<16x2048xf32> to vector<16x512xf32>
    %12 = vector.extract_strided_slice %7 {offsets = [0, 1536], sizes = [16, 512], strides = [1, 1]} : vector<16x2048xf32> to vector<16x512xf32>
    %13 = arith.maximumf %11, %12 : vector<16x512xf32>
    %14 = arith.maximumf %10, %13 : vector<16x512xf32>
    %15 = arith.truncf %14 : vector<16x512xf32> to vector<16x512xbf16>
    %c0_6 = arith.constant 0 : index
    %c0_7 = arith.constant 0 : index
    %16 = vector.load %arg4[%c0_6, %c0_7] : memref<512x512xbf16, #tpu.memory_space<vmem>>, vector<512x512xbf16>
    %cst_8 = arith.constant dense<0.000000e+00> : vector<16x512xf32>
    %17 = tpu.matmul %15, %16, %cst_8 {dimension_numbers = #tpu.dot_dimension_numbers<[1], [0], [0], [1], [0, 0, 1, 1], [], []>} : vector<16x512xbf16>, vector<512x512xbf16>, vector<16x512xf32> -> vector<16x512xf32>
    %c0_9 = arith.constant 0 : index
    %c0_10 = arith.constant 0 : index
    %18 = vector.load %arg7[%c0_9, %c0_10] : memref<8x512xf32, #tpu.memory_space<vmem>>, vector<1x512xf32>
    %19 = vector.broadcast %18 : vector<1x512xf32> to vector<16x512xf32>
    %20 = arith.addf %17, %19 : vector<16x512xf32>
    %cst_11 = arith.constant 0.000000e+00 : f32
    %21 = vector.broadcast %cst_11 : f32 to vector<16x512xf32>
    %22 = arith.maximumf %20, %21 : vector<16x512xf32>
    %23 = vector.extract_strided_slice %22 {offsets = [0, 0], sizes = [16, 128], strides = [1, 1]} : vector<16x512xf32> to vector<16x128xf32>
    %24 = vector.extract_strided_slice %22 {offsets = [0, 128], sizes = [16, 128], strides = [1, 1]} : vector<16x512xf32> to vector<16x128xf32>
    %25 = arith.maximumf %23, %24 : vector<16x128xf32>
    %26 = vector.extract_strided_slice %22 {offsets = [0, 256], sizes = [16, 128], strides = [1, 1]} : vector<16x512xf32> to vector<16x128xf32>
    %27 = vector.extract_strided_slice %22 {offsets = [0, 384], sizes = [16, 128], strides = [1, 1]} : vector<16x512xf32> to vector<16x128xf32>
    %28 = arith.maximumf %26, %27 : vector<16x128xf32>
    %29 = arith.maximumf %25, %28 : vector<16x128xf32>
    %c1 = arith.constant 1 : index
    %c0_12 = arith.constant 0 : index
    %30 = vector.load %arg7[%c1, %c0_12] : memref<8x512xf32, #tpu.memory_space<vmem>>, vector<1x128xf32>
    %31 = vector.extract_strided_slice %29 {offsets = [0, 0], sizes = [4, 128], strides = [1, 1]} : vector<16x128xf32> to vector<4x128xf32>
    %32 = arith.truncf %31 : vector<4x128xf32> to vector<4x128xbf16>
    %c0_13 = arith.constant 0 : index
    %c0_14 = arith.constant 0 : index
    %33 = vector.load %arg5[%c0_13, %c0_14] : memref<912x128xbf16, #tpu.memory_space<vmem>>, vector<128x128xbf16>
    %cst_15 = arith.constant dense<0.000000e+00> : vector<4x128xf32>
    %34 = tpu.matmul %32, %33, %cst_15 {dimension_numbers = #tpu.dot_dimension_numbers<[1], [0], [0], [1], [0, 0, 1, 1], [], []>} : vector<4x128xbf16>, vector<128x128xbf16>, vector<4x128xf32> -> vector<4x128xf32>
    %35 = vector.broadcast %30 : vector<1x128xf32> to vector<4x128xf32>
    %36 = arith.addf %35, %34 : vector<4x128xf32>
    %37 = vector.extract_strided_slice %29 {offsets = [4, 0], sizes = [4, 128], strides = [1, 1]} : vector<16x128xf32> to vector<4x128xf32>
    %38 = arith.truncf %37 : vector<4x128xf32> to vector<4x128xbf16>
    %c128 = arith.constant 128 : index
    %c0_16 = arith.constant 0 : index
    %39 = vector.load %arg5[%c128, %c0_16] : memref<912x128xbf16, #tpu.memory_space<vmem>>, vector<128x128xbf16>
    %cst_17 = arith.constant dense<0.000000e+00> : vector<4x128xf32>
    %40 = tpu.matmul %38, %39, %cst_17 {dimension_numbers = #tpu.dot_dimension_numbers<[1], [0], [0], [1], [0, 0, 1, 1], [], []>} : vector<4x128xbf16>, vector<128x128xbf16>, vector<4x128xf32> -> vector<4x128xf32>
    %41 = arith.addf %36, %40 : vector<4x128xf32>
    %42 = vector.extract_strided_slice %29 {offsets = [8, 0], sizes = [4, 128], strides = [1, 1]} : vector<16x128xf32> to vector<4x128xf32>
    %43 = arith.truncf %42 : vector<4x128xf32> to vector<4x128xbf16>
    %c256 = arith.constant 256 : index
    %c0_18 = arith.constant 0 : index
    %44 = vector.load %arg5[%c256, %c0_18] : memref<912x128xbf16, #tpu.memory_space<vmem>>, vector<128x128xbf16>
    %cst_19 = arith.constant dense<0.000000e+00> : vector<4x128xf32>
    %45 = tpu.matmul %43, %44, %cst_19 {dimension_numbers = #tpu.dot_dimension_numbers<[1], [0], [0], [1], [0, 0, 1, 1], [], []>} : vector<4x128xbf16>, vector<128x128xbf16>, vector<4x128xf32> -> vector<4x128xf32>
    %46 = arith.addf %41, %45 : vector<4x128xf32>
    %47 = vector.extract_strided_slice %29 {offsets = [12, 0], sizes = [4, 128], strides = [1, 1]} : vector<16x128xf32> to vector<4x128xf32>
    %48 = arith.truncf %47 : vector<4x128xf32> to vector<4x128xbf16>
    %c384 = arith.constant 384 : index
    %c0_20 = arith.constant 0 : index
    %49 = vector.load %arg5[%c384, %c0_20] : memref<912x128xbf16, #tpu.memory_space<vmem>>, vector<128x128xbf16>
    %cst_21 = arith.constant dense<0.000000e+00> : vector<4x128xf32>
    %50 = tpu.matmul %48, %49, %cst_21 {dimension_numbers = #tpu.dot_dimension_numbers<[1], [0], [0], [1], [0, 0, 1, 1], [], []>} : vector<4x128xbf16>, vector<128x128xbf16>, vector<4x128xf32> -> vector<4x128xf32>
    %51 = arith.addf %46, %50 : vector<4x128xf32>
    %cst_22 = arith.constant 0.000000e+00 : f32
    %52 = vector.broadcast %cst_22 : f32 to vector<4x128xf32>
    %53 = arith.maximumf %51, %52 : vector<4x128xf32>
    %54 = arith.truncf %53 : vector<4x128xf32> to vector<4x128xbf16>
    %c0_23 = arith.constant 0 : index
    %c0_24 = arith.constant 0 : index
    %55 = vector.load %arg2[%c0_23, %c0_24] : memref<4x16xbf16, #tpu.memory_space<vmem>>, vector<4x16xbf16>
    %c896 = arith.constant 896 : index
    %c0_25 = arith.constant 0 : index
    %56 = vector.load %arg5[%c896, %c0_25] : memref<912x128xbf16, #tpu.memory_space<vmem>>, vector<16x128xbf16>
    %cst_26 = arith.constant dense<0.000000e+00> : vector<4x128xf32>
    %57 = tpu.matmul %55, %56, %cst_26 {dimension_numbers = #tpu.dot_dimension_numbers<[1], [0], [0], [1], [0, 0, 1, 1], [], []>} : vector<4x16xbf16>, vector<16x128xbf16>, vector<4x128xf32> -> vector<4x128xf32>
    %c2 = arith.constant 2 : index
    %c0_27 = arith.constant 0 : index
    %58 = vector.load %arg7[%c2, %c0_27] : memref<8x512xf32, #tpu.memory_space<vmem>>, vector<1x128xf32>
    %59 = vector.broadcast %58 : vector<1x128xf32> to vector<4x128xf32>
    %60 = arith.addf %57, %59 : vector<4x128xf32>
    %cst_28 = arith.constant 0.000000e+00 : f32
    %61 = vector.broadcast %cst_28 : f32 to vector<4x128xf32>
    %62 = arith.maximumf %60, %61 : vector<4x128xf32>
    %63 = arith.truncf %62 : vector<4x128xf32> to vector<4x128xbf16>
    %c512 = arith.constant 512 : index
    %c0_29 = arith.constant 0 : index
    %64 = vector.load %arg5[%c512, %c0_29] : memref<912x128xbf16, #tpu.memory_space<vmem>>, vector<128x128xbf16>
    %cst_30 = arith.constant dense<0.000000e+00> : vector<4x128xf32>
    %65 = tpu.matmul %54, %64, %cst_30 {dimension_numbers = #tpu.dot_dimension_numbers<[1], [0], [0], [1], [0, 0, 1, 1], [], []>} : vector<4x128xbf16>, vector<128x128xbf16>, vector<4x128xf32> -> vector<4x128xf32>
    %c640 = arith.constant 640 : index
    %c0_31 = arith.constant 0 : index
    %66 = vector.load %arg5[%c640, %c0_31] : memref<912x128xbf16, #tpu.memory_space<vmem>>, vector<128x128xbf16>
    %cst_32 = arith.constant dense<0.000000e+00> : vector<4x128xf32>
    %67 = tpu.matmul %63, %66, %cst_32 {dimension_numbers = #tpu.dot_dimension_numbers<[1], [0], [0], [1], [0, 0, 1, 1], [], []>} : vector<4x128xbf16>, vector<128x128xbf16>, vector<4x128xf32> -> vector<4x128xf32>
    %68 = arith.addf %65, %67 : vector<4x128xf32>
    %c3 = arith.constant 3 : index
    %c0_33 = arith.constant 0 : index
    %69 = vector.load %arg7[%c3, %c0_33] : memref<8x512xf32, #tpu.memory_space<vmem>>, vector<1x128xf32>
    %70 = vector.broadcast %69 : vector<1x128xf32> to vector<4x128xf32>
    %71 = arith.addf %68, %70 : vector<4x128xf32>
    %cst_34 = arith.constant 0.000000e+00 : f32
    %72 = vector.broadcast %cst_34 : f32 to vector<4x128xf32>
    %73 = arith.maximumf %71, %72 : vector<4x128xf32>
    %74 = arith.truncf %73 : vector<4x128xf32> to vector<4x128xbf16>
    %c768 = arith.constant 768 : index
    %c0_35 = arith.constant 0 : index
    %75 = vector.load %arg5[%c768, %c0_35] : memref<912x128xbf16, #tpu.memory_space<vmem>>, vector<128x128xbf16>
    %cst_36 = arith.constant dense<0.000000e+00> : vector<4x128xf32>
    %76 = tpu.matmul %74, %75, %cst_36 {dimension_numbers = #tpu.dot_dimension_numbers<[1], [0], [0], [1], [0, 0, 1, 1], [], []>} : vector<4x128xbf16>, vector<128x128xbf16>, vector<4x128xf32> -> vector<4x128xf32>
    %c4 = arith.constant 4 : index
    %c0_37 = arith.constant 0 : index
    %77 = vector.load %arg7[%c4, %c0_37] : memref<8x512xf32, #tpu.memory_space<vmem>>, vector<1x128xf32>
    %78 = vector.broadcast %77 : vector<1x128xf32> to vector<4x128xf32>
    %79 = arith.addf %76, %78 : vector<4x128xf32>
    %cst_38 = arith.constant 0.000000e+00 : f32
    %80 = vector.broadcast %cst_38 : f32 to vector<4x128xf32>
    %81 = arith.subf %80, %79 : vector<4x128xf32>
    %82 = math.exp %81 : vector<4x128xf32>
    %cst_39 = arith.constant 1.000000e+00 : f32
    %83 = vector.broadcast %cst_39 : f32 to vector<4x128xf32>
    %84 = arith.addf %83, %82 : vector<4x128xf32>
    %85 = tpu.reciprocal %84 {approx = true} : vector<4x128xf32> -> vector<4x128xf32>
    %86 = tpu.iota {dimensions = array<i32: 1>} : vector<4x128xi32>
    %c0_i32 = arith.constant 0 : i32
    %87 = vector.broadcast %c0_i32 : i32 to vector<4x128xi32>
    %88 = arith.cmpi eq, %86, %87 : vector<4x128xi32>
    %89 = arith.select %88, %79, %85 : vector<4x128xi1>, vector<4x128xf32>
    %c0_40 = arith.constant 0 : index
    %c0_41 = arith.constant 0 : index
    %90 = vector.load %arg8[%c0_40, %c0_41] : memref<4x128xf32, #tpu.memory_space<vmem>>, vector<4x128xf32>
    tpu.vector_store %arg8[%c0_40, %c0_41], %89 {strides = array<i32>} : memref<4x128xf32, #tpu.memory_space<vmem>>, vector<4x128xf32>,
    return
  }
  func.func @transform_0(%arg0: i32) -> (i32, i32) {
    %c0_i32 = arith.constant 0 : i32
    %c0_i32_0 = arith.constant 0 : i32
    %c0_i32_1 = arith.constant 0 : i32
    return %c0_i32, %c0_i32_0 : i32, i32
  }
  func.func @transform_1(%arg0: i32) -> (i32, i32) {
    %c0_i32 = arith.constant 0 : i32
    %c0_i32_0 = arith.constant 0 : i32
    %c0_i32_1 = arith.constant 0 : i32
    return %c0_i32, %c0_i32_0 : i32, i32
  }
  func.func @transform_2(%arg0: i32) -> (i32, i32) {
    %c0_i32 = arith.constant 0 : i32
    %c0_i32_0 = arith.constant 0 : i32
    %c0_i32_1 = arith.constant 0 : i32
    return %c0_i32, %c0_i32_0 : i32, i32
  }
  func.func @transform_3(%arg0: i32) -> (i32, i32) {
    %c0_i32 = arith.constant 0 : i32
    %c0_i32_0 = arith.constant 0 : i32
    %c0_i32_1 = arith.constant 0 : i32
    return %c0_i32, %c0_i32_0 : i32, i32
  }
  func.func @transform_4(%arg0: i32) -> (i32, i32) {
    %c0_i32 = arith.constant 0 : i32
    %c0_i32_0 = arith.constant 0 : i32
    %c0_i32_1 = arith.constant 0 : i32
    return %c0_i32, %c0_i32_0 : i32, i32
  }
  func.func @transform_5(%arg0: i32) -> (i32, i32) {
    %c0_i32 = arith.constant 0 : i32
    %c0_i32_0 = arith.constant 0 : i32
    %c0_i32_1 = arith.constant 0 : i32
    return %c0_i32, %c0_i32_0 : i32, i32
  }
  func.func @transform_6(%arg0: i32) -> (i32, i32) {
    %c0_i32 = arith.constant 0 : i32
    %c0_i32_0 = arith.constant 0 : i32
    %c0_i32_1 = arith.constant 0 : i32
    return %c0_i32, %c0_i32_0 : i32, i32
  }
  func.func @transform_7(%arg0: i32) -> (i32, i32) {
    %c0_i32 = arith.constant 0 : i32
    %c0_i32_0 = arith.constant 0 : i32
    %c0_i32_1 = arith.constant 0 : i32
    return %c0_i32, %c0_i32_0 : i32, i32
  }
}

</mosaic_0001>

<llo_original>
// kernel: a2c_forward.1
$region0: #{a2c_forward.1}
  #allocation0 [shape = 'u32[]', space=smem, size = 0x4, offset = 0x4, fixed_abs, tag = 'smem constant byte address 0x4 - core index']
  #allocation1 [shape = 'u32[144,128]{1,0:T(1,128)}', space=vmem, size = 0x12000, scoped, tag = 'internal scratch']
  %s0 = inlined_call_operand.vmem [shape: bf16[16,200], index: 0, kind: input, shape index: {}]
  %s1 = inlined_call_operand.vmem [shape: bf16[4,16], index: 1, kind: input, shape index: {}]
  %s2 = inlined_call_operand.hbm [shape: bf16[200,2048], index: 2, kind: input, shape index: {}]
  %s3 = inlined_call_operand.vmem [shape: bf16[512,512], index: 3, kind: input, shape index: {}]
  %s4 = inlined_call_operand.vmem [shape: bf16[912,128], index: 4, kind: input, shape index: {}]
  %s5 = inlined_call_operand.vmem [shape: f32[1,2048], index: 5, kind: input, shape index: {}]
  %s6 = inlined_call_operand.vmem [shape: f32[8,512], index: 6, kind: input, shape index: {}]
  %s7 = inlined_call_operand.vmem [shape: f32[4,128], index: 7, kind: output, shape index: {}]
  %s8 = sld [smem:[#allocation0]]
  $region42: #{a2c_forward.1} parent=0
    _
  %s10 = ssub.s32 1, %s8
  %s11 = scalar_select 0, %s10, %s8
  $region1: #{a2c_forward.1} parent=0
    #allocation2 [shape = 'u8[819200]{0}', space=vmem, size = 0xc8000, scoped, tag = 'input window, operand 2, single buffered']
    #allocation3 [shape = 's32[1]{0}', space=sflag, size = 0x4, scoped, tag = 'scoped memory for a2c_forward.1']
    %12 = vsyncpa [#allocation3], 0
    // Predicated region
    $region2: #{a2c_forward.1} parent=1 // pred_check
      _
    $region3: #{a2c_forward.1} parent=1 // pred_check_branch
      %14 = sbr.rel (0) target = $region5
    $region4: #{a2c_forward.1} parent=1 // pred_region
      _
    $region5: #{a2c_forward.1} parent=1 // pred_fallthru
      _
    // Predicated region
    $region6: #{a2c_forward.1} parent=1 // pred_check
      _
    $region7: #{a2c_forward.1} parent=1 // pred_check_branch
      %16 = sbr.rel (0) target = $region9
    $region8: #{a2c_forward.1} parent=1 // pred_region
      _
    $region9: #{a2c_forward.1} parent=1 // pred_fallthru
      _
    // Predicated region
    $region10: #{a2c_forward.1} parent=1 // pred_check
      _
    $region11: #{a2c_forward.1} parent=1 // pred_check_branch
      %18 = sbr.rel (0) target = $region13
    $region12: #{a2c_forward.1} parent=1 // pred_region
      %s20 = ssub.s32 25600, 25600
      %21 = vsyncadd [#allocation3], %s20
      %s22 = sshll.u32 [#allocation2], 4
      %s23 = int_to_ptr.vmem [resolvable:$true] %s22
      %28 = dma.hbm_to_vmem [thread:$0]  %s2, 25600, %s23, [#allocation3], 1024, 1024, 64
    $region13: #{a2c_forward.1} parent=1 // pred_fallthru
      _
    // Predicated region
    $region14: #{a2c_forward.1} parent=1 // pred_check
      _
    $region15: #{a2c_forward.1} parent=1 // pred_check_branch
      %30 = sbr.rel (0) target = $region17
    $region16: #{a2c_forward.1} parent=1 // pred_region
      _
    $region17: #{a2c_forward.1} parent=1 // pred_fallthru
      _
    // Predicated region
    $region18: #{a2c_forward.1} parent=1 // pred_check
      _
    $region19: #{a2c_forward.1} parent=1 // pred_check_branch
      %32 = sbr.rel (0) target = $region21
    $region20: #{a2c_forward.1} parent=1 // pred_region
      _
    $region21: #{a2c_forward.1} parent=1 // pred_fallthru
      _
    // Predicated region
    $region22: #{a2c_forward.1} parent=1 // pred_check
      _
    $region23: #{a2c_forward.1} parent=1 // pred_check_branch
      %34 = sbr.rel (0) target = $region25
    $region24: #{a2c_forward.1} parent=1 // pred_region
      _
    $region25: #{a2c_forward.1} parent=1 // pred_fallthru
      _
    // Predicated region
    $region26: #{a2c_forward.1} parent=1 // pred_check
      _
    $region27: #{a2c_forward.1} parent=1 // pred_check_branch
      %36 = sbr.rel (0) target = $region29
    $region28: #{a2c_forward.1} parent=1 // pred_region
      _
    $region29: #{a2c_forward.1} parent=1 // pred_fallthru
      _
    // Predicated region
    $region30: #{a2c_forward.1} parent=1 // pred_check
      _
    $region31: #{a2c_forward.1} parent=1 // pred_check_branch
      %38 = sbr.rel (0) target = $region33
    $region32: #{a2c_forward.1} parent=1 // pred_region
      %39 = dma.done [#allocation3], 25600
    $region33: #{a2c_forward.1} parent=1 // pred_fallthru
      _
    %v41 = vld [vmem:[%s0] sm:$0xff]
    %v42 = vld [vmem:[%s0 + $0x8] sm:$0xff]
    %v43 = vld [vmem:[#allocation2] sm:$0xff]
    %v44 = vld [vmem:[#allocation2 + $0x8] sm:$0xff]
    %v45 = vld [vmem:[#allocation2 + $0x10] sm:$0xff]
    %v46 = vld [vmem:[#allocation2 + $0x18] sm:$0xff]
    %v47 = vld [vmem:[#allocation2 + $0x20] sm:$0xff]
    %v48 = vld [vmem:[#allocation2 + $0x28] sm:$0xff]
    %v49 = vld [vmem:[#allocation2 + $0x30] sm:$0xff]
    %v50 = vld [vmem:[#allocation2 + $0x38] sm:$0xff]
    %v51 = vld [vmem:[#allocation2 + $0x40] sm:$0xff]
    %v52 = vld [vmem:[#allocation2 + $0x48] sm:$0xff]
    %v53 = vld [vmem:[#allocation2 + $0x50] sm:$0xff]
    %v54 = vld [vmem:[#allocation2 + $0x58] sm:$0xff]
    %v55 = vld [vmem:[#allocation2 + $0x60] sm:$0xff]
    %v56 = vld [vmem:[#allocation2 + $0x68] sm:$0xff]
    %v57 = vld [vmem:[#allocation2 + $0x70] sm:$0xff]
    %v58 = vld [vmem:[#allocation2 + $0x78] sm:$0xff]
    %v59 = vld [vmem:[#allocation2 + $0x80] sm:$0xff]
    %v60 = vld [vmem:[#allocation2 + $0x88] sm:$0xff]
    %v61 = vld [vmem:[#allocation2 + $0x90] sm:$0xff]
    %v62 = vld [vmem:[#allocation2 + $0x98] sm:$0xff]
    %v63 = vld [vmem:[#allocation2 + $0xa0] sm:$0xff]
    %v64 = vld [vmem:[#allocation2 + $0xa8] sm:$0xff]
    %v65 = vld [vmem:[#allocation2 + $0xb0] sm:$0xff]
    %v66 = vld [vmem:[#allocation2 + $0xb8] sm:$0xff]
    %v67 = vld [vmem:[#allocation2 + $0xc0] sm:$0xff]
    %v68 = vld [vmem:[#allocation2 + $0xc8] sm:$0xff]
    %v69 = vld [vmem:[#allocation2 + $0xd0] sm:$0xff]
    %v70 = vld [vmem:[#allocation2 + $0xd8] sm:$0xff]
    %v71 = vld [vmem:[#allocation2 + $0xe0] sm:$0xff]
    %v72 = vld [vmem:[#allocation2 + $0xe8] sm:$0xff]
    %v73 = vld [vmem:[#allocation2 + $0xf0] sm:$0xff]
    %v74 = vld [vmem:[#allocation2 + $0xf8] sm:$0xff]
    %v75 = vld [vmem:[#allocation2 + $0x100] sm:$0xff]
    %v76 = vld [vmem:[#allocation2 + $0x108] sm:$0xff]
    %v77 = vld [vmem:[#allocation2 + $0x110] sm:$0xff]
    %v78 = vld [vmem:[#allocation2 + $0x118] sm:$0xff]
    %v79 = vld [vmem:[#allocation2 + $0x120] sm:$0xff]
    %v80 = vld [vmem:[#allocation2 + $0x128] sm:$0xff]
    %v81 = vld [vmem:[#allocation2 + $0x130] sm:$0xff]
    %v82 = vld [vmem:[#allocation2 + $0x138] sm:$0xff]
    %v83 = vld [vmem:[#allocation2 + $0x140] sm:$0xff]
    %v84 = vld [vmem:[#allocation2 + $0x148] sm:$0xff]
    %v85 = vld [vmem:[#allocation2 + $0x150] sm:$0xff]
    %v86 = vld [vmem:[#allocation2 + $0x158] sm:$0xff]
    %v87 = vld [vmem:[#allocation2 + $0x160] sm:$0xff]
    %v88 = vld [vmem:[#allocation2 + $0x168] sm:$0xff]
    %v89 = vld [vmem:[#allocation2 + $0x170] sm:$0xff]
    %v90 = vld [vmem:[#allocation2 + $0x178] sm:$0xff]
    %v91 = vld [vmem:[#allocation2 + $0x180] sm:$0xff]
    %v92 = vld [vmem:[#allocation2 + $0x188] sm:$0xff]
    %v93 = vld [vmem:[#allocation2 + $0x190] sm:$0xff]
    %v94 = vld [vmem:[#allocation2 + $0x198] sm:$0xff]
    %v95 = vld [vmem:[#allocation2 + $0x1a0] sm:$0xff]
    %v96 = vld [vmem:[#allocation2 + $0x1a8] sm:$0xff]
    %v97 = vld [vmem:[#allocation2 + $0x1b0] sm:$0xff]
    %v98 = vld [vmem:[#allocation2 + $0x1b8] sm:$0xff]
    %v99 = vld [vmem:[#allocation2 + $0x1c0] sm:$0xff]
    %v100 = vld [vmem:[#allocation2 + $0x1c8] sm:$0xff]
    %v101 = vld [vmem:[#allocation2 + $0x1d0] sm:$0xff]
    %v102 = vld [vmem:[#allocation2 + $0x1d8] sm:$0xff]
    %v103 = vld [vmem:[#allocation2 + $0x1e0] sm:$0xff]
    %v104 = vld [vmem:[#allocation2 + $0x1e8] sm:$0xff]
    %v105 = vld [vmem:[#allocation2 + $0x1f0] sm:$0xff]
    %v106 = vld [vmem:[#allocation2 + $0x1f8] sm:$0xff]
    %v107 = vld [vmem:[#allocation2 + $0x200] sm:$0xff]
    %v108 = vld [vmem:[#allocation2 + $0x208] sm:$0xff]
    %v109 = vld [vmem:[#allocation2 + $0x210] sm:$0xff]
    %v110 = vld [vmem:[#allocation2 + $0x218] sm:$0xff]
    %v111 = vld [vmem:[#allocation2 + $0x220] sm:$0xff]
    %v112 = vld [vmem:[#allocation2 + $0x228] sm:$0xff]
    %v113 = vld [vmem:[#allocation2 + $0x230] sm:$0xff]
    %v114 = vld [vmem:[#allocation2 + $0x238] sm:$0xff]
    %v115 = vld [vmem:[#allocation2 + $0x240] sm:$0xff]
    %v116 = vld [vmem:[#allocation2 + $0x248] sm:$0xff]
    %v117 = vld [vmem:[#allocation2 + $0x250] sm:$0xff]
    %v118 = vld [vmem:[#allocation2 + $0x258] sm:$0xff]
    %v119 = vld [vmem:[#allocation2 + $0x260] sm:$0xff]
    %v120 = vld [vmem:[#allocation2 + $0x268] sm:$0xff]
    %v121 = vld [vmem:[#allocation2 + $0x270] sm:$0xff]
    %v122 = vld [vmem:[#allocation2 + $0x278] sm:$0xff]
    %v123 = vld [vmem:[#allocation2 + $0x280] sm:$0xff]
    %v124 = vld [vmem:[#allocation2 + $0x288] sm:$0xff]
    %v125 = vld [vmem:[#allocation2 + $0x290] sm:$0xff]
    %v126 = vld [vmem:[#allocation2 + $0x298] sm:$0xff]
    %v127 = vld [vmem:[#allocation2 + $0x2a0] sm:$0xff]
    %v128 = vld [vmem:[#allocation2 + $0x2a8] sm:$0xff]
    %v129 = vld [vmem:[#allocation2 + $0x2b0] sm:$0xff]
    %v130 = vld [vmem:[#allocation2 + $0x2b8] sm:$0xff]
    %v131 = vld [vmem:[#allocation2 + $0x2c0] sm:$0xff]
    %v132 = vld [vmem:[#allocation2 + $0x2c8] sm:$0xff]
    %v133 = vld [vmem:[#allocation2 + $0x2d0] sm:$0xff]
    %v134 = vld [vmem:[#allocation2 + $0x2d8] sm:$0xff]
    %v135 = vld [vmem:[#allocation2 + $0x2e0] sm:$0xff]
    %v136 = vld [vmem:[#allocation2 + $0x2e8] sm:$0xff]
    %v137 = vld [vmem:[#allocation2 + $0x2f0] sm:$0xff]
    %v138 = vld [vmem:[#allocation2 + $0x2f8] sm:$0xff]
    %v139 = vld [vmem:[#allocation2 + $0x300] sm:$0xff]
    %v140 = vld [vmem:[#allocation2 + $0x308] sm:$0xff]
    %v141 = vld [vmem:[#allocation2 + $0x310] sm:$0xff]
    %v142 = vld [vmem:[#allocation2 + $0x318] sm:$0xff]
    %v143 = vld [vmem:[#allocation2 + $0x320] sm:$0xff]
    %v144 = vld [vmem:[#allocation2 + $0x328] sm:$0xff]
    %v145 = vld [vmem:[#allocation2 + $0x330] sm:$0xff]
    %v146 = vld [vmem:[#allocation2 + $0x338] sm:$0xff]
    %v147 = vld [vmem:[#allocation2 + $0x340] sm:$0xff]
    %v148 = vld [vmem:[#allocation2 + $0x348] sm:$0xff]
    %v149 = vld [vmem:[#allocation2 + $0x350] sm:$0xff]
    %v150 = vld [vmem:[#allocation2 + $0x358] sm:$0xff]
    %v151 = vld [vmem:[#allocation2 + $0x360] sm:$0xff]
    %v152 = vld [vmem:[#allocation2 + $0x368] sm:$0xff]
    %v153 = vld [vmem:[#allocation2 + $0x370] sm:$0xff]
    %v154 = vld [vmem:[#allocation2 + $0x378] sm:$0xff]
    %v155 = vld [vmem:[#allocation2 + $0x380] sm:$0xff]
    %v156 = vld [vmem:[#allocation2 + $0x388] sm:$0xff]
    %v157 = vld [vmem:[#allocation2 + $0x390] sm:$0xff]
    %v158 = vld [vmem:[#allocation2 + $0x398] sm:$0xff]
    %v159 = vld [vmem:[#allocation2 + $0x3a0] sm:$0xff]
    %v160 = vld [vmem:[#allocation2 + $0x3a8] sm:$0xff]
    %v161 = vld [vmem:[#allocation2 + $0x3b0] sm:$0xff]
    %v162 = vld [vmem:[#allocation2 + $0x3b8] sm:$0xff]
    %v163 = vld [vmem:[#allocation2 + $0x3c0] sm:$0xff]
    %v164 = vld [vmem:[#allocation2 + $0x3c8] sm:$0xff]
    %v165 = vld [vmem:[#allocation2 + $0x3d0] sm:$0xff]
    %v166 = vld [vmem:[#allocation2 + $0x3d8] sm:$0xff]
    %v167 = vld [vmem:[#allocation2 + $0x3e0] sm:$0xff]
    %v168 = vld [vmem:[#allocation2 + $0x3e8] sm:$0xff]
    %v169 = vld [vmem:[#allocation2 + $0x3f0] sm:$0xff]
    %v170 = vld [vmem:[#allocation2 + $0x3f8] sm:$0xff]
    %v171 = vld [vmem:[#allocation2 + $0x400] sm:$0xff]
    %v172 = vld [vmem:[#allocation2 + $0x408] sm:$0xff]
    %v173 = vld [vmem:[#allocation2 + $0x410] sm:$0xff]
    %v174 = vld [vmem:[#allocation2 + $0x418] sm:$0xff]
    %v175 = vld [vmem:[#allocation2 + $0x420] sm:$0xff]
    %v176 = vld [vmem:[#allocation2 + $0x428] sm:$0xff]
    %v177 = vld [vmem:[#allocation2 + $0x430] sm:$0xff]
    %v178 = vld [vmem:[#allocation2 + $0x438] sm:$0xff]
    %v179 = vld [vmem:[#allocation2 + $0x440] sm:$0xff]
    %v180 = vld [vmem:[#allocation2 + $0x448] sm:$0xff]
    %v181 = vld [vmem:[#allocation2 + $0x450] sm:$0xff]
    %v182 = vld [vmem:[#allocation2 + $0x458] sm:$0xff]
    %v183 = vld [vmem:[#allocation2 + $0x460] sm:$0xff]
    %v184 = vld [vmem:[#allocation2 + $0x468] sm:$0xff]
    %v185 = vld [vmem:[#allocation2 + $0x470] sm:$0xff]
    %v186 = vld [vmem:[#allocation2 + $0x478] sm:$0xff]
    %v187 = vld [vmem:[#allocation2 + $0x480] sm:$0xff]
    %v188 = vld [vmem:[#allocation2 + $0x488] sm:$0xff]
    %v189 = vld [vmem:[#allocation2 + $0x490] sm:$0xff]
    %v190 = vld [vmem:[#allocation2 + $0x498] sm:$0xff]
    %v191 = vld [vmem:[#allocation2 + $0x4a0] sm:$0xff]
    %v192 = vld [vmem:[#allocation2 + $0x4a8] sm:$0xff]
    %v193 = vld [vmem:[#allocation2 + $0x4b0] sm:$0xff]
    %v194 = vld [vmem:[#allocation2 + $0x4b8] sm:$0xff]
    %v195 = vld [vmem:[#allocation2 + $0x4c0] sm:$0xff]
    %v196 = vld [vmem:[#allocation2 + $0x4c8] sm:$0xff]
    %v197 = vld [vmem:[#allocation2 + $0x4d0] sm:$0xff]
    %v198 = vld [vmem:[#allocation2 + $0x4d8] sm:$0xff]
    %v199 = vld [vmem:[#allocation2 + $0x4e0] sm:$0xff]
    %v200 = vld [vmem:[#allocation2 + $0x4e8] sm:$0xff]
    %v201 = vld [vmem:[#allocation2 + $0x4f0] sm:$0xff]
    %v202 = vld [vmem:[#allocation2 + $0x4f8] sm:$0xff]
    %v203 = vld [vmem:[#allocation2 + $0x500] sm:$0xff]
    %v204 = vld [vmem:[#allocation2 + $0x508] sm:$0xff]
    %v205 = vld [vmem:[#allocation2 + $0x510] sm:$0xff]
    %v206 = vld [vmem:[#allocation2 + $0x518] sm:$0xff]
    %v207 = vld [vmem:[#allocation2 + $0x520] sm:$0xff]
    %v208 = vld [vmem:[#allocation2 + $0x528] sm:$0xff]
    %v209 = vld [vmem:[#allocation2 + $0x530] sm:$0xff]
    %v210 = vld [vmem:[#allocation2 + $0x538] sm:$0xff]
    %v211 = vld [vmem:[#allocation2 + $0x540] sm:$0xff]
    %v212 = vld [vmem:[#allocation2 + $0x548] sm:$0xff]
    %v213 = vld [vmem:[#allocation2 + $0x550] sm:$0xff]
    %v214 = vld [vmem:[#allocation2 + $0x558] sm:$0xff]
    %v215 = vld [vmem:[#allocation2 + $0x560] sm:$0xff]
    %v216 = vld [vmem:[#allocation2 + $0x568] sm:$0xff]
    %v217 = vld [vmem:[#allocation2 + $0x570] sm:$0xff]
    %v218 = vld [vmem:[#allocation2 + $0x578] sm:$0xff]
    %v219 = vld [vmem:[#allocation2 + $0x580] sm:$0xff]
    %v220 = vld [vmem:[#allocation2 + $0x588] sm:$0xff]
    %v221 = vld [vmem:[#allocation2 + $0x590] sm:$0xff]
    %v222 = vld [vmem:[#allocation2 + $0x598] sm:$0xff]
    %v223 = vld [vmem:[#allocation2 + $0x5a0] sm:$0xff]
    %v224 = vld [vmem:[#allocation2 + $0x5a8] sm:$0xff]
    %v225 = vld [vmem:[#allocation2 + $0x5b0] sm:$0xff]
    %v226 = vld [vmem:[#allocation2 + $0x5b8] sm:$0xff]
    %v227 = vld [vmem:[#allocation2 + $0x5c0] sm:$0xff]
    %v228 = vld [vmem:[#allocation2 + $0x5c8] sm:$0xff]
    %v229 = vld [vmem:[#allocation2 + $0x5d0] sm:$0xff]
    %v230 = vld [vmem:[#allocation2 + $0x5d8] sm:$0xff]
    %v231 = vld [vmem:[#allocation2 + $0x5e0] sm:$0xff]
    %v232 = vld [vmem:[#allocation2 + $0x5e8] sm:$0xff]
    %v233 = vld [vmem:[#allocation2 + $0x5f0] sm:$0xff]
    %v234 = vld [vmem:[#allocation2 + $0x5f8] sm:$0xff]
    %v235 = vld [vmem:[#allocation2 + $0x600] sm:$0xff]
    %v236 = vld [vmem:[#allocation2 + $0x608] sm:$0xff]
    %v237 = vld [vmem:[#allocation2 + $0x610] sm:$0xff]
    %v238 = vld [vmem:[#allocation2 + $0x618] sm:$0xff]
    %v239 = vld [vmem:[#allocation2 + $0x620] sm:$0xff]
    %v240 = vld [vmem:[#allocation2 + $0x628] sm:$0xff]
    %v241 = vld [vmem:[#allocation2 + $0x630] sm:$0xff]
    %v242 = vld [vmem:[#allocation2 + $0x638] sm:$0xff]
    %v243 = vld [vmem:[%s5] sm:$0xff]
    %v244 = vld [vmem:[%s5 + $0x8] sm:$0xff]
    %v247 = vlaneseq
    %v248 = vshrl.u32 %v247, 7
    %v249 = vsub.s32 0, %v248
    %v250 = vrot.slane %v243, %v249
    %v251 = vlaneseq
    %v252 = vshrl.u32 %v251, 7
    %v253 = vsub.s32 1, %v252
    %v254 = vrot.slane %v243, %v253
    %v255 = vlaneseq
    %v256 = vshrl.u32 %v255, 7
    %v257 = vsub.s32 2, %v256
    %v258 = vrot.slane %v243, %v257
    %v259 = vlaneseq
    %v260 = vshrl.u32 %v259, 7
    %v261 = vsub.s32 3, %v260
    %v262 = vrot.slane %v243, %v261
    %v263 = vlaneseq
    %v264 = vshrl.u32 %v263, 7
    %v265 = vsub.s32 4, %v264
    %v266 = vrot.slane %v243, %v265
    %v267 = vlaneseq
    %v268 = vshrl.u32 %v267, 7
    %v269 = vsub.s32 5, %v268
    %v270 = vrot.slane %v243, %v269
    %v271 = vlaneseq
    %v272 = vshrl.u32 %v271, 7
    %v273 = vsub.s32 6, %v272
    %v274 = vrot.slane %v243, %v273
    %v275 = vlaneseq
    %v276 = vshrl.u32 %v275, 7
    %v277 = vsub.s32 7, %v276
    %v278 = vrot.slane %v243, %v277
    %v279 = vlaneseq
    %v280 = vshrl.u32 %v279, 7
    %v281 = vsub.s32 0, %v280
    %v282 = vrot.slane %v244, %v281
    %v283 = vlaneseq
    %v284 = vshrl.u32 %v283, 7
    %v285 = vsub.s32 1, %v284
    %v286 = vrot.slane %v244, %v285
    %v287 = vlaneseq
    %v288 = vshrl.u32 %v287, 7
    %v289 = vsub.s32 2, %v288
    %v290 = vrot.slane %v244, %v289
    %v291 = vlaneseq
    %v292 = vshrl.u32 %v291, 7
    %v293 = vsub.s32 3, %v292
    %v294 = vrot.slane %v244, %v293
    %v295 = vlaneseq
    %v296 = vshrl.u32 %v295, 7
    %v297 = vsub.s32 4, %v296
    %v298 = vrot.slane %v244, %v297
    %v299 = vlaneseq
    %v300 = vshrl.u32 %v299, 7
    %v301 = vsub.s32 5, %v300
    %v302 = vrot.slane %v244, %v301
    %v303 = vlaneseq
    %v304 = vshrl.u32 %v303, 7
    %v305 = vsub.s32 6, %v304
    %v306 = vrot.slane %v244, %v305
    %v307 = vlaneseq
    %v308 = vshrl.u32 %v307, 7
    %v309 = vsub.s32 7, %v308
    %v310 = vrot.slane %v244, %v309
    %v329 = vunpack.c.l.b16 %v41
    %v330 = vunpack.c.h.b16 %v41
    %v331 = vunpack.c.l.b16 %v42
    %v332 = vunpack.c.h.b16 %v42
    %v333 = vpack.c.b16 %v331, %v329
    %v334 = vpack.c.b16 %v332, %v330
    %v536 = vunpack.c.l.b16 %v43
    %v537 = vunpack.c.h.b16 %v43
    %v538 = vunpack.c.l.b16 %v44
    %v539 = vunpack.c.h.b16 %v44
    %v540 = vunpack.c.l.b16 %v45
    %v541 = vunpack.c.h.b16 %v45
    %v542 = vunpack.c.l.b16 %v46
    %v543 = vunpack.c.h.b16 %v46
    %v544 = vunpack.c.l.b16 %v47
    %v545 = vunpack.c.h.b16 %v47
    %v546 = vunpack.c.l.b16 %v48
    %v547 = vunpack.c.h.b16 %v48
    %v548 = vunpack.c.l.b16 %v49
    %v549 = vunpack.c.h.b16 %v49
    %v550 = vunpack.c.l.b16 %v50
    %v551 = vunpack.c.h.b16 %v50
    %v552 = vunpack.c.l.b16 %v51
    %v553 = vunpack.c.h.b16 %v51
    %v554 = vunpack.c.l.b16 %v52
    %v555 = vunpack.c.h.b16 %v52
    %v556 = vunpack.c.l.b16 %v53
    %v557 = vunpack.c.h.b16 %v53
    %v558 = vunpack.c.l.b16 %v54
    %v559 = vunpack.c.h.b16 %v54
    %v560 = vunpack.c.l.b16 %v55
    %v561 = vunpack.c.h.b16 %v55
    %v562 = vunpack.c.l.b16 %v56
    %v563 = vunpack.c.h.b16 %v56
    %v564 = vunpack.c.l.b16 %v57
    %v565 = vunpack.c.h.b16 %v57
    %v566 = vunpack.c.l.b16 %v58
    %v567 = vunpack.c.h.b16 %v58
    %v568 = vunpack.c.l.b16 %v59
    %v569 = vunpack.c.h.b16 %v59
    %v570 = vunpack.c.l.b16 %v60
    %v571 = vunpack.c.h.b16 %v60
    %v572 = vunpack.c.l.b16 %v61
    %v573 = vunpack.c.h.b16 %v61
    %v574 = vunpack.c.l.b16 %v62
    %v575 = vunpack.c.h.b16 %v62
    %v576 = vunpack.c.l.b16 %v63
    %v577 = vunpack.c.h.b16 %v63
    %v578 = vunpack.c.l.b16 %v64
    %v579 = vunpack.c.h.b16 %v64
    %v580 = vunpack.c.l.b16 %v65
    %v581 = vunpack.c.h.b16 %v65
    %v582 = vunpack.c.l.b16 %v66
    %v583 = vunpack.c.h.b16 %v66
    %v584 = vunpack.c.l.b16 %v67
    %v585 = vunpack.c.h.b16 %v67
    %v586 = vunpack.c.l.b16 %v68
    %v587 = vunpack.c.h.b16 %v68
    %v588 = vunpack.c.l.b16 %v69
    %v589 = vunpack.c.h.b16 %v69
    %v590 = vunpack.c.l.b16 %v70
    %v591 = vunpack.c.h.b16 %v70
    %v592 = vunpack.c.l.b16 %v71
    %v593 = vunpack.c.h.b16 %v71
    %v594 = vunpack.c.l.b16 %v72
    %v595 = vunpack.c.h.b16 %v72
    %v596 = vunpack.c.l.b16 %v73
    %v597 = vunpack.c.h.b16 %v73
    %v598 = vunpack.c.l.b16 %v74
    %v599 = vunpack.c.h.b16 %v74
    %v600 = vunpack.c.l.b16 %v75
    %v601 = vunpack.c.h.b16 %v75
    %v602 = vunpack.c.l.b16 %v76
    %v603 = vunpack.c.h.b16 %v76
    %v604 = vunpack.c.l.b16 %v77
    %v605 = vunpack.c.h.b16 %v77
    %v606 = vunpack.c.l.b16 %v78
    %v607 = vunpack.c.h.b16 %v78
    %v608 = vunpack.c.l.b16 %v79
    %v609 = vunpack.c.h.b16 %v79
    %v610 = vunpack.c.l.b16 %v80
    %v611 = vunpack.c.h.b16 %v80
    %v612 = vunpack.c.l.b16 %v81
    %v613 = vunpack.c.h.b16 %v81
    %v614 = vunpack.c.l.b16 %v82
    %v615 = vunpack.c.h.b16 %v82
    %v616 = vunpack.c.l.b16 %v83
    %v617 = vunpack.c.h.b16 %v83
    %v618 = vunpack.c.l.b16 %v84
    %v619 = vunpack.c.h.b16 %v84
    %v620 = vunpack.c.l.b16 %v85
    %v621 = vunpack.c.h.b16 %v85
    %v622 = vunpack.c.l.b16 %v86
    %v623 = vunpack.c.h.b16 %v86
    %v624 = vunpack.c.l.b16 %v87
    %v625 = vunpack.c.h.b16 %v87
    %v626 = vunpack.c.l.b16 %v88
    %v627 = vunpack.c.h.b16 %v88
    %v628 = vunpack.c.l.b16 %v89
    %v629 = vunpack.c.h.b16 %v89
    %v630 = vunpack.c.l.b16 %v90
    %v631 = vunpack.c.h.b16 %v90
    %v632 = vunpack.c.l.b16 %v91
    %v633 = vunpack.c.h.b16 %v91
    %v634 = vunpack.c.l.b16 %v92
    %v635 = vunpack.c.h.b16 %v92
    %v636 = vunpack.c.l.b16 %v93
    %v637 = vunpack.c.h.b16 %v93
    %v638 = vunpack.c.l.b16 %v94
    %v639 = vunpack.c.h.b16 %v94
    %v640 = vunpack.c.l.b16 %v95
    %v641 = vunpack.c.h.b16 %v95
    %v642 = vunpack.c.l.b16 %v96
    %v643 = vunpack.c.h.b16 %v96
    %v644 = vunpack.c.l.b16 %v97
    %v645 = vunpack.c.h.b16 %v97
    %v646 = vunpack.c.l.b16 %v98
    %v647 = vunpack.c.h.b16 %v98
    %v648 = vunpack.c.l.b16 %v99
    %v649 = vunpack.c.h.b16 %v99
    %v650 = vunpack.c.l.b16 %v100
    %v651 = vunpack.c.h.b16 %v100
    %v652 = vunpack.c.l.b16 %v101
    %v653 = vunpack.c.h.b16 %v101
    %v654 = vunpack.c.l.b16 %v102
    %v655 = vunpack.c.h.b16 %v102
    %v656 = vunpack.c.l.b16 %v103
    %v657 = vunpack.c.h.b16 %v103
    %v658 = vunpack.c.l.b16 %v104
    %v659 = vunpack.c.h.b16 %v104
    %v660 = vunpack.c.l.b16 %v105
    %v661 = vunpack.c.h.b16 %v105
    %v662 = vunpack.c.l.b16 %v106
    %v663 = vunpack.c.h.b16 %v106
    %v664 = vunpack.c.l.b16 %v107
    %v665 = vunpack.c.h.b16 %v107
    %v666 = vunpack.c.l.b16 %v108
    %v667 = vunpack.c.h.b16 %v108
    %v668 = vunpack.c.l.b16 %v109
    %v669 = vunpack.c.h.b16 %v109
    %v670 = vunpack.c.l.b16 %v110
    %v671 = vunpack.c.h.b16 %v110
    %v672 = vunpack.c.l.b16 %v111
    %v673 = vunpack.c.h.b16 %v111
    %v674 = vunpack.c.l.b16 %v112
    %v675 = vunpack.c.h.b16 %v112
    %v676 = vunpack.c.l.b16 %v113
    %v677 = vunpack.c.h.b16 %v113
    %v678 = vunpack.c.l.b16 %v114
    %v679 = vunpack.c.h.b16 %v114
    %v680 = vunpack.c.l.b16 %v115
    %v681 = vunpack.c.h.b16 %v115
    %v682 = vunpack.c.l.b16 %v116
    %v683 = vunpack.c.h.b16 %v116
    %v684 = vunpack.c.l.b16 %v117
    %v685 = vunpack.c.h.b16 %v117
    %v686 = vunpack.c.l.b16 %v118
    %v687 = vunpack.c.h.b16 %v118
    %v688 = vunpack.c.l.b16 %v119
    %v689 = vunpack.c.h.b16 %v119
    %v690 = vunpack.c.l.b16 %v120
    %v691 = vunpack.c.h.b16 %v120
    %v692 = vunpack.c.l.b16 %v121
    %v693 = vunpack.c.h.b16 %v121
    %v694 = vunpack.c.l.b16 %v122
    %v695 = vunpack.c.h.b16 %v122
    %v696 = vunpack.c.l.b16 %v123
    %v697 = vunpack.c.h.b16 %v123
    %v698 = vunpack.c.l.b16 %v124
    %v699 = vunpack.c.h.b16 %v124
    %v700 = vunpack.c.l.b16 %v125
    %v701 = vunpack.c.h.b16 %v125
    %v702 = vunpack.c.l.b16 %v126
    %v703 = vunpack.c.h.b16 %v126
    %v704 = vunpack.c.l.b16 %v127
    %v705 = vunpack.c.h.b16 %v127
    %v706 = vunpack.c.l.b16 %v128
    %v707 = vunpack.c.h.b16 %v128
    %v708 = vunpack.c.l.b16 %v129
    %v709 = vunpack.c.h.b16 %v129
    %v710 = vunpack.c.l.b16 %v130
    %v711 = vunpack.c.h.b16 %v130
    %v712 = vunpack.c.l.b16 %v131
    %v713 = vunpack.c.h.b16 %v131
    %v714 = vunpack.c.l.b16 %v132
    %v715 = vunpack.c.h.b16 %v132
    %v716 = vunpack.c.l.b16 %v133
    %v717 = vunpack.c.h.b16 %v133
    %v718 = vunpack.c.l.b16 %v134
    %v719 = vunpack.c.h.b16 %v134
    %v720 = vunpack.c.l.b16 %v135
    %v721 = vunpack.c.h.b16 %v135
    %v722 = vunpack.c.l.b16 %v136
    %v723 = vunpack.c.h.b16 %v136
    %v724 = vunpack.c.l.b16 %v137
    %v725 = vunpack.c.h.b16 %v137
    %v726 = vunpack.c.l.b16 %v138
    %v727 = vunpack.c.h.b16 %v138
    %v728 = vunpack.c.l.b16 %v139
    %v729 = vunpack.c.h.b16 %v139
    %v730 = vunpack.c.l.b16 %v140
    %v731 = vunpack.c.h.b16 %v140
    %v732 = vunpack.c.l.b16 %v141
    %v733 = vunpack.c.h.b16 %v141
    %v734 = vunpack.c.l.b16 %v142
    %v735 = vunpack.c.h.b16 %v142
    %v736 = vunpack.c.l.b16 %v143
    %v737 = vunpack.c.h.b16 %v143
    %v738 = vunpack.c.l.b16 %v144
    %v739 = vunpack.c.h.b16 %v144
    %v740 = vunpack.c.l.b16 %v145
    %v741 = vunpack.c.h.b16 %v145
    %v742 = vunpack.c.l.b16 %v146
    %v743 = vunpack.c.h.b16 %v146
    %v744 = vunpack.c.l.b16 %v147
    %v745 = vunpack.c.h.b16 %v147
    %v746 = vunpack.c.l.b16 %v148
    %v747 = vunpack.c.h.b16 %v148
    %v748 = vunpack.c.l.b16 %v149
    %v749 = vunpack.c.h.b16 %v149
    %v750 = vunpack.c.l.b16 %v150
    %v751 = vunpack.c.h.b16 %v150
    %v752 = vunpack.c.l.b16 %v151
    %v753 = vunpack.c.h.b16 %v151
    %v754 = vunpack.c.l.b16 %v152
    %v755 = vunpack.c.h.b16 %v152
    %v756 = vunpack.c.l.b16 %v153
    %v757 = vunpack.c.h.b16 %v153
    %v758 = vunpack.c.l.b16 %v154
    %v759 = vunpack.c.h.b16 %v154
    %v760 = vunpack.c.l.b16 %v155
    %v761 = vunpack.c.h.b16 %v155
    %v762 = vunpack.c.l.b16 %v156
    %v763 = vunpack.c.h.b16 %v156
    %v764 = vunpack.c.l.b16 %v157
    %v765 = vunpack.c.h.b16 %v157
    %v766 = vunpack.c.l.b16 %v158
    %v767 = vunpack.c.h.b16 %v158
    %v768 = vunpack.c.l.b16 %v159
    %v769 = vunpack.c.h.b16 %v159
    %v770 = vunpack.c.l.b16 %v160
    %v771 = vunpack.c.h.b16 %v160
    %v772 = vunpack.c.l.b16 %v161
    %v773 = vunpack.c.h.b16 %v161
    %v774 = vunpack.c.l.b16 %v162
    %v775 = vunpack.c.h.b16 %v162
    %v776 = vunpack.c.l.b16 %v163
    %v777 = vunpack.c.h.b16 %v163
    %v778 = vunpack.c.l.b16 %v164
    %v779 = vunpack.c.h.b16 %v164
    %v780 = vunpack.c.l.b16 %v165
    %v781 = vunpack.c.h.b16 %v165
    %v782 = vunpack.c.l.b16 %v166
    %v783 = vunpack.c.h.b16 %v166
    %v784 = vunpack.c.l.b16 %v167
    %v785 = vunpack.c.h.b16 %v167
    %v786 = vunpack.c.l.b16 %v168
    %v787 = vunpack.c.h.b16 %v168
    %v788 = vunpack.c.l.b16 %v169
    %v789 = vunpack.c.h.b16 %v169
    %v790 = vunpack.c.l.b16 %v170
    %v791 = vunpack.c.h.b16 %v170
    %v792 = vunpack.c.l.b16 %v171
    %v793 = vunpack.c.h.b16 %v171
    %v794 = vunpack.c.l.b16 %v172
    %v795 = vunpack.c.h.b16 %v172
    %v796 = vunpack.c.l.b16 %v173
    %v797 = vunpack.c.h.b16 %v173
    %v798 = vunpack.c.l.b16 %v174
    %v799 = vunpack.c.h.b16 %v174
    %v800 = vunpack.c.l.b16 %v175
    %v801 = vunpack.c.h.b16 %v175
    %v802 = vunpack.c.l.b16 %v176
    %v803 = vunpack.c.h.b16 %v176
    %v804 = vunpack.c.l.b16 %v177
    %v805 = vunpack.c.h.b16 %v177
    %v806 = vunpack.c.l.b16 %v178
    %v807 = vunpack.c.h.b16 %v178
    %v808 = vunpack.c.l.b16 %v179
    %v809 = vunpack.c.h.b16 %v179
    %v810 = vunpack.c.l.b16 %v180
    %v811 = vunpack.c.h.b16 %v180
    %v812 = vunpack.c.l.b16 %v181
    %v813 = vunpack.c.h.b16 %v181
    %v814 = vunpack.c.l.b16 %v182
    %v815 = vunpack.c.h.b16 %v182
    %v816 = vunpack.c.l.b16 %v183
    %v817 = vunpack.c.h.b16 %v183
    %v818 = vunpack.c.l.b16 %v184
    %v819 = vunpack.c.h.b16 %v184
    %v820 = vunpack.c.l.b16 %v185
    %v821 = vunpack.c.h.b16 %v185
    %v822 = vunpack.c.l.b16 %v186
    %v823 = vunpack.c.h.b16 %v186
    %v824 = vunpack.c.l.b16 %v187
    %v825 = vunpack.c.h.b16 %v187
    %v826 = vunpack.c.l.b16 %v188
    %v827 = vunpack.c.h.b16 %v188
    %v828 = vunpack.c.l.b16 %v189
    %v829 = vunpack.c.h.b16 %v189
    %v830 = vunpack.c.l.b16 %v190
    %v831 = vunpack.c.h.b16 %v190
    %v832 = vunpack.c.l.b16 %v191
    %v833 = vunpack.c.h.b16 %v191
    %v834 = vunpack.c.l.b16 %v192
    %v835 = vunpack.c.h.b16 %v192
    %v836 = vunpack.c.l.b16 %v193
    %v837 = vunpack.c.h.b16 %v193
    %v838 = vunpack.c.l.b16 %v194
    %v839 = vunpack.c.h.b16 %v194
    %v840 = vunpack.c.l.b16 %v195
    %v841 = vunpack.c.h.b16 %v195
    %v842 = vunpack.c.l.b16 %v196
    %v843 = vunpack.c.h.b16 %v196
    %v844 = vunpack.c.l.b16 %v197
    %v845 = vunpack.c.h.b16 %v197
    %v846 = vunpack.c.l.b16 %v198
    %v847 = vunpack.c.h.b16 %v198
    %v848 = vunpack.c.l.b16 %v199
    %v849 = vunpack.c.h.b16 %v199
    %v850 = vunpack.c.l.b16 %v200
    %v851 = vunpack.c.h.b16 %v200
    %v852 = vunpack.c.l.b16 %v201
    %v853 = vunpack.c.h.b16 %v201
    %v854 = vunpack.c.l.b16 %v202
    %v855 = vunpack.c.h.b16 %v202
    %v856 = vunpack.c.l.b16 %v203
    %v857 = vunpack.c.h.b16 %v203
    %v858 = vunpack.c.l.b16 %v204
    %v859 = vunpack.c.h.b16 %v204
    %v860 = vunpack.c.l.b16 %v205
    %v861 = vunpack.c.h.b16 %v205
    %v862 = vunpack.c.l.b16 %v206
    %v863 = vunpack.c.h.b16 %v206
    %v864 = vunpack.c.l.b16 %v207
    %v865 = vunpack.c.h.b16 %v207
    %v866 = vunpack.c.l.b16 %v208
    %v867 = vunpack.c.h.b16 %v208
    %v868 = vunpack.c.l.b16 %v209
    %v869 = vunpack.c.h.b16 %v209
    %v870 = vunpack.c.l.b16 %v210
    %v871 = vunpack.c.h.b16 %v210
    %v872 = vunpack.c.l.b16 %v211
    %v873 = vunpack.c.h.b16 %v211
    %v874 = vunpack.c.l.b16 %v212
    %v875 = vunpack.c.h.b16 %v212
    %v876 = vunpack.c.l.b16 %v213
    %v877 = vunpack.c.h.b16 %v213
    %v878 = vunpack.c.l.b16 %v214
    %v879 = vunpack.c.h.b16 %v214
    %v880 = vunpack.c.l.b16 %v215
    %v881 = vunpack.c.h.b16 %v215
    %v882 = vunpack.c.l.b16 %v216
    %v883 = vunpack.c.h.b16 %v216
    %v884 = vunpack.c.l.b16 %v217
    %v885 = vunpack.c.h.b16 %v217
    %v886 = vunpack.c.l.b16 %v218
    %v887 = vunpack.c.h.b16 %v218
    %v888 = vunpack.c.l.b16 %v219
    %v889 = vunpack.c.h.b16 %v219
    %v890 = vunpack.c.l.b16 %v220
    %v891 = vunpack.c.h.b16 %v220
    %v892 = vunpack.c.l.b16 %v221
    %v893 = vunpack.c.h.b16 %v221
    %v894 = vunpack.c.l.b16 %v222
    %v895 = vunpack.c.h.b16 %v222
    %v896 = vunpack.c.l.b16 %v223
    %v897 = vunpack.c.h.b16 %v223
    %v898 = vunpack.c.l.b16 %v224
    %v899 = vunpack.c.h.b16 %v224
    %v900 = vunpack.c.l.b16 %v225
    %v901 = vunpack.c.h.b16 %v225
    %v902 = vunpack.c.l.b16 %v226
    %v903 = vunpack.c.h.b16 %v226
    %v904 = vunpack.c.l.b16 %v227
    %v905 = vunpack.c.h.b16 %v227
    %v906 = vunpack.c.l.b16 %v228
    %v907 = vunpack.c.h.b16 %v228
    %v908 = vunpack.c.l.b16 %v229
    %v909 = vunpack.c.h.b16 %v229
    %v910 = vunpack.c.l.b16 %v230
    %v911 = vunpack.c.h.b16 %v230
    %v912 = vunpack.c.l.b16 %v231
    %v913 = vunpack.c.h.b16 %v231
    %v914 = vunpack.c.l.b16 %v232
    %v915 = vunpack.c.h.b16 %v232
    %v916 = vunpack.c.l.b16 %v233
    %v917 = vunpack.c.h.b16 %v233
    %v918 = vunpack.c.l.b16 %v234
    %v919 = vunpack.c.h.b16 %v234
    %v920 = vunpack.c.l.b16 %v235
    %v921 = vunpack.c.h.b16 %v235
    %v922 = vunpack.c.l.b16 %v236
    %v923 = vunpack.c.h.b16 %v236
    %v924 = vunpack.c.l.b16 %v237
    %v925 = vunpack.c.h.b16 %v237
    %v926 = vunpack.c.l.b16 %v238
    %v927 = vunpack.c.h.b16 %v238
    %v928 = vunpack.c.l.b16 %v239
    %v929 = vunpack.c.h.b16 %v239
    %v930 = vunpack.c.l.b16 %v240
    %v931 = vunpack.c.h.b16 %v240
    %v932 = vunpack.c.l.b16 %v241
    %v933 = vunpack.c.h.b16 %v241
    %v934 = vunpack.c.l.b16 %v242
    %v935 = vunpack.c.h.b16 %v242
    %v936 = vpack.c.b16 %v552, %v536
    %v937 = vpack.c.b16 %v553, %v537
    %v938 = vpack.c.b16 %v554, %v538
    %v939 = vpack.c.b16 %v555, %v539
    %v940 = vpack.c.b16 %v556, %v540
    %v941 = vpack.c.b16 %v557, %v541
    %v942 = vpack.c.b16 %v558, %v542
    %v943 = vpack.c.b16 %v559, %v543
    %v944 = vpack.c.b16 %v560, %v544
    %v945 = vpack.c.b16 %v561, %v545
    %v946 = vpack.c.b16 %v562, %v546
    %v947 = vpack.c.b16 %v563, %v547
    %v948 = vpack.c.b16 %v564, %v548
    %v949 = vpack.c.b16 %v565, %v549
    %v950 = vpack.c.b16 %v566, %v550
    %v951 = vpack.c.b16 %v567, %v551
    %v952 = vpack.c.b16 %v584, %v568
    %v953 = vpack.c.b16 %v585, %v569
    %v954 = vpack.c.b16 %v586, %v570
    %v955 = vpack.c.b16 %v587, %v571
    %v956 = vpack.c.b16 %v588, %v572
    %v957 = vpack.c.b16 %v589, %v573
    %v958 = vpack.c.b16 %v590, %v574
    %v959 = vpack.c.b16 %v591, %v575
    %v960 = vpack.c.b16 %v592, %v576
    %v961 = vpack.c.b16 %v593, %v577
    %v962 = vpack.c.b16 %v594, %v578
    %v963 = vpack.c.b16 %v595, %v579
    %v964 = vpack.c.b16 %v596, %v580
    %v965 = vpack.c.b16 %v597, %v581
    %v966 = vpack.c.b16 %v598, %v582
    %v967 = vpack.c.b16 %v599, %v583
    %v968 = vpack.c.b16 %v616, %v600
    %v969 = vpack.c.b16 %v617, %v601
    %v970 = vpack.c.b16 %v618, %v602
    %v971 = vpack.c.b16 %v619, %v603
    %v972 = vpack.c.b16 %v620, %v604
    %v973 = vpack.c.b16 %v621, %v605
    %v974 = vpack.c.b16 %v622, %v606
    %v975 = vpack.c.b16 %v623, %v607
    %v976 = vpack.c.b16 %v624, %v608
    %v977 = vpack.c.b16 %v625, %v609
    %v978 = vpack.c.b16 %v626, %v610
    %v979 = vpack.c.b16 %v627, %v611
    %v980 = vpack.c.b16 %v628, %v612
    %v981 = vpack.c.b16 %v629, %v613
    %v982 = vpack.c.b16 %v630, %v614
    %v983 = vpack.c.b16 %v631, %v615
    %v984 = vpack.c.b16 %v648, %v632
    %v985 = vpack.c.b16 %v649, %v633
    %v986 = vpack.c.b16 %v650, %v634
    %v987 = vpack.c.b16 %v651, %v635
    %v988 = vpack.c.b16 %v652, %v636
    %v989 = vpack.c.b16 %v653, %v637
    %v990 = vpack.c.b16 %v654, %v638
    %v991 = vpack.c.b16 %v655, %v639
    %v992 = vpack.c.b16 %v656, %v640
    %v993 = vpack.c.b16 %v657, %v641
    %v994 = vpack.c.b16 %v658, %v642
    %v995 = vpack.c.b16 %v659, %v643
    %v996 = vpack.c.b16 %v660, %v644
    %v997 = vpack.c.b16 %v661, %v645
    %v998 = vpack.c.b16 %v662, %v646
    %v999 = vpack.c.b16 %v663, %v647
    %v1000 = vpack.c.b16 %v680, %v664
    %v1001 = vpack.c.b16 %v681, %v665
    %v1002 = vpack.c.b16 %v682, %v666
    %v1003 = vpack.c.b16 %v683, %v667
    %v1004 = vpack.c.b16 %v684, %v668
    %v1005 = vpack.c.b16 %v685, %v669
    %v1006 = vpack.c.b16 %v686, %v670
    %v1007 = vpack.c.b16 %v687, %v671
    %v1008 = vpack.c.b16 %v688, %v672
    %v1009 = vpack.c.b16 %v689, %v673
    %v1010 = vpack.c.b16 %v690, %v674
    %v1011 = vpack.c.b16 %v691, %v675
    %v1012 = vpack.c.b16 %v692, %v676
    %v1013 = vpack.c.b16 %v693, %v677
    %v1014 = vpack.c.b16 %v694, %v678
    %v1015 = vpack.c.b16 %v695, %v679
    %v1016 = vpack.c.b16 %v712, %v696
    %v1017 = vpack.c.b16 %v713, %v697
    %v1018 = vpack.c.b16 %v714, %v698
    %v1019 = vpack.c.b16 %v715, %v699
    %v1020 = vpack.c.b16 %v716, %v700
    %v1021 = vpack.c.b16 %v717, %v701
    %v1022 = vpack.c.b16 %v718, %v702
    %v1023 = vpack.c.b16 %v719, %v703
    %v1024 = vpack.c.b16 %v720, %v704
    %v1025 = vpack.c.b16 %v721, %v705
    %v1026 = vpack.c.b16 %v722, %v706
    %v1027 = vpack.c.b16 %v723, %v707
    %v1028 = vpack.c.b16 %v724, %v708
    %v1029 = vpack.c.b16 %v725, %v709
    %v1030 = vpack.c.b16 %v726, %v710
    %v1031 = vpack.c.b16 %v727, %v711
    %v1032 = vpack.c.b16 %v744, %v728
    %v1033 = vpack.c.b16 %v745, %v729
    %v1034 = vpack.c.b16 %v746, %v730
    %v1035 = vpack.c.b16 %v747, %v731
    %v1036 = vpack.c.b16 %v748, %v732
    %v1037 = vpack.c.b16 %v749, %v733
    %v1038 = vpack.c.b16 %v750, %v734
    %v1039 = vpack.c.b16 %v751, %v735
    %v1040 = vpack.c.b16 %v752, %v736
    %v1041 = vpack.c.b16 %v753, %v737
    %v1042 = vpack.c.b16 %v754, %v738
    %v1043 = vpack.c.b16 %v755, %v739
    %v1044 = vpack.c.b16 %v756, %v740
    %v1045 = vpack.c.b16 %v757, %v741
    %v1046 = vpack.c.b16 %v758, %v742
    %v1047 = vpack.c.b16 %v759, %v743
    %v1048 = vpack.c.b16 %v776, %v760
    %v1049 = vpack.c.b16 %v777, %v761
    %v1050 = vpack.c.b16 %v778, %v762
    %v1051 = vpack.c.b16 %v779, %v763
    %v1052 = vpack.c.b16 %v780, %v764
    %v1053 = vpack.c.b16 %v781, %v765
    %v1054 = vpack.c.b16 %v782, %v766
    %v1055 = vpack.c.b16 %v783, %v767
    %v1056 = vpack.c.b16 %v784, %v768
    %v1057 = vpack.c.b16 %v785, %v769
    %v1058 = vpack.c.b16 %v786, %v770
    %v1059 = vpack.c.b16 %v787, %v771
    %v1060 = vpack.c.b16 %v788, %v772
    %v1061 = vpack.c.b16 %v789, %v773
    %v1062 = vpack.c.b16 %v790, %v774
    %v1063 = vpack.c.b16 %v791, %v775
    %v1064 = vpack.c.b16 %v808, %v792
    %v1065 = vpack.c.b16 %v809, %v793
    %v1066 = vpack.c.b16 %v810, %v794
    %v1067 = vpack.c.b16 %v811, %v795
    %v1068 = vpack.c.b16 %v812, %v796
    %v1069 = vpack.c.b16 %v813, %v797
    %v1070 = vpack.c.b16 %v814, %v798
    %v1071 = vpack.c.b16 %v815, %v799
    %v1072 = vpack.c.b16 %v816, %v800
    %v1073 = vpack.c.b16 %v817, %v801
    %v1074 = vpack.c.b16 %v818, %v802
    %v1075 = vpack.c.b16 %v819, %v803
    %v1076 = vpack.c.b16 %v820, %v804
    %v1077 = vpack.c.b16 %v821, %v805
    %v1078 = vpack.c.b16 %v822, %v806
    %v1079 = vpack.c.b16 %v823, %v807
    %v1080 = vpack.c.b16 %v840, %v824
    %v1081 = vpack.c.b16 %v841, %v825
    %v1082 = vpack.c.b16 %v842, %v826
    %v1083 = vpack.c.b16 %v843, %v827
    %v1084 = vpack.c.b16 %v844, %v828
    %v1085 = vpack.c.b16 %v845, %v829
    %v1086 = vpack.c.b16 %v846, %v830
    %v1087 = vpack.c.b16 %v847, %v831
    %v1088 = vpack.c.b16 %v848, %v832
    %v1089 = vpack.c.b16 %v849, %v833
    %v1090 = vpack.c.b16 %v850, %v834
    %v1091 = vpack.c.b16 %v851, %v835
    %v1092 = vpack.c.b16 %v852, %v836
    %v1093 = vpack.c.b16 %v853, %v837
    %v1094 = vpack.c.b16 %v854, %v838
    %v1095 = vpack.c.b16 %v855, %v839
    %v1096 = vpack.c.b16 %v872, %v856
    %v1097 = vpack.c.b16 %v873, %v857
    %v1098 = vpack.c.b16 %v874, %v858
    %v1099 = vpack.c.b16 %v875, %v859
    %v1100 = vpack.c.b16 %v876, %v860
    %v1101 = vpack.c.b16 %v877, %v861
    %v1102 = vpack.c.b16 %v878, %v862
    %v1103 = vpack.c.b16 %v879, %v863
    %v1104 = vpack.c.b16 %v880, %v864
    %v1105 = vpack.c.b16 %v881, %v865
    %v1106 = vpack.c.b16 %v882, %v866
    %v1107 = vpack.c.b16 %v883, %v867
    %v1108 = vpack.c.b16 %v884, %v868
    %v1109 = vpack.c.b16 %v885, %v869
    %v1110 = vpack.c.b16 %v886, %v870
    %v1111 = vpack.c.b16 %v887, %v871
    %v1112 = vpack.c.b16 %v904, %v888
    %v1113 = vpack.c.b16 %v905, %v889
    %v1114 = vpack.c.b16 %v906, %v890
    %v1115 = vpack.c.b16 %v907, %v891
    %v1116 = vpack.c.b16 %v908, %v892
    %v1117 = vpack.c.b16 %v909, %v893
    %v1118 = vpack.c.b16 %v910, %v894
    %v1119 = vpack.c.b16 %v911, %v895
    %v1120 = vpack.c.b16 %v912, %v896
    %v1121 = vpack.c.b16 %v913, %v897
    %v1122 = vpack.c.b16 %v914, %v898
    %v1123 = vpack.c.b16 %v915, %v899
    %v1124 = vpack.c.b16 %v916, %v900
    %v1125 = vpack.c.b16 %v917, %v901
    %v1126 = vpack.c.b16 %v918, %v902
    %v1127 = vpack.c.b16 %v919, %v903
    %v1128 = vpack.c.b16 %v920, %v920
    %v1129 = vpack.c.b16 %v921, %v921
    %v1130 = vpack.c.b16 %v922, %v922
    %v1131 = vpack.c.b16 %v923, %v923
    %v1132 = vpack.c.b16 %v924, %v924
    %v1133 = vpack.c.b16 %v925, %v925
    %v1134 = vpack.c.b16 %v926, %v926
    %v1135 = vpack.c.b16 %v927, %v927
    %v1136 = vpack.c.b16 %v928, %v928
    %v1137 = vpack.c.b16 %v929, %v929
    %v1138 = vpack.c.b16 %v930, %v930
    %v1139 = vpack.c.b16 %v931, %v931
    %v1140 = vpack.c.b16 %v932, %v932
    %v1141 = vpack.c.b16 %v933, %v933
    %v1142 = vpack.c.b16 %v934, %v934
    %v1143 = vpack.c.b16 %v935, %v935
    %vm1336 = vcmask 588800
    %v1338 = vsel %vm1336, %v334, 0
    %vm1340 = vcmask 1043456
    %v1342 = vsel %vm1340, %v1128, 0
    %v1345 = vsel %vm1340, %v1129, 0
    %v1348 = vsel %vm1340, %v1130, 0
    %v1351 = vsel %vm1340, %v1131, 0
    %v1354 = vsel %vm1340, %v1132, 0
    %v1357 = vsel %vm1340, %v1133, 0
    %v1360 = vsel %vm1340, %v1134, 0
    %v1363 = vsel %vm1340, %v1135, 0
    %v1366 = vsel %vm1340, %v1136, 0
    %v1369 = vsel %vm1340, %v1137, 0
    %v1372 = vsel %vm1340, %v1138, 0
    %v1375 = vsel %vm1340, %v1139, 0
    %v1378 = vsel %vm1340, %v1140, 0
    %v1381 = vsel %vm1340, %v1141, 0
    %v1384 = vsel %vm1340, %v1142, 0
    %v1387 = vsel %vm1340, %v1143, 0
    %1389 = vmatprep.subr.bf16.mxu0 %v937
    %1390 = vmatpush1.bf16.msra.mxu0 %v936
    %1391 = vmatprep.subr.bf16.mxu0 %v953
    %1392 = vmatpush1.bf16.msra.mxu0 %v952
    %1393 = vmatprep.subr.bf16.mxu0 %v969
    %1394 = vmatpush1.bf16.msra.mxu0 %v968
    %1395 = vmatprep.subr.bf16.mxu0 %v985
    %1396 = vmatpush1.bf16.msra.mxu0 %v984
    %1397 = vmatprep.subr.bf16.mxu0 %v1001
    %1398 = vmatpush1.bf16.msra.mxu0 %v1000
    %1399 = vmatprep.subr.bf16.mxu0 %v1017
    %1400 = vmatpush1.bf16.msra.mxu0 %v1016
    %1401 = vmatprep.subr.bf16.mxu0 %v1033
    %1402 = vmatpush1.bf16.msra.mxu0 %v1032
    %1403 = vmatprep.subr.bf16.mxu0 %v1049
    %1404 = vmatpush1.bf16.msra.mxu0 %v1048
    %1405 = vmatprep.subr.bf16.mxu0 %v1065
    %1406 = vmatpush1.bf16.msra.mxu0 %v1064
    %1407 = vmatprep.subr.bf16.mxu0 %v1081
    %1408 = vmatpush1.bf16.msra.mxu0 %v1080
    %1409 = vmatprep.subr.bf16.mxu0 %v1097
    %1410 = vmatpush1.bf16.msra.mxu0 %v1096
    %1411 = vmatprep.subr.bf16.mxu0 %v1113
    %1412 = vmatpush1.bf16.msra.mxu0 %v1112
    %1413 = vmatprep.subr.bf16.mxu0 %v1345
    %1414 = vmatpush1.bf16.msra.mxu0 %v1342
    %1415 = vmatprep.subr.bf16.mxu0 0
    %1416 = vmatpush1.bf16.msra.mxu0 0
    %1417 = vmatprep.subr.bf16.mxu0 0
    %1418 = vmatpush1.bf16.msra.mxu0 0
    %1419 = vmatprep.subr.bf16.mxu0 0
    %1420 = vmatpush1.bf16.msra.mxu0 0
    %1421 = vmatprep.mubr.bf16.mxu0 %v1338
    %1422 = vmatmul.mubr.bf16.gmra.mrb[0].mxu0 %v333
    %v1423 = vpop.f32.mrb[0].mxu0
    %v1424 = vadd.f32 %v250, %v1423
    %v1425 = vpop.f32.mrb[0].mxu0
    %v1426 = vadd.f32 %v254, %v1425
    %v1427 = vpop.f32.mrb[0].mxu0
    %v1428 = vadd.f32 %v250, %v1427
    %v1429 = vpop.f32.mrb[0].mxu0
    %v1430 = vadd.f32 %v254, %v1429
    %1431 = vdwg.mxu0
    %1432 = vmatprep.subr.bf16.mxu0 %v939
    %1433 = vmatpush1.bf16.msra.mxu0 %v938
    %1434 = vmatprep.subr.bf16.mxu0 %v955
    %1435 = vmatpush1.bf16.msra.mxu0 %v954
    %1436 = vmatprep.subr.bf16.mxu0 %v971
    %1437 = vmatpush1.bf16.msra.mxu0 %v970
    %1438 = vmatprep.subr.bf16.mxu0 %v987
    %1439 = vmatpush1.bf16.msra.mxu0 %v986
    %1440 = vmatprep.subr.bf16.mxu0 %v1003
    %1441 = vmatpush1.bf16.msra.mxu0 %v1002
    %1442 = vmatprep.subr.bf16.mxu0 %v1019
    %1443 = vmatpush1.bf16.msra.mxu0 %v1018
    %1444 = vmatprep.subr.bf16.mxu0 %v1035
    %1445 = vmatpush1.bf16.msra.mxu0 %v1034
    %1446 = vmatprep.subr.bf16.mxu0 %v1051
    %1447 = vmatpush1.bf16.msra.mxu0 %v1050
    %1448 = vmatprep.subr.bf16.mxu0 %v1067
    %1449 = vmatpush1.bf16.msra.mxu0 %v1066
    %1450 = vmatprep.subr.bf16.mxu0 %v1083
    %1451 = vmatpush1.bf16.msra.mxu0 %v1082
    %1452 = vmatprep.subr.bf16.mxu0 %v1099
    %1453 = vmatpush1.bf16.msra.mxu0 %v1098
    %1454 = vmatprep.subr.bf16.mxu0 %v1115
    %1455 = vmatpush1.bf16.msra.mxu0 %v1114
    %1456 = vmatprep.subr.bf16.mxu0 %v1351
    %1457 = vmatpush1.bf16.msra.mxu0 %v1348
    %1458 = vmatprep.subr.bf16.mxu0 0
    %1459 = vmatpush1.bf16.msra.mxu0 0
    %1460 = vmatprep.subr.bf16.mxu0 0
    %1461 = vmatpush1.bf16.msra.mxu0 0
    %1462 = vmatprep.subr.bf16.mxu0 0
    %1463 = vmatpush1.bf16.msra.mxu0 0
    %1464 = vmatprep.mubr.bf16.mxu0 %v1338
    %1465 = vmatmul.mubr.bf16.gmra.mrb[0].mxu0 %v333
    %v1466 = vpop.f32.mrb[0].mxu0
    %v1467 = vadd.f32 %v258, %v1466
    %v1468 = vpop.f32.mrb[0].mxu0
    %v1469 = vadd.f32 %v262, %v1468
    %v1470 = vpop.f32.mrb[0].mxu0
    %v1471 = vadd.f32 %v258, %v1470
    %v1472 = vpop.f32.mrb[0].mxu0
    %v1473 = vadd.f32 %v262, %v1472
    %1474 = vdwg.mxu0
    %1475 = vmatprep.subr.bf16.mxu0 %v941
    %1476 = vmatpush1.bf16.msra.mxu0 %v940
    %1477 = vmatprep.subr.bf16.mxu0 %v957
    %1478 = vmatpush1.bf16.msra.mxu0 %v956
    %1479 = vmatprep.subr.bf16.mxu0 %v973
    %1480 = vmatpush1.bf16.msra.mxu0 %v972
    %1481 = vmatprep.subr.bf16.mxu0 %v989
    %1482 = vmatpush1.bf16.msra.mxu0 %v988
    %1483 = vmatprep.subr.bf16.mxu0 %v1005
    %1484 = vmatpush1.bf16.msra.mxu0 %v1004
    %1485 = vmatprep.subr.bf16.mxu0 %v1021
    %1486 = vmatpush1.bf16.msra.mxu0 %v1020
    %1487 = vmatprep.subr.bf16.mxu0 %v1037
    %1488 = vmatpush1.bf16.msra.mxu0 %v1036
    %1489 = vmatprep.subr.bf16.mxu0 %v1053
    %1490 = vmatpush1.bf16.msra.mxu0 %v1052
    %1491 = vmatprep.subr.bf16.mxu0 %v1069
    %1492 = vmatpush1.bf16.msra.mxu0 %v1068
    %1493 = vmatprep.subr.bf16.mxu0 %v1085
    %1494 = vmatpush1.bf16.msra.mxu0 %v1084
    %1495 = vmatprep.subr.bf16.mxu0 %v1101
    %1496 = vmatpush1.bf16.msra.mxu0 %v1100
    %1497 = vmatprep.subr.bf16.mxu0 %v1117
    %1498 = vmatpush1.bf16.msra.mxu0 %v1116
    %1499 = vmatprep.subr.bf16.mxu0 %v1357
    %1500 = vmatpush1.bf16.msra.mxu0 %v1354
    %1501 = vmatprep.subr.bf16.mxu0 0
    %1502 = vmatpush1.bf16.msra.mxu0 0
    %1503 = vmatprep.subr.bf16.mxu0 0
    %1504 = vmatpush1.bf16.msra.mxu0 0
    %1505 = vmatprep.subr.bf16.mxu0 0
    %1506 = vmatpush1.bf16.msra.mxu0 0
    %1507 = vmatprep.mubr.bf16.mxu0 %v1338
    %1508 = vmatmul.mubr.bf16.gmra.mrb[0].mxu0 %v333
    %v1509 = vpop.f32.mrb[0].mxu0
    %v1510 = vadd.f32 %v266, %v1509
    %v1511 = vpop.f32.mrb[0].mxu0
    %v1512 = vadd.f32 %v270, %v1511
    %v1513 = vpop.f32.mrb[0].mxu0
    %v1514 = vadd.f32 %v266, %v1513
    %v1515 = vpop.f32.mrb[0].mxu0
    %v1516 = vadd.f32 %v270, %v1515
    %1517 = vdwg.mxu0
    %1518 = vmatprep.subr.bf16.mxu0 %v943
    %1519 = vmatpush1.bf16.msra.mxu0 %v942
    %1520 = vmatprep.subr.bf16.mxu0 %v959
    %1521 = vmatpush1.bf16.msra.mxu0 %v958
    %1522 = vmatprep.subr.bf16.mxu0 %v975
    %1523 = vmatpush1.bf16.msra.mxu0 %v974
    %1524 = vmatprep.subr.bf16.mxu0 %v991
    %1525 = vmatpush1.bf16.msra.mxu0 %v990
    %1526 = vmatprep.subr.bf16.mxu0 %v1007
    %1527 = vmatpush1.bf16.msra.mxu0 %v1006
    %1528 = vmatprep.subr.bf16.mxu0 %v1023
    %1529 = vmatpush1.bf16.msra.mxu0 %v1022
    %1530 = vmatprep.subr.bf16.mxu0 %v1039
    %1531 = vmatpush1.bf16.msra.mxu0 %v1038
    %1532 = vmatprep.subr.bf16.mxu0 %v1055
    %1533 = vmatpush1.bf16.msra.mxu0 %v1054
    %1534 = vmatprep.subr.bf16.mxu0 %v1071
    %1535 = vmatpush1.bf16.msra.mxu0 %v1070
    %1536 = vmatprep.subr.bf16.mxu0 %v1087
    %1537 = vmatpush1.bf16.msra.mxu0 %v1086
    %1538 = vmatprep.subr.bf16.mxu0 %v1103
    %1539 = vmatpush1.bf16.msra.mxu0 %v1102
    %1540 = vmatprep.subr.bf16.mxu0 %v1119
    %1541 = vmatpush1.bf16.msra.mxu0 %v1118
    %1542 = vmatprep.subr.bf16.mxu0 %v1363
    %1543 = vmatpush1.bf16.msra.mxu0 %v1360
    %1544 = vmatprep.subr.bf16.mxu0 0
    %1545 = vmatpush1.bf16.msra.mxu0 0
    %1546 = vmatprep.subr.bf16.mxu0 0
    %1547 = vmatpush1.bf16.msra.mxu0 0
    %1548 = vmatprep.subr.bf16.mxu0 0
    %1549 = vmatpush1.bf16.msra.mxu0 0
    %1550 = vmatprep.mubr.bf16.mxu0 %v1338
    %1551 = vmatmul.mubr.bf16.gmra.mrb[0].mxu0 %v333
    %v1552 = vpop.f32.mrb[0].mxu0
    %v1553 = vadd.f32 %v274, %v1552
    %v1554 = vpop.f32.mrb[0].mxu0
    %v1555 = vadd.f32 %v278, %v1554
    %v1556 = vpop.f32.mrb[0].mxu0
    %v1557 = vadd.f32 %v274, %v1556
    %v1558 = vpop.f32.mrb[0].mxu0
    %v1559 = vadd.f32 %v278, %v1558
    %1560 = vdwg.mxu0
    %1561 = vmatprep.subr.bf16.mxu0 %v945
    %1562 = vmatpush1.bf16.msra.mxu0 %v944
    %1563 = vmatprep.subr.bf16.mxu0 %v961
    %1564 = vmatpush1.bf16.msra.mxu0 %v960
    %1565 = vmatprep.subr.bf16.mxu0 %v977
    %1566 = vmatpush1.bf16.msra.mxu0 %v976
    %1567 = vmatprep.subr.bf16.mxu0 %v993
    %1568 = vmatpush1.bf16.msra.mxu0 %v992
    %1569 = vmatprep.subr.bf16.mxu0 %v1009
    %1570 = vmatpush1.bf16.msra.mxu0 %v1008
    %1571 = vmatprep.subr.bf16.mxu0 %v1025
    %1572 = vmatpush1.bf16.msra.mxu0 %v1024
    %1573 = vmatprep.subr.bf16.mxu0 %v1041
    %1574 = vmatpush1.bf16.msra.mxu0 %v1040
    %1575 = vmatprep.subr.bf16.mxu0 %v1057
    %1576 = vmatpush1.bf16.msra.mxu0 %v1056
    %1577 = vmatprep.subr.bf16.mxu0 %v1073
    %1578 = vmatpush1.bf16.msra.mxu0 %v1072
    %1579 = vmatprep.subr.bf16.mxu0 %v1089
    %1580 = vmatpush1.bf16.msra.mxu0 %v1088
    %1581 = vmatprep.subr.bf16.mxu0 %v1105
    %1582 = vmatpush1.bf16.msra.mxu0 %v1104
    %1583 = vmatprep.subr.bf16.mxu0 %v1121
    %1584 = vmatpush1.bf16.msra.mxu0 %v1120
    %1585 = vmatprep.subr.bf16.mxu0 %v1369
    %1586 = vmatpush1.bf16.msra.mxu0 %v1366
    %1587 = vmatprep.subr.bf16.mxu0 0
    %1588 = vmatpush1.bf16.msra.mxu0 0
    %1589 = vmatprep.subr.bf16.mxu0 0
    %1590 = vmatpush1.bf16.msra.mxu0 0
    %1591 = vmatprep.subr.bf16.mxu0 0
    %1592 = vmatpush1.bf16.msra.mxu0 0
    %1593 = vmatprep.mubr.bf16.mxu0 %v1338
    %1594 = vmatmul.mubr.bf16.gmra.mrb[0].mxu0 %v333
    %v1595 = vpop.f32.mrb[0].mxu0
    %v1596 = vadd.f32 %v282, %v1595
    %v1597 = vpop.f32.mrb[0].mxu0
    %v1598 = vadd.f32 %v286, %v1597
    %v1599 = vpop.f32.mrb[0].mxu0
    %v1600 = vadd.f32 %v282, %v1599
    %v1601 = vpop.f32.mrb[0].mxu0
    %v1602 = vadd.f32 %v286, %v1601
    %1603 = vdwg.mxu0
    %1604 = vmatprep.subr.bf16.mxu0 %v947
    %1605 = vmatpush1.bf16.msra.mxu0 %v946
    %1606 = vmatprep.subr.bf16.mxu0 %v963
    %1607 = vmatpush1.bf16.msra.mxu0 %v962
    %1608 = vmatprep.subr.bf16.mxu0 %v979
    %1609 = vmatpush1.bf16.msra.mxu0 %v978
    %1610 = vmatprep.subr.bf16.mxu0 %v995
    %1611 = vmatpush1.bf16.msra.mxu0 %v994
    %1612 = vmatprep.subr.bf16.mxu0 %v1011
    %1613 = vmatpush1.bf16.msra.mxu0 %v1010
    %1614 = vmatprep.subr.bf16.mxu0 %v1027
    %1615 = vmatpush1.bf16.msra.mxu0 %v1026
    %1616 = vmatprep.subr.bf16.mxu0 %v1043
    %1617 = vmatpush1.bf16.msra.mxu0 %v1042
    %1618 = vmatprep.subr.bf16.mxu0 %v1059
    %1619 = vmatpush1.bf16.msra.mxu0 %v1058
    %1620 = vmatprep.subr.bf16.mxu0 %v1075
    %1621 = vmatpush1.bf16.msra.mxu0 %v1074
    %1622 = vmatprep.subr.bf16.mxu0 %v1091
    %1623 = vmatpush1.bf16.msra.mxu0 %v1090
    %1624 = vmatprep.subr.bf16.mxu0 %v1107
    %1625 = vmatpush1.bf16.msra.mxu0 %v1106
    %1626 = vmatprep.subr.bf16.mxu0 %v1123
    %1627 = vmatpush1.bf16.msra.mxu0 %v1122
    %1628 = vmatprep.subr.bf16.mxu0 %v1375
    %1629 = vmatpush1.bf16.msra.mxu0 %v1372
    %1630 = vmatprep.subr.bf16.mxu0 0
    %1631 = vmatpush1.bf16.msra.mxu0 0
    %1632 = vmatprep.subr.bf16.mxu0 0
    %1633 = vmatpush1.bf16.msra.mxu0 0
    %1634 = vmatprep.subr.bf16.mxu0 0
    %1635 = vmatpush1.bf16.msra.mxu0 0
    %1636 = vmatprep.mubr.bf16.mxu0 %v1338
    %1637 = vmatmul.mubr.bf16.gmra.mrb[0].mxu0 %v333
    %v1638 = vpop.f32.mrb[0].mxu0
    %v1639 = vadd.f32 %v290, %v1638
    %v1640 = vpop.f32.mrb[0].mxu0
    %v1641 = vadd.f32 %v294, %v1640
    %v1642 = vpop.f32.mrb[0].mxu0
    %v1643 = vadd.f32 %v290, %v1642
    %v1644 = vpop.f32.mrb[0].mxu0
    %v1645 = vadd.f32 %v294, %v1644
    %1646 = vdwg.mxu0
    %1647 = vmatprep.subr.bf16.mxu0 %v949
    %1648 = vmatpush1.bf16.msra.mxu0 %v948
    %1649 = vmatprep.subr.bf16.mxu0 %v965
    %1650 = vmatpush1.bf16.msra.mxu0 %v964
    %1651 = vmatprep.subr.bf16.mxu0 %v981
    %1652 = vmatpush1.bf16.msra.mxu0 %v980
    %1653 = vmatprep.subr.bf16.mxu0 %v997
    %1654 = vmatpush1.bf16.msra.mxu0 %v996
    %1655 = vmatprep.subr.bf16.mxu0 %v1013
    %1656 = vmatpush1.bf16.msra.mxu0 %v1012
    %1657 = vmatprep.subr.bf16.mxu0 %v1029
    %1658 = vmatpush1.bf16.msra.mxu0 %v1028
    %1659 = vmatprep.subr.bf16.mxu0 %v1045
    %1660 = vmatpush1.bf16.msra.mxu0 %v1044
    %1661 = vmatprep.subr.bf16.mxu0 %v1061
    %1662 = vmatpush1.bf16.msra.mxu0 %v1060
    %1663 = vmatprep.subr.bf16.mxu0 %v1077
    %1664 = vmatpush1.bf16.msra.mxu0 %v1076
    %1665 = vmatprep.subr.bf16.mxu0 %v1093
    %1666 = vmatpush1.bf16.msra.mxu0 %v1092
    %1667 = vmatprep.subr.bf16.mxu0 %v1109
    %1668 = vmatpush1.bf16.msra.mxu0 %v1108
    %1669 = vmatprep.subr.bf16.mxu0 %v1125
    %1670 = vmatpush1.bf16.msra.mxu0 %v1124
    %1671 = vmatprep.subr.bf16.mxu0 %v1381
    %1672 = vmatpush1.bf16.msra.mxu0 %v1378
    %1673 = vmatprep.subr.bf16.mxu0 0
    %1674 = vmatpush1.bf16.msra.mxu0 0
    %1675 = vmatprep.subr.bf16.mxu0 0
    %1676 = vmatpush1.bf16.msra.mxu0 0
    %1677 = vmatprep.subr.bf16.mxu0 0
    %1678 = vmatpush1.bf16.msra.mxu0 0
    %1679 = vmatprep.mubr.bf16.mxu0 %v1338
    %1680 = vmatmul.mubr.bf16.gmra.mrb[0].mxu0 %v333
    %v1681 = vpop.f32.mrb[0].mxu0
    %v1682 = vadd.f32 %v298, %v1681
    %v1683 = vpop.f32.mrb[0].mxu0
    %v1684 = vadd.f32 %v302, %v1683
    %v1685 = vpop.f32.mrb[0].mxu0
    %v1686 = vadd.f32 %v298, %v1685
    %v1687 = vpop.f32.mrb[0].mxu0
    %v1688 = vadd.f32 %v302, %v1687
    %1689 = vdwg.mxu0
    %1690 = vmatprep.subr.bf16.mxu0 %v951
    %1691 = vmatpush1.bf16.msra.mxu0 %v950
    %1692 = vmatprep.subr.bf16.mxu0 %v967
    %1693 = vmatpush1.bf16.msra.mxu0 %v966
    %1694 = vmatprep.subr.bf16.mxu0 %v983
    %1695 = vmatpush1.bf16.msra.mxu0 %v982
    %1696 = vmatprep.subr.bf16.mxu0 %v999
    %1697 = vmatpush1.bf16.msra.mxu0 %v998
    %1698 = vmatprep.subr.bf16.mxu0 %v1015
    %1699 = vmatpush1.bf16.msra.mxu0 %v1014
    %1700 = vmatprep.subr.bf16.mxu0 %v1031
    %1701 = vmatpush1.bf16.msra.mxu0 %v1030
    %1702 = vmatprep.subr.bf16.mxu0 %v1047
    %1703 = vmatpush1.bf16.msra.mxu0 %v1046
    %1704 = vmatprep.subr.bf16.mxu0 %v1063
    %1705 = vmatpush1.bf16.msra.mxu0 %v1062
    %1706 = vmatprep.subr.bf16.mxu0 %v1079
    %1707 = vmatpush1.bf16.msra.mxu0 %v1078
    %1708 = vmatprep.subr.bf16.mxu0 %v1095
    %1709 = vmatpush1.bf16.msra.mxu0 %v1094
    %1710 = vmatprep.subr.bf16.mxu0 %v1111
    %1711 = vmatpush1.bf16.msra.mxu0 %v1110
    %1712 = vmatprep.subr.bf16.mxu0 %v1127
    %1713 = vmatpush1.bf16.msra.mxu0 %v1126
    %1714 = vmatprep.subr.bf16.mxu0 %v1387
    %1715 = vmatpush1.bf16.msra.mxu0 %v1384
    %1716 = vmatprep.subr.bf16.mxu0 0
    %1717 = vmatpush1.bf16.msra.mxu0 0
    %1718 = vmatprep.subr.bf16.mxu0 0
    %1719 = vmatpush1.bf16.msra.mxu0 0
    %1720 = vmatprep.subr.bf16.mxu0 0
    %1721 = vmatpush1.bf16.msra.mxu0 0
    %1722 = vmatprep.mubr.bf16.mxu0 %v1338
    %1723 = vmatmul.mubr.bf16.gmra.mrb[0].mxu0 %v333
    %v1724 = vpop.f32.mrb[0].mxu0
    %v1725 = vadd.f32 %v306, %v1724
    %v1726 = vpop.f32.mrb[0].mxu0
    %v1727 = vadd.f32 %v310, %v1726
    %v1728 = vpop.f32.mrb[0].mxu0
    %v1729 = vadd.f32 %v306, %v1728
    %v1730 = vpop.f32.mrb[0].mxu0
    %v1731 = vadd.f32 %v310, %v1730
    %1732 = vdwg.mxu0
    %v1733 = vmax.f32 %v1424, 0.0
    %v1734 = vmax.f32 %v1426, 0.0
    %v1735 = vmax.f32 %v1467, 0.0
    %v1736 = vmax.f32 %v1469, 0.0
    %v1737 = vmax.f32 %v1510, 0.0
    %v1738 = vmax.f32 %v1512, 0.0
    %v1739 = vmax.f32 %v1553, 0.0
    %v1740 = vmax.f32 %v1555, 0.0
    %v1741 = vmax.f32 %v1596, 0.0
    %v1742 = vmax.f32 %v1598, 0.0
    %v1743 = vmax.f32 %v1639, 0.0
    %v1744 = vmax.f32 %v1641, 0.0
    %v1745 = vmax.f32 %v1682, 0.0
    %v1746 = vmax.f32 %v1684, 0.0
    %v1747 = vmax.f32 %v1725, 0.0
    %v1748 = vmax.f32 %v1727, 0.0
    %v1749 = vmax.f32 %v1428, 0.0
    %v1750 = vmax.f32 %v1430, 0.0
    %v1751 = vmax.f32 %v1471, 0.0
    %v1752 = vmax.f32 %v1473, 0.0
    %v1753 = vmax.f32 %v1514, 0.0
    %v1754 = vmax.f32 %v1516, 0.0
    %v1755 = vmax.f32 %v1557, 0.0
    %v1756 = vmax.f32 %v1559, 0.0
    %v1757 = vmax.f32 %v1600, 0.0
    %v1758 = vmax.f32 %v1602, 0.0
    %v1759 = vmax.f32 %v1643, 0.0
    %v1760 = vmax.f32 %v1645, 0.0
    %v1761 = vmax.f32 %v1686, 0.0
    %v1762 = vmax.f32 %v1688, 0.0
    %v1763 = vmax.f32 %v1729, 0.0
    %v1764 = vmax.f32 %v1731, 0.0
    %v1765 = vmax.f32 %v1733, %v1737
    %v1766 = vmax.f32 %v1734, %v1738
    %v1767 = vmax.f32 %v1735, %v1739
    %v1768 = vmax.f32 %v1736, %v1740
    %v1769 = vmax.f32 %v1749, %v1753
    %v1770 = vmax.f32 %v1750, %v1754
    %v1771 = vmax.f32 %v1751, %v1755
    %v1772 = vmax.f32 %v1752, %v1756
    %v1773 = vmax.f32 %v1741, %v1745
    %v1774 = vmax.f32 %v1742, %v1746
    %v1775 = vmax.f32 %v1743, %v1747
    %v1776 = vmax.f32 %v1744, %v1748
    %v1777 = vmax.f32 %v1757, %v1761
    %v1778 = vmax.f32 %v1758, %v1762
    %v1779 = vmax.f32 %v1759, %v1763
    %v1780 = vmax.f32 %v1760, %v1764
    %v1781 = vmax.f32 %v1765, %v1773
    %v1782 = vmax.f32 %v1766, %v1774
    %v1783 = vmax.f32 %v1767, %v1775
    %v1784 = vmax.f32 %v1768, %v1776
    %v1785 = vmax.f32 %v1769, %v1777
    %v1786 = vmax.f32 %v1770, %v1778
    %v1787 = vmax.f32 %v1771, %v1779
    %v1788 = vmax.f32 %v1772, %v1780
    %v1789 = vpack.c.bf16 %v1785, %v1781
    %v1790 = vpack.c.bf16 %v1786, %v1782
    %v1791 = vpack.c.bf16 %v1787, %v1783
    %v1792 = vpack.c.bf16 %v1788, %v1784
    %v1793 = vld [vmem:[%s3] sm:$0xff]
    %v1794 = vld [vmem:[%s3 + $0x8] sm:$0xff]
    %v1795 = vld [vmem:[%s3 + $0x10] sm:$0xff]
    %v1796 = vld [vmem:[%s3 + $0x18] sm:$0xff]
    %v1797 = vld [vmem:[%s3 + $0x20] sm:$0xff]
    %v1798 = vld [vmem:[%s3 + $0x28] sm:$0xff]
    %v1799 = vld [vmem:[%s3 + $0x30] sm:$0xff]
    %v1800 = vld [vmem:[%s3 + $0x38] sm:$0xff]
    %v1801 = vld [vmem:[%s3 + $0x40] sm:$0xff]
    %v1802 = vld [vmem:[%s3 + $0x48] sm:$0xff]
    %v1803 = vld [vmem:[%s3 + $0x50] sm:$0xff]
    %v1804 = vld [vmem:[%s3 + $0x58] sm:$0xff]
    %v1805 = vld [vmem:[%s3 + $0x60] sm:$0xff]
    %v1806 = vld [vmem:[%s3 + $0x68] sm:$0xff]
    %v1807 = vld [vmem:[%s3 + $0x70] sm:$0xff]
    %v1808 = vld [vmem:[%s3 + $0x78] sm:$0xff]
    %v1809 = vld [vmem:[%s3 + $0x80] sm:$0xff]
    %v1810 = vld [vmem:[%s3 + $0x88] sm:$0xff]
    %v1811 = vld [vmem:[%s3 + $0x90] sm:$0xff]
    %v1812 = vld [vmem:[%s3 + $0x98] sm:$0xff]
    %v1813 = vld [vmem:[%s3 + $0xa0] sm:$0xff]
    %v1814 = vld [vmem:[%s3 + $0xa8] sm:$0xff]
    %v1815 = vld [vmem:[%s3 + $0xb0] sm:$0xff]
    %v1816 = vld [vmem:[%s3 + $0xb8] sm:$0xff]
    %v1817 = vld [vmem:[%s3 + $0xc0] sm:$0xff]
    %v1818 = vld [vmem:[%s3 + $0xc8] sm:$0xff]
    %v1819 = vld [vmem:[%s3 + $0xd0] sm:$0xff]
    %v1820 = vld [vmem:[%s3 + $0xd8] sm:$0xff]
    %v1821 = vld [vmem:[%s3 + $0xe0] sm:$0xff]
    %v1822 = vld [vmem:[%s3 + $0xe8] sm:$0xff]
    %v1823 = vld [vmem:[%s3 + $0xf0] sm:$0xff]
    %v1824 = vld [vmem:[%s3 + $0xf8] sm:$0xff]
    %v1825 = vld [vmem:[%s3 + $0x100] sm:$0xff]
    %v1826 = vld [vmem:[%s3 + $0x108] sm:$0xff]
    %v1827 = vld [vmem:[%s3 + $0x110] sm:$0xff]
    %v1828 = vld [vmem:[%s3 + $0x118] sm:$0xff]
    %v1829 = vld [vmem:[%s3 + $0x120] sm:$0xff]
    %v1830 = vld [vmem:[%s3 + $0x128] sm:$0xff]
    %v1831 = vld [vmem:[%s3 + $0x130] sm:$0xff]
    %v1832 = vld [vmem:[%s3 + $0x138] sm:$0xff]
    %v1833 = vld [vmem:[%s3 + $0x140] sm:$0xff]
    %v1834 = vld [vmem:[%s3 + $0x148] sm:$0xff]
    %v1835 = vld [vmem:[%s3 + $0x150] sm:$0xff]
    %v1836 = vld [vmem:[%s3 + $0x158] sm:$0xff]
    %v1837 = vld [vmem:[%s3 + $0x160] sm:$0xff]
    %v1838 = vld [vmem:[%s3 + $0x168] sm:$0xff]
    %v1839 = vld [vmem:[%s3 + $0x170] sm:$0xff]
    %v1840 = vld [vmem:[%s3 + $0x178] sm:$0xff]
    %v1841 = vld [vmem:[%s3 + $0x180] sm:$0xff]
    %v1842 = vld [vmem:[%s3 + $0x188] sm:$0xff]
    %v1843 = vld [vmem:[%s3 + $0x190] sm:$0xff]
    %v1844 = vld [vmem:[%s3 + $0x198] sm:$0xff]
    %v1845 = vld [vmem:[%s3 + $0x1a0] sm:$0xff]
    %v1846 = vld [vmem:[%s3 + $0x1a8] sm:$0xff]
    %v1847 = vld [vmem:[%s3 + $0x1b0] sm:$0xff]
    %v1848 = vld [vmem:[%s3 + $0x1b8] sm:$0xff]
    %v1849 = vld [vmem:[%s3 + $0x1c0] sm:$0xff]
    %v1850 = vld [vmem:[%s3 + $0x1c8] sm:$0xff]
    %v1851 = vld [vmem:[%s3 + $0x1d0] sm:$0xff]
    %v1852 = vld [vmem:[%s3 + $0x1d8] sm:$0xff]
    %v1853 = vld [vmem:[%s3 + $0x1e0] sm:$0xff]
    %v1854 = vld [vmem:[%s3 + $0x1e8] sm:$0xff]
    %v1855 = vld [vmem:[%s3 + $0x1f0] sm:$0xff]
    %v1856 = vld [vmem:[%s3 + $0x1f8] sm:$0xff]
    %v1857 = vld [vmem:[%s3 + $0x200] sm:$0xff]
    %v1858 = vld [vmem:[%s3 + $0x208] sm:$0xff]
    %v1859 = vld [vmem:[%s3 + $0x210] sm:$0xff]
    %v1860 = vld [vmem:[%s3 + $0x218] sm:$0xff]
    %v1861 = vld [vmem:[%s3 + $0x220] sm:$0xff]
    %v1862 = vld [vmem:[%s3 + $0x228] sm:$0xff]
    %v1863 = vld [vmem:[%s3 + $0x230] sm:$0xff]
    %v1864 = vld [vmem:[%s3 + $0x238] sm:$0xff]
    %v1865 = vld [vmem:[%s3 + $0x240] sm:$0xff]
    %v1866 = vld [vmem:[%s3 + $0x248] sm:$0xff]
    %v1867 = vld [vmem:[%s3 + $0x250] sm:$0xff]
    %v1868 = vld [vmem:[%s3 + $0x258] sm:$0xff]
    %v1869 = vld [vmem:[%s3 + $0x260] sm:$0xff]
    %v1870 = vld [vmem:[%s3 + $0x268] sm:$0xff]
    %v1871 = vld [vmem:[%s3 + $0x270] sm:$0xff]
    %v1872 = vld [vmem:[%s3 + $0x278] sm:$0xff]
    %v1873 = vld [vmem:[%s3 + $0x280] sm:$0xff]
    %v1874 = vld [vmem:[%s3 + $0x288] sm:$0xff]
    %v1875 = vld [vmem:[%s3 + $0x290] sm:$0xff]
    %v1876 = vld [vmem:[%s3 + $0x298] sm:$0xff]
    %v1877 = vld [vmem:[%s3 + $0x2a0] sm:$0xff]
    %v1878 = vld [vmem:[%s3 + $0x2a8] sm:$0xff]
    %v1879 = vld [vmem:[%s3 + $0x2b0] sm:$0xff]
    %v1880 = vld [vmem:[%s3 + $0x2b8] sm:$0xff]
    %v1881 = vld [vmem:[%s3 + $0x2c0] sm:$0xff]
    %v1882 = vld [vmem:[%s3 + $0x2c8] sm:$0xff]
    %v1883 = vld [vmem:[%s3 + $0x2d0] sm:$0xff]
    %v1884 = vld [vmem:[%s3 + $0x2d8] sm:$0xff]
    %v1885 = vld [vmem:[%s3 + $0x2e0] sm:$0xff]
    %v1886 = vld [vmem:[%s3 + $0x2e8] sm:$0xff]
    %v1887 = vld [vmem:[%s3 + $0x2f0] sm:$0xff]
    %v1888 = vld [vmem:[%s3 + $0x2f8] sm:$0xff]
    %v1889 = vld [vmem:[%s3 + $0x300] sm:$0xff]
    %v1890 = vld [vmem:[%s3 + $0x308] sm:$0xff]
    %v1891 = vld [vmem:[%s3 + $0x310] sm:$0xff]
    %v1892 = vld [vmem:[%s3 + $0x318] sm:$0xff]
    %v1893 = vld [vmem:[%s3 + $0x320] sm:$0xff]
    %v1894 = vld [vmem:[%s3 + $0x328] sm:$0xff]
    %v1895 = vld [vmem:[%s3 + $0x330] sm:$0xff]
    %v1896 = vld [vmem:[%s3 + $0x338] sm:$0xff]
    %v1897 = vld [vmem:[%s3 + $0x340] sm:$0xff]
    %v1898 = vld [vmem:[%s3 + $0x348] sm:$0xff]
    %v1899 = vld [vmem:[%s3 + $0x350] sm:$0xff]
    %v1900 = vld [vmem:[%s3 + $0x358] sm:$0xff]
    %v1901 = vld [vmem:[%s3 + $0x360] sm:$0xff]
    %v1902 = vld [vmem:[%s3 + $0x368] sm:$0xff]
    %v1903 = vld [vmem:[%s3 + $0x370] sm:$0xff]
    %v1904 = vld [vmem:[%s3 + $0x378] sm:$0xff]
    %v1905 = vld [vmem:[%s3 + $0x380] sm:$0xff]
    %v1906 = vld [vmem:[%s3 + $0x388] sm:$0xff]
    %v1907 = vld [vmem:[%s3 + $0x390] sm:$0xff]
    %v1908 = vld [vmem:[%s3 + $0x398] sm:$0xff]
    %v1909 = vld [vmem:[%s3 + $0x3a0] sm:$0xff]
    %v1910 = vld [vmem:[%s3 + $0x3a8] sm:$0xff]
    %v1911 = vld [vmem:[%s3 + $0x3b0] sm:$0xff]
    %v1912 = vld [vmem:[%s3 + $0x3b8] sm:$0xff]
    %v1913 = vld [vmem:[%s3 + $0x3c0] sm:$0xff]
    %v1914 = vld [vmem:[%s3 + $0x3c8] sm:$0xff]
    %v1915 = vld [vmem:[%s3 + $0x3d0] sm:$0xff]
    %v1916 = vld [vmem:[%s3 + $0x3d8] sm:$0xff]
    %v1917 = vld [vmem:[%s3 + $0x3e0] sm:$0xff]
    %v1918 = vld [vmem:[%s3 + $0x3e8] sm:$0xff]
    %v1919 = vld [vmem:[%s3 + $0x3f0] sm:$0xff]
    %v1920 = vld [vmem:[%s3 + $0x3f8] sm:$0xff]
    %v1921 = vld [vmem:[%s6] ss:$8 sm:$0xf]
    %v1923 = vlaneseq
    %v1924 = vshrl.u32 %v1923, 7
    %v1925 = vsub.s32 0, %v1924
    %v1926 = vrot.slane %v1921, %v1925
    %v1927 = vlaneseq
    %v1928 = vshrl.u32 %v1927, 7
    %v1929 = vsub.s32 1, %v1928
    %v1930 = vrot.slane %v1921, %v1929
    %v1931 = vlaneseq
    %v1932 = vshrl.u32 %v1931, 7
    %v1933 = vsub.s32 2, %v1932
    %v1934 = vrot.slane %v1921, %v1933
    %v1935 = vlaneseq
    %v1936 = vshrl.u32 %v1935, 7
    %v1937 = vsub.s32 3, %v1936
    %v1938 = vrot.slane %v1921, %v1937
    %v2071 = vunpack.c.l.b16 %v1793
    %v2072 = vunpack.c.h.b16 %v1793
    %v2073 = vunpack.c.l.b16 %v1794
    %v2074 = vunpack.c.h.b16 %v1794
    %v2075 = vunpack.c.l.b16 %v1795
    %v2076 = vunpack.c.h.b16 %v1795
    %v2077 = vunpack.c.l.b16 %v1796
    %v2078 = vunpack.c.h.b16 %v1796
    %v2079 = vunpack.c.l.b16 %v1797
    %v2080 = vunpack.c.h.b16 %v1797
    %v2081 = vunpack.c.l.b16 %v1798
    %v2082 = vunpack.c.h.b16 %v1798
    %v2083 = vunpack.c.l.b16 %v1799
    %v2084 = vunpack.c.h.b16 %v1799
    %v2085 = vunpack.c.l.b16 %v1800
    %v2086 = vunpack.c.h.b16 %v1800
    %v2087 = vunpack.c.l.b16 %v1801
    %v2088 = vunpack.c.h.b16 %v1801
    %v2089 = vunpack.c.l.b16 %v1802
    %v2090 = vunpack.c.h.b16 %v1802
    %v2091 = vunpack.c.l.b16 %v1803
    %v2092 = vunpack.c.h.b16 %v1803
    %v2093 = vunpack.c.l.b16 %v1804
    %v2094 = vunpack.c.h.b16 %v1804
    %v2095 = vunpack.c.l.b16 %v1805
    %v2096 = vunpack.c.h.b16 %v1805
    %v2097 = vunpack.c.l.b16 %v1806
    %v2098 = vunpack.c.h.b16 %v1806
    %v2099 = vunpack.c.l.b16 %v1807
    %v2100 = vunpack.c.h.b16 %v1807
    %v2101 = vunpack.c.l.b16 %v1808
    %v2102 = vunpack.c.h.b16 %v1808
    %v2103 = vunpack.c.l.b16 %v1809
    %v2104 = vunpack.c.h.b16 %v1809
    %v2105 = vunpack.c.l.b16 %v1810
    %v2106 = vunpack.c.h.b16 %v1810
    %v2107 = vunpack.c.l.b16 %v1811
    %v2108 = vunpack.c.h.b16 %v1811
    %v2109 = vunpack.c.l.b16 %v1812
    %v2110 = vunpack.c.h.b16 %v1812
    %v2111 = vunpack.c.l.b16 %v1813
    %v2112 = vunpack.c.h.b16 %v1813
    %v2113 = vunpack.c.l.b16 %v1814
    %v2114 = vunpack.c.h.b16 %v1814
    %v2115 = vunpack.c.l.b16 %v1815
    %v2116 = vunpack.c.h.b16 %v1815
    %v2117 = vunpack.c.l.b16 %v1816
    %v2118 = vunpack.c.h.b16 %v1816
    %v2119 = vunpack.c.l.b16 %v1817
    %v2120 = vunpack.c.h.b16 %v1817
    %v2121 = vunpack.c.l.b16 %v1818
    %v2122 = vunpack.c.h.b16 %v1818
    %v2123 = vunpack.c.l.b16 %v1819
    %v2124 = vunpack.c.h.b16 %v1819
    %v2125 = vunpack.c.l.b16 %v1820
    %v2126 = vunpack.c.h.b16 %v1820
    %v2127 = vunpack.c.l.b16 %v1821
    %v2128 = vunpack.c.h.b16 %v1821
    %v2129 = vunpack.c.l.b16 %v1822
    %v2130 = vunpack.c.h.b16 %v1822
    %v2131 = vunpack.c.l.b16 %v1823
    %v2132 = vunpack.c.h.b16 %v1823
    %v2133 = vunpack.c.l.b16 %v1824
    %v2134 = vunpack.c.h.b16 %v1824
    %v2135 = vunpack.c.l.b16 %v1825
    %v2136 = vunpack.c.h.b16 %v1825
    %v2137 = vunpack.c.l.b16 %v1826
    %v2138 = vunpack.c.h.b16 %v1826
    %v2139 = vunpack.c.l.b16 %v1827
    %v2140 = vunpack.c.h.b16 %v1827
    %v2141 = vunpack.c.l.b16 %v1828
    %v2142 = vunpack.c.h.b16 %v1828
    %v2143 = vunpack.c.l.b16 %v1829
    %v2144 = vunpack.c.h.b16 %v1829
    %v2145 = vunpack.c.l.b16 %v1830
    %v2146 = vunpack.c.h.b16 %v1830
    %v2147 = vunpack.c.l.b16 %v1831
    %v2148 = vunpack.c.h.b16 %v1831
    %v2149 = vunpack.c.l.b16 %v1832
    %v2150 = vunpack.c.h.b16 %v1832
    %v2151 = vunpack.c.l.b16 %v1833
    %v2152 = vunpack.c.h.b16 %v1833
    %v2153 = vunpack.c.l.b16 %v1834
    %v2154 = vunpack.c.h.b16 %v1834
    %v2155 = vunpack.c.l.b16 %v1835
    %v2156 = vunpack.c.h.b16 %v1835
    %v2157 = vunpack.c.l.b16 %v1836
    %v2158 = vunpack.c.h.b16 %v1836
    %v2159 = vunpack.c.l.b16 %v1837
    %v2160 = vunpack.c.h.b16 %v1837
    %v2161 = vunpack.c.l.b16 %v1838
    %v2162 = vunpack.c.h.b16 %v1838
    %v2163 = vunpack.c.l.b16 %v1839
    %v2164 = vunpack.c.h.b16 %v1839
    %v2165 = vunpack.c.l.b16 %v1840
    %v2166 = vunpack.c.h.b16 %v1840
    %v2167 = vunpack.c.l.b16 %v1841
    %v2168 = vunpack.c.h.b16 %v1841
    %v2169 = vunpack.c.l.b16 %v1842
    %v2170 = vunpack.c.h.b16 %v1842
    %v2171 = vunpack.c.l.b16 %v1843
    %v2172 = vunpack.c.h.b16 %v1843
    %v2173 = vunpack.c.l.b16 %v1844
    %v2174 = vunpack.c.h.b16 %v1844
    %v2175 = vunpack.c.l.b16 %v1845
    %v2176 = vunpack.c.h.b16 %v1845
    %v2177 = vunpack.c.l.b16 %v1846
    %v2178 = vunpack.c.h.b16 %v1846
    %v2179 = vunpack.c.l.b16 %v1847
    %v2180 = vunpack.c.h.b16 %v1847
    %v2181 = vunpack.c.l.b16 %v1848
    %v2182 = vunpack.c.h.b16 %v1848
    %v2183 = vunpack.c.l.b16 %v1849
    %v2184 = vunpack.c.h.b16 %v1849
    %v2185 = vunpack.c.l.b16 %v1850
    %v2186 = vunpack.c.h.b16 %v1850
    %v2187 = vunpack.c.l.b16 %v1851
    %v2188 = vunpack.c.h.b16 %v1851
    %v2189 = vunpack.c.l.b16 %v1852
    %v2190 = vunpack.c.h.b16 %v1852
    %v2191 = vunpack.c.l.b16 %v1853
    %v2192 = vunpack.c.h.b16 %v1853
    %v2193 = vunpack.c.l.b16 %v1854
    %v2194 = vunpack.c.h.b16 %v1854
    %v2195 = vunpack.c.l.b16 %v1855
    %v2196 = vunpack.c.h.b16 %v1855
    %v2197 = vunpack.c.l.b16 %v1856
    %v2198 = vunpack.c.h.b16 %v1856
    %v2199 = vunpack.c.l.b16 %v1857
    %v2200 = vunpack.c.h.b16 %v1857
    %v2201 = vunpack.c.l.b16 %v1858
    %v2202 = vunpack.c.h.b16 %v1858
    %v2203 = vunpack.c.l.b16 %v1859
    %v2204 = vunpack.c.h.b16 %v1859
    %v2205 = vunpack.c.l.b16 %v1860
    %v2206 = vunpack.c.h.b16 %v1860
    %v2207 = vunpack.c.l.b16 %v1861
    %v2208 = vunpack.c.h.b16 %v1861
    %v2209 = vunpack.c.l.b16 %v1862
    %v2210 = vunpack.c.h.b16 %v1862
    %v2211 = vunpack.c.l.b16 %v1863
    %v2212 = vunpack.c.h.b16 %v1863
    %v2213 = vunpack.c.l.b16 %v1864
    %v2214 = vunpack.c.h.b16 %v1864
    %v2215 = vunpack.c.l.b16 %v1865
    %v2216 = vunpack.c.h.b16 %v1865
    %v2217 = vunpack.c.l.b16 %v1866
    %v2218 = vunpack.c.h.b16 %v1866
    %v2219 = vunpack.c.l.b16 %v1867
    %v2220 = vunpack.c.h.b16 %v1867
    %v2221 = vunpack.c.l.b16 %v1868
    %v2222 = vunpack.c.h.b16 %v1868
    %v2223 = vunpack.c.l.b16 %v1869
    %v2224 = vunpack.c.h.b16 %v1869
    %v2225 = vunpack.c.l.b16 %v1870
    %v2226 = vunpack.c.h.b16 %v1870
    %v2227 = vunpack.c.l.b16 %v1871
    %v2228 = vunpack.c.h.b16 %v1871
    %v2229 = vunpack.c.l.b16 %v1872
    %v2230 = vunpack.c.h.b16 %v1872
    %v2231 = vunpack.c.l.b16 %v1873
    %v2232 = vunpack.c.h.b16 %v1873
    %v2233 = vunpack.c.l.b16 %v1874
    %v2234 = vunpack.c.h.b16 %v1874
    %v2235 = vunpack.c.l.b16 %v1875
    %v2236 = vunpack.c.h.b16 %v1875
    %v2237 = vunpack.c.l.b16 %v1876
    %v2238 = vunpack.c.h.b16 %v1876
    %v2239 = vunpack.c.l.b16 %v1877
    %v2240 = vunpack.c.h.b16 %v1877
    %v2241 = vunpack.c.l.b16 %v1878
    %v2242 = vunpack.c.h.b16 %v1878
    %v2243 = vunpack.c.l.b16 %v1879
    %v2244 = vunpack.c.h.b16 %v1879
    %v2245 = vunpack.c.l.b16 %v1880
    %v2246 = vunpack.c.h.b16 %v1880
    %v2247 = vunpack.c.l.b16 %v1881
    %v2248 = vunpack.c.h.b16 %v1881
    %v2249 = vunpack.c.l.b16 %v1882
    %v2250 = vunpack.c.h.b16 %v1882
    %v2251 = vunpack.c.l.b16 %v1883
    %v2252 = vunpack.c.h.b16 %v1883
    %v2253 = vunpack.c.l.b16 %v1884
    %v2254 = vunpack.c.h.b16 %v1884
    %v2255 = vunpack.c.l.b16 %v1885
    %v2256 = vunpack.c.h.b16 %v1885
    %v2257 = vunpack.c.l.b16 %v1886
    %v2258 = vunpack.c.h.b16 %v1886
    %v2259 = vunpack.c.l.b16 %v1887
    %v2260 = vunpack.c.h.b16 %v1887
    %v2261 = vunpack.c.l.b16 %v1888
    %v2262 = vunpack.c.h.b16 %v1888
    %v2263 = vunpack.c.l.b16 %v1889
    %v2264 = vunpack.c.h.b16 %v1889
    %v2265 = vunpack.c.l.b16 %v1890
    %v2266 = vunpack.c.h.b16 %v1890
    %v2267 = vunpack.c.l.b16 %v1891
    %v2268 = vunpack.c.h.b16 %v1891
    %v2269 = vunpack.c.l.b16 %v1892
    %v2270 = vunpack.c.h.b16 %v1892
    %v2271 = vunpack.c.l.b16 %v1893
    %v2272 = vunpack.c.h.b16 %v1893
    %v2273 = vunpack.c.l.b16 %v1894
    %v2274 = vunpack.c.h.b16 %v1894
    %v2275 = vunpack.c.l.b16 %v1895
    %v2276 = vunpack.c.h.b16 %v1895
    %v2277 = vunpack.c.l.b16 %v1896
    %v2278 = vunpack.c.h.b16 %v1896
    %v2279 = vunpack.c.l.b16 %v1897
    %v2280 = vunpack.c.h.b16 %v1897
    %v2281 = vunpack.c.l.b16 %v1898
    %v2282 = vunpack.c.h.b16 %v1898
    %v2283 = vunpack.c.l.b16 %v1899
    %v2284 = vunpack.c.h.b16 %v1899
    %v2285 = vunpack.c.l.b16 %v1900
    %v2286 = vunpack.c.h.b16 %v1900
    %v2287 = vunpack.c.l.b16 %v1901
    %v2288 = vunpack.c.h.b16 %v1901
    %v2289 = vunpack.c.l.b16 %v1902
    %v2290 = vunpack.c.h.b16 %v1902
    %v2291 = vunpack.c.l.b16 %v1903
    %v2292 = vunpack.c.h.b16 %v1903
    %v2293 = vunpack.c.l.b16 %v1904
    %v2294 = vunpack.c.h.b16 %v1904
    %v2295 = vunpack.c.l.b16 %v1905
    %v2296 = vunpack.c.h.b16 %v1905
    %v2297 = vunpack.c.l.b16 %v1906
    %v2298 = vunpack.c.h.b16 %v1906
    %v2299 = vunpack.c.l.b16 %v1907
    %v2300 = vunpack.c.h.b16 %v1907
    %v2301 = vunpack.c.l.b16 %v1908
    %v2302 = vunpack.c.h.b16 %v1908
    %v2303 = vunpack.c.l.b16 %v1909
    %v2304 = vunpack.c.h.b16 %v1909
    %v2305 = vunpack.c.l.b16 %v1910
    %v2306 = vunpack.c.h.b16 %v1910
    %v2307 = vunpack.c.l.b16 %v1911
    %v2308 = vunpack.c.h.b16 %v1911
    %v2309 = vunpack.c.l.b16 %v1912
    %v2310 = vunpack.c.h.b16 %v1912
    %v2311 = vunpack.c.l.b16 %v1913
    %v2312 = vunpack.c.h.b16 %v1913
    %v2313 = vunpack.c.l.b16 %v1914
    %v2314 = vunpack.c.h.b16 %v1914
    %v2315 = vunpack.c.l.b16 %v1915
    %v2316 = vunpack.c.h.b16 %v1915
    %v2317 = vunpack.c.l.b16 %v1916
    %v2318 = vunpack.c.h.b16 %v1916
    %v2319 = vunpack.c.l.b16 %v1917
    %v2320 = vunpack.c.h.b16 %v1917
    %v2321 = vunpack.c.l.b16 %v1918
    %v2322 = vunpack.c.h.b16 %v1918
    %v2323 = vunpack.c.l.b16 %v1919
    %v2324 = vunpack.c.h.b16 %v1919
    %v2325 = vunpack.c.l.b16 %v1920
    %v2326 = vunpack.c.h.b16 %v1920
    %v2327 = vpack.c.b16 %v2075, %v2071
    %v2328 = vpack.c.b16 %v2076, %v2072
    %v2329 = vpack.c.b16 %v2077, %v2073
    %v2330 = vpack.c.b16 %v2078, %v2074
    %v2331 = vpack.c.b16 %v2083, %v2079
    %v2332 = vpack.c.b16 %v2084, %v2080
    %v2333 = vpack.c.b16 %v2085, %v2081
    %v2334 = vpack.c.b16 %v2086, %v2082
    %v2335 = vpack.c.b16 %v2091, %v2087
    %v2336 = vpack.c.b16 %v2092, %v2088
    %v2337 = vpack.c.b16 %v2093, %v2089
    %v2338 = vpack.c.b16 %v2094, %v2090
    %v2339 = vpack.c.b16 %v2099, %v2095
    %v2340 = vpack.c.b16 %v2100, %v2096
    %v2341 = vpack.c.b16 %v2101, %v2097
    %v2342 = vpack.c.b16 %v2102, %v2098
    %v2343 = vpack.c.b16 %v2107, %v2103
    %v2344 = vpack.c.b16 %v2108, %v2104
    %v2345 = vpack.c.b16 %v2109, %v2105
    %v2346 = vpack.c.b16 %v2110, %v2106
    %v2347 = vpack.c.b16 %v2115, %v2111
    %v2348 = vpack.c.b16 %v2116, %v2112
    %v2349 = vpack.c.b16 %v2117, %v2113
    %v2350 = vpack.c.b16 %v2118, %v2114
    %v2351 = vpack.c.b16 %v2123, %v2119
    %v2352 = vpack.c.b16 %v2124, %v2120
    %v2353 = vpack.c.b16 %v2125, %v2121
    %v2354 = vpack.c.b16 %v2126, %v2122
    %v2355 = vpack.c.b16 %v2131, %v2127
    %v2356 = vpack.c.b16 %v2132, %v2128
    %v2357 = vpack.c.b16 %v2133, %v2129
    %v2358 = vpack.c.b16 %v2134, %v2130
    %v2359 = vpack.c.b16 %v2139, %v2135
    %v2360 = vpack.c.b16 %v2140, %v2136
    %v2361 = vpack.c.b16 %v2141, %v2137
    %v2362 = vpack.c.b16 %v2142, %v2138
    %v2363 = vpack.c.b16 %v2147, %v2143
    %v2364 = vpack.c.b16 %v2148, %v2144
    %v2365 = vpack.c.b16 %v2149, %v2145
    %v2366 = vpack.c.b16 %v2150, %v2146
    %v2367 = vpack.c.b16 %v2155, %v2151
    %v2368 = vpack.c.b16 %v2156, %v2152
    %v2369 = vpack.c.b16 %v2157, %v2153
    %v2370 = vpack.c.b16 %v2158, %v2154
    %v2371 = vpack.c.b16 %v2163, %v2159
    %v2372 = vpack.c.b16 %v2164, %v2160
    %v2373 = vpack.c.b16 %v2165, %v2161
    %v2374 = vpack.c.b16 %v2166, %v2162
    %v2375 = vpack.c.b16 %v2171, %v2167
    %v2376 = vpack.c.b16 %v2172, %v2168
    %v2377 = vpack.c.b16 %v2173, %v2169
    %v2378 = vpack.c.b16 %v2174, %v2170
    %v2379 = vpack.c.b16 %v2179, %v2175
    %v2380 = vpack.c.b16 %v2180, %v2176
    %v2381 = vpack.c.b16 %v2181, %v2177
    %v2382 = vpack.c.b16 %v2182, %v2178
    %v2383 = vpack.c.b16 %v2187, %v2183
    %v2384 = vpack.c.b16 %v2188, %v2184
    %v2385 = vpack.c.b16 %v2189, %v2185
    %v2386 = vpack.c.b16 %v2190, %v2186
    %v2387 = vpack.c.b16 %v2195, %v2191
    %v2388 = vpack.c.b16 %v2196, %v2192
    %v2389 = vpack.c.b16 %v2197, %v2193
    %v2390 = vpack.c.b16 %v2198, %v2194
    %v2391 = vpack.c.b16 %v2203, %v2199
    %v2392 = vpack.c.b16 %v2204, %v2200
    %v2393 = vpack.c.b16 %v2205, %v2201
    %v2394 = vpack.c.b16 %v2206, %v2202
    %v2395 = vpack.c.b16 %v2211, %v2207
    %v2396 = vpack.c.b16 %v2212, %v2208
    %v2397 = vpack.c.b16 %v2213, %v2209
    %v2398 = vpack.c.b16 %v2214, %v2210
    %v2399 = vpack.c.b16 %v2219, %v2215
    %v2400 = vpack.c.b16 %v2220, %v2216
    %v2401 = vpack.c.b16 %v2221, %v2217
    %v2402 = vpack.c.b16 %v2222, %v2218
    %v2403 = vpack.c.b16 %v2227, %v2223
    %v2404 = vpack.c.b16 %v2228, %v2224
    %v2405 = vpack.c.b16 %v2229, %v2225
    %v2406 = vpack.c.b16 %v2230, %v2226
    %v2407 = vpack.c.b16 %v2235, %v2231
    %v2408 = vpack.c.b16 %v2236, %v2232
    %v2409 = vpack.c.b16 %v2237, %v2233
    %v2410 = vpack.c.b16 %v2238, %v2234
    %v2411 = vpack.c.b16 %v2243, %v2239
    %v2412 = vpack.c.b16 %v2244, %v2240
    %v2413 = vpack.c.b16 %v2245, %v2241
    %v2414 = vpack.c.b16 %v2246, %v2242
    %v2415 = vpack.c.b16 %v2251, %v2247
    %v2416 = vpack.c.b16 %v2252, %v2248
    %v2417 = vpack.c.b16 %v2253, %v2249
    %v2418 = vpack.c.b16 %v2254, %v2250
    %v2419 = vpack.c.b16 %v2259, %v2255
    %v2420 = vpack.c.b16 %v2260, %v2256
    %v2421 = vpack.c.b16 %v2261, %v2257
    %v2422 = vpack.c.b16 %v2262, %v2258
    %v2423 = vpack.c.b16 %v2267, %v2263
    %v2424 = vpack.c.b16 %v2268, %v2264
    %v2425 = vpack.c.b16 %v2269, %v2265
    %v2426 = vpack.c.b16 %v2270, %v2266
    %v2427 = vpack.c.b16 %v2275, %v2271
    %v2428 = vpack.c.b16 %v2276, %v2272
    %v2429 = vpack.c.b16 %v2277, %v2273
    %v2430 = vpack.c.b16 %v2278, %v2274
    %v2431 = vpack.c.b16 %v2283, %v2279
    %v2432 = vpack.c.b16 %v2284, %v2280
    %v2433 = vpack.c.b16 %v2285, %v2281
    %v2434 = vpack.c.b16 %v2286, %v2282
    %v2435 = vpack.c.b16 %v2291, %v2287
    %v2436 = vpack.c.b16 %v2292, %v2288
    %v2437 = vpack.c.b16 %v2293, %v2289
    %v2438 = vpack.c.b16 %v2294, %v2290
    %v2439 = vpack.c.b16 %v2299, %v2295
    %v2440 = vpack.c.b16 %v2300, %v2296
    %v2441 = vpack.c.b16 %v2301, %v2297
    %v2442 = vpack.c.b16 %v2302, %v2298
    %v2443 = vpack.c.b16 %v2307, %v2303
    %v2444 = vpack.c.b16 %v2308, %v2304
    %v2445 = vpack.c.b16 %v2309, %v2305
    %v2446 = vpack.c.b16 %v2310, %v2306
    %v2447 = vpack.c.b16 %v2315, %v2311
    %v2448 = vpack.c.b16 %v2316, %v2312
    %v2449 = vpack.c.b16 %v2317, %v2313
    %v2450 = vpack.c.b16 %v2318, %v2314
    %v2451 = vpack.c.b16 %v2323, %v2319
    %v2452 = vpack.c.b16 %v2324, %v2320
    %v2453 = vpack.c.b16 %v2325, %v2321
    %v2454 = vpack.c.b16 %v2326, %v2322
    %2583 = vmatprep.subr.bf16.mxu0 %v2328
    %2584 = vmatpush1.bf16.msra.mxu0 %v2327
    %2585 = vmatprep.subr.bf16.mxu0 %v2332
    %2586 = vmatpush1.bf16.msra.mxu0 %v2331
    %2587 = vmatprep.subr.bf16.mxu0 %v2336
    %2588 = vmatpush1.bf16.msra.mxu0 %v2335
    %2589 = vmatprep.subr.bf16.mxu0 %v2340
    %2590 = vmatpush1.bf16.msra.mxu0 %v2339
    %2591 = vmatprep.subr.bf16.mxu0 %v2344
    %2592 = vmatpush1.bf16.msra.mxu0 %v2343
    %2593 = vmatprep.subr.bf16.mxu0 %v2348
    %2594 = vmatpush1.bf16.msra.mxu0 %v2347
    %2595 = vmatprep.subr.bf16.mxu0 %v2352
    %2596 = vmatpush1.bf16.msra.mxu0 %v2351
    %2597 = vmatprep.subr.bf16.mxu0 %v2356
    %2598 = vmatpush1.bf16.msra.mxu0 %v2355
    %2599 = vmatprep.subr.bf16.mxu0 %v2360
    %2600 = vmatpush1.bf16.msra.mxu0 %v2359
    %2601 = vmatprep.subr.bf16.mxu0 %v2364
    %2602 = vmatpush1.bf16.msra.mxu0 %v2363
    %2603 = vmatprep.subr.bf16.mxu0 %v2368
    %2604 = vmatpush1.bf16.msra.mxu0 %v2367
    %2605 = vmatprep.subr.bf16.mxu0 %v2372
    %2606 = vmatpush1.bf16.msra.mxu0 %v2371
    %2607 = vmatprep.subr.bf16.mxu0 %v2376
    %2608 = vmatpush1.bf16.msra.mxu0 %v2375
    %2609 = vmatprep.subr.bf16.mxu0 %v2380
    %2610 = vmatpush1.bf16.msra.mxu0 %v2379
    %2611 = vmatprep.subr.bf16.mxu0 %v2384
    %2612 = vmatpush1.bf16.msra.mxu0 %v2383
    %2613 = vmatprep.subr.bf16.mxu0 %v2388
    %2614 = vmatpush1.bf16.msra.mxu0 %v2387
    %2615 = vmatprep.mubr.bf16.mxu0 %v1790
    %2616 = vmatmul.mubr.bf16.gmra.mrb[0].mxu0 %v1789
    %v2617 = vpop.f32.mrb[0].mxu0
    %v2618 = vadd.f32 %v1926, %v2617
    %v2619 = vpop.f32.mrb[0].mxu0
    %v2620 = vadd.f32 %v1930, %v2619
    %v2621 = vpop.f32.mrb[0].mxu0
    %v2622 = vadd.f32 %v1926, %v2621
    %v2623 = vpop.f32.mrb[0].mxu0
    %v2624 = vadd.f32 %v1930, %v2623
    %2625 = vdwg.mxu0
    %2626 = vmatprep.subr.bf16.mxu0 %v2392
    %2627 = vmatpush1.bf16.msra.mxu0 %v2391
    %2628 = vmatprep.subr.bf16.mxu0 %v2396
    %2629 = vmatpush1.bf16.msra.mxu0 %v2395
    %2630 = vmatprep.subr.bf16.mxu0 %v2400
    %2631 = vmatpush1.bf16.msra.mxu0 %v2399
    %2632 = vmatprep.subr.bf16.mxu0 %v2404
    %2633 = vmatpush1.bf16.msra.mxu0 %v2403
    %2634 = vmatprep.subr.bf16.mxu0 %v2408
    %2635 = vmatpush1.bf16.msra.mxu0 %v2407
    %2636 = vmatprep.subr.bf16.mxu0 %v2412
    %2637 = vmatpush1.bf16.msra.mxu0 %v2411
    %2638 = vmatprep.subr.bf16.mxu0 %v2416
    %2639 = vmatpush1.bf16.msra.mxu0 %v2415
    %2640 = vmatprep.subr.bf16.mxu0 %v2420
    %2641 = vmatpush1.bf16.msra.mxu0 %v2419
    %2642 = vmatprep.subr.bf16.mxu0 %v2424
    %2643 = vmatpush1.bf16.msra.mxu0 %v2423
    %2644 = vmatprep.subr.bf16.mxu0 %v2428
    %2645 = vmatpush1.bf16.msra.mxu0 %v2427
    %2646 = vmatprep.subr.bf16.mxu0 %v2432
    %2647 = vmatpush1.bf16.msra.mxu0 %v2431
    %2648 = vmatprep.subr.bf16.mxu0 %v2436
    %2649 = vmatpush1.bf16.msra.mxu0 %v2435
    %2650 = vmatprep.subr.bf16.mxu0 %v2440
    %2651 = vmatpush1.bf16.msra.mxu0 %v2439
    %2652 = vmatprep.subr.bf16.mxu0 %v2444
    %2653 = vmatpush1.bf16.msra.mxu0 %v2443
    %2654 = vmatprep.subr.bf16.mxu0 %v2448
    %2655 = vmatpush1.bf16.msra.mxu0 %v2447
    %2656 = vmatprep.subr.bf16.mxu0 %v2452
    %2657 = vmatpush1.bf16.msra.mxu0 %v2451
    %2658 = vmatprep.mubr.bf16.mxu0 %v1792
    %2659 = vmatmul.mubr.bf16.gmra.mrb[0].mxu0 %v1791
    %v2660 = vpop.f32.mrb[0].mxu0
    %v2661 = vadd.f32 %v2618, %v2660
    %v2662 = vpop.f32.mrb[0].mxu0
    %v2663 = vadd.f32 %v2620, %v2662
    %v2664 = vpop.f32.mrb[0].mxu0
    %v2665 = vadd.f32 %v2622, %v2664
    %v2666 = vpop.f32.mrb[0].mxu0
    %v2667 = vadd.f32 %v2624, %v2666
    %2668 = vdwg.mxu0
    %2669 = vmatprep.subr.bf16.mxu0 %v2330
    %2670 = vmatpush1.bf16.msra.mxu0 %v2329
    %2671 = vmatprep.subr.bf16.mxu0 %v2334
    %2672 = vmatpush1.bf16.msra.mxu0 %v2333
    %2673 = vmatprep.subr.bf16.mxu0 %v2338
    %2674 = vmatpush1.bf16.msra.mxu0 %v2337
    %2675 = vmatprep.subr.bf16.mxu0 %v2342
    %2676 = vmatpush1.bf16.msra.mxu0 %v2341
    %2677 = vmatprep.subr.bf16.mxu0 %v2346
    %2678 = vmatpush1.bf16.msra.mxu0 %v2345
    %2679 = vmatprep.subr.bf16.mxu0 %v2350
    %2680 = vmatpush1.bf16.msra.mxu0 %v2349
    %2681 = vmatprep.subr.bf16.mxu0 %v2354
    %2682 = vmatpush1.bf16.msra.mxu0 %v2353
    %2683 = vmatprep.subr.bf16.mxu0 %v2358
    %2684 = vmatpush1.bf16.msra.mxu0 %v2357
    %2685 = vmatprep.subr.bf16.mxu0 %v2362
    %2686 = vmatpush1.bf16.msra.mxu0 %v2361
    %2687 = vmatprep.subr.bf16.mxu0 %v2366
    %2688 = vmatpush1.bf16.msra.mxu0 %v2365
    %2689 = vmatprep.subr.bf16.mxu0 %v2370
    %2690 = vmatpush1.bf16.msra.mxu0 %v2369
    %2691 = vmatprep.subr.bf16.mxu0 %v2374
    %2692 = vmatpush1.bf16.msra.mxu0 %v2373
    %2693 = vmatprep.subr.bf16.mxu0 %v2378
    %2694 = vmatpush1.bf16.msra.mxu0 %v2377
    %2695 = vmatprep.subr.bf16.mxu0 %v2382
    %2696 = vmatpush1.bf16.msra.mxu0 %v2381
    %2697 = vmatprep.subr.bf16.mxu0 %v2386
    %2698 = vmatpush1.bf16.msra.mxu0 %v2385
    %2699 = vmatprep.subr.bf16.mxu0 %v2390
    %2700 = vmatpush1.bf16.msra.mxu0 %v2389
    %2701 = vmatprep.mubr.bf16.mxu0 %v1790
    %2702 = vmatmul.mubr.bf16.gmra.mrb[0].mxu0 %v1789
    %v2703 = vpop.f32.mrb[0].mxu0
    %v2704 = vadd.f32 %v1934, %v2703
    %v2705 = vpop.f32.mrb[0].mxu0
    %v2706 = vadd.f32 %v1938, %v2705
    %v2707 = vpop.f32.mrb[0].mxu0
    %v2708 = vadd.f32 %v1934, %v2707
    %v2709 = vpop.f32.mrb[0].mxu0
    %v2710 = vadd.f32 %v1938, %v2709
    %2711 = vdwg.mxu0
    %2712 = vmatprep.subr.bf16.mxu0 %v2394
    %2713 = vmatpush1.bf16.msra.mxu0 %v2393
    %2714 = vmatprep.subr.bf16.mxu0 %v2398
    %2715 = vmatpush1.bf16.msra.mxu0 %v2397
    %2716 = vmatprep.subr.bf16.mxu0 %v2402
    %2717 = vmatpush1.bf16.msra.mxu0 %v2401
    %2718 = vmatprep.subr.bf16.mxu0 %v2406
    %2719 = vmatpush1.bf16.msra.mxu0 %v2405
    %2720 = vmatprep.subr.bf16.mxu0 %v2410
    %2721 = vmatpush1.bf16.msra.mxu0 %v2409
    %2722 = vmatprep.subr.bf16.mxu0 %v2414
    %2723 = vmatpush1.bf16.msra.mxu0 %v2413
    %2724 = vmatprep.subr.bf16.mxu0 %v2418
    %2725 = vmatpush1.bf16.msra.mxu0 %v2417
    %2726 = vmatprep.subr.bf16.mxu0 %v2422
    %2727 = vmatpush1.bf16.msra.mxu0 %v2421
    %2728 = vmatprep.subr.bf16.mxu0 %v2426
    %2729 = vmatpush1.bf16.msra.mxu0 %v2425
    %2730 = vmatprep.subr.bf16.mxu0 %v2430
    %2731 = vmatpush1.bf16.msra.mxu0 %v2429
    %2732 = vmatprep.subr.bf16.mxu0 %v2434
    %2733 = vmatpush1.bf16.msra.mxu0 %v2433
    %2734 = vmatprep.subr.bf16.mxu0 %v2438
    %2735 = vmatpush1.bf16.msra.mxu0 %v2437
    %2736 = vmatprep.subr.bf16.mxu0 %v2442
    %2737 = vmatpush1.bf16.msra.mxu0 %v2441
    %2738 = vmatprep.subr.bf16.mxu0 %v2446
    %2739 = vmatpush1.bf16.msra.mxu0 %v2445
    %2740 = vmatprep.subr.bf16.mxu0 %v2450
    %2741 = vmatpush1.bf16.msra.mxu0 %v2449
    %2742 = vmatprep.subr.bf16.mxu0 %v2454
    %2743 = vmatpush1.bf16.msra.mxu0 %v2453
    %2744 = vmatprep.mubr.bf16.mxu0 %v1792
    %2745 = vmatmul.mubr.bf16.gmra.mrb[0].mxu0 %v1791
    %v2746 = vpop.f32.mrb[0].mxu0
    %v2747 = vadd.f32 %v2704, %v2746
    %v2748 = vpop.f32.mrb[0].mxu0
    %v2749 = vadd.f32 %v2706, %v2748
    %v2750 = vpop.f32.mrb[0].mxu0
    %v2751 = vadd.f32 %v2708, %v2750
    %v2752 = vpop.f32.mrb[0].mxu0
    %v2753 = vadd.f32 %v2710, %v2752
    %2754 = vdwg.mxu0
    %v2755 = vmax.f32 %v2661, 0.0
    %v2756 = vmax.f32 %v2663, 0.0
    %v2757 = vmax.f32 %v2747, 0.0
    %v2758 = vmax.f32 %v2749, 0.0
    %v2759 = vmax.f32 %v2665, 0.0
    %v2760 = vmax.f32 %v2667, 0.0
    %v2761 = vmax.f32 %v2751, 0.0
    %v2762 = vmax.f32 %v2753, 0.0
    %v2763 = vmax.f32 %v2755, %v2756
    %v2764 = vmax.f32 %v2759, %v2760
    %v2765 = vmax.f32 %v2757, %v2758
    %v2766 = vmax.f32 %v2761, %v2762
    %v2767 = vmax.f32 %v2763, %v2765
    %v2768 = vmax.f32 %v2764, %v2766
    %v2769 = vld [vmem:[%s6 + $0x1] ss:$0 sm:$0xff]
    %v2770 = vpack.c.bf16 %v2767, %v2767
    %v2771 = vld [vmem:[%s4] sm:$0xf]
    %v2772 = vld [vmem:[%s4 + $0x4] sm:$0xf]
    %v2773 = vld [vmem:[%s4 + $0x8] sm:$0xf]
    %v2774 = vld [vmem:[%s4 + $0xc] sm:$0xf]
    %v2775 = vld [vmem:[%s4 + $0x10] sm:$0xf]
    %v2776 = vld [vmem:[%s4 + $0x14] sm:$0xf]
    %v2777 = vld [vmem:[%s4 + $0x18] sm:$0xf]
    %v2778 = vld [vmem:[%s4 + $0x1c] sm:$0xf]
    %v2779 = vld [vmem:[%s4 + $0x20] sm:$0xf]
    %v2780 = vld [vmem:[%s4 + $0x24] sm:$0xf]
    %v2781 = vld [vmem:[%s4 + $0x28] sm:$0xf]
    %v2782 = vld [vmem:[%s4 + $0x2c] sm:$0xf]
    %v2783 = vld [vmem:[%s4 + $0x30] sm:$0xf]
    %v2784 = vld [vmem:[%s4 + $0x34] sm:$0xf]
    %v2785 = vld [vmem:[%s4 + $0x38] sm:$0xf]
    %v2786 = vld [vmem:[%s4 + $0x3c] sm:$0xf]
    %v2803 = vunpack.c.l.b16 %v2771
    %v2804 = vunpack.c.l.b16 %v2772
    %v2805 = vunpack.c.l.b16 %v2773
    %v2806 = vunpack.c.l.b16 %v2774
    %v2807 = vunpack.c.l.b16 %v2775
    %v2808 = vunpack.c.l.b16 %v2776
    %v2809 = vunpack.c.l.b16 %v2777
    %v2810 = vunpack.c.l.b16 %v2778
    %v2811 = vunpack.c.l.b16 %v2779
    %v2812 = vunpack.c.l.b16 %v2780
    %v2813 = vunpack.c.l.b16 %v2781
    %v2814 = vunpack.c.l.b16 %v2782
    %v2815 = vunpack.c.l.b16 %v2783
    %v2816 = vunpack.c.l.b16 %v2784
    %v2817 = vunpack.c.l.b16 %v2785
    %v2818 = vunpack.c.l.b16 %v2786
    %v2819 = vpack.c.b16 %v2804, %v2803
    %v2820 = vpack.c.b16 %v2806, %v2805
    %v2821 = vpack.c.b16 %v2808, %v2807
    %v2822 = vpack.c.b16 %v2810, %v2809
    %v2823 = vpack.c.b16 %v2812, %v2811
    %v2824 = vpack.c.b16 %v2814, %v2813
    %v2825 = vpack.c.b16 %v2816, %v2815
    %v2826 = vpack.c.b16 %v2818, %v2817
    %2835 = vmatprep.subr.bf16.mxu0 0
    %2836 = vmatpush1.bf16.msra.mxu0 %v2819
    %2837 = vmatprep.subr.bf16.mxu0 0
    %2838 = vmatpush1.bf16.msra.mxu0 %v2820
    %2839 = vmatprep.subr.bf16.mxu0 0
    %2840 = vmatpush1.bf16.msra.mxu0 %v2821
    %2841 = vmatprep.subr.bf16.mxu0 0
    %2842 = vmatpush1.bf16.msra.mxu0 %v2822
    %2843 = vmatprep.subr.bf16.mxu0 0
    %2844 = vmatpush1.bf16.msra.mxu0 %v2823
    %2845 = vmatprep.subr.bf16.mxu0 0
    %2846 = vmatpush1.bf16.msra.mxu0 %v2824
    %2847 = vmatprep.subr.bf16.mxu0 0
    %2848 = vmatpush1.bf16.msra.mxu0 %v2825
    %2849 = vmatprep.subr.bf16.mxu0 0
    %2850 = vmatpush1.bf16.msra.mxu0 %v2826
    %2851 = vmatprep.subr.bf16.mxu0 0
    %2852 = vmatpush1.bf16.msra.mxu0 0
    %2853 = vmatprep.subr.bf16.mxu0 0
    %2854 = vmatpush1.bf16.msra.mxu0 0
    %2855 = vmatprep.subr.bf16.mxu0 0
    %2856 = vmatpush1.bf16.msra.mxu0 0
    %2857 = vmatprep.subr.bf16.mxu0 0
    %2858 = vmatpush1.bf16.msra.mxu0 0
    %2859 = vmatprep.subr.bf16.mxu0 0
    %2860 = vmatpush1.bf16.msra.mxu0 0
    %2861 = vmatprep.subr.bf16.mxu0 0
    %2862 = vmatpush1.bf16.msra.mxu0 0
    %2863 = vmatprep.subr.bf16.mxu0 0
    %2864 = vmatpush1.bf16.msra.mxu0 0
    %2865 = vmatprep.subr.bf16.mxu0 0
    %2866 = vmatpush1.bf16.msra.mxu0 0
    %2867 = vmatprep.mubr.bf16.mxu0 0
    %2868 = vmatmul.mubr.bf16.gmra.mrb[0].mxu0 %v2770
    %v2869 = vpop.f32.mrb[0].mxu0
    %v2870 = vadd.f32 0.0, %v2869
    %v2871 = vpop.f32.mrb[0].mxu0
    %v2872 = vpop.f32.mrb[0].mxu0
    %v2873 = vpop.f32.mrb[0].mxu0
    %2874 = vdwg.mxu0
    %v2875 = vadd.f32 %v2769, %v2870
    %v2876 = vld [vmem:[%s4 + $0x40] sm:$0xf]
    %v2877 = vld [vmem:[%s4 + $0x44] sm:$0xf]
    %v2878 = vld [vmem:[%s4 + $0x48] sm:$0xf]
    %v2879 = vld [vmem:[%s4 + $0x4c] sm:$0xf]
    %v2880 = vld [vmem:[%s4 + $0x50] sm:$0xf]
    %v2881 = vld [vmem:[%s4 + $0x54] sm:$0xf]
    %v2882 = vld [vmem:[%s4 + $0x58] sm:$0xf]
    %v2883 = vld [vmem:[%s4 + $0x5c] sm:$0xf]
    %v2884 = vld [vmem:[%s4 + $0x60] sm:$0xf]
    %v2885 = vld [vmem:[%s4 + $0x64] sm:$0xf]
    %v2886 = vld [vmem:[%s4 + $0x68] sm:$0xf]
    %v2887 = vld [vmem:[%s4 + $0x6c] sm:$0xf]
    %v2888 = vld [vmem:[%s4 + $0x70] sm:$0xf]
    %v2889 = vld [vmem:[%s4 + $0x74] sm:$0xf]
    %v2890 = vld [vmem:[%s4 + $0x78] sm:$0xf]
    %v2891 = vld [vmem:[%s4 + $0x7c] sm:$0xf]
    %v2893 = vrot.slane %v2770, 2
    %v2911 = vunpack.c.l.b16 %v2876
    %v2912 = vunpack.c.l.b16 %v2877
    %v2913 = vunpack.c.l.b16 %v2878
    %v2914 = vunpack.c.l.b16 %v2879
    %v2915 = vunpack.c.l.b16 %v2880
    %v2916 = vunpack.c.l.b16 %v2881
    %v2917 = vunpack.c.l.b16 %v2882
    %v2918 = vunpack.c.l.b16 %v2883
    %v2919 = vunpack.c.l.b16 %v2884
    %v2920 = vunpack.c.l.b16 %v2885
    %v2921 = vunpack.c.l.b16 %v2886
    %v2922 = vunpack.c.l.b16 %v2887
    %v2923 = vunpack.c.l.b16 %v2888
    %v2924 = vunpack.c.l.b16 %v2889
    %v2925 = vunpack.c.l.b16 %v2890
    %v2926 = vunpack.c.l.b16 %v2891
    %v2927 = vpack.c.b16 %v2912, %v2911
    %v2928 = vpack.c.b16 %v2914, %v2913
    %v2929 = vpack.c.b16 %v2916, %v2915
    %v2930 = vpack.c.b16 %v2918, %v2917
    %v2931 = vpack.c.b16 %v2920, %v2919
    %v2932 = vpack.c.b16 %v2922, %v2921
    %v2933 = vpack.c.b16 %v2924, %v2923
    %v2934 = vpack.c.b16 %v2926, %v2925
    %2943 = vmatprep.subr.bf16.mxu0 0
    %2944 = vmatpush1.bf16.msra.mxu0 %v2927
    %2945 = vmatprep.subr.bf16.mxu0 0
    %2946 = vmatpush1.bf16.msra.mxu0 %v2928
    %2947 = vmatprep.subr.bf16.mxu0 0
    %2948 = vmatpush1.bf16.msra.mxu0 %v2929
    %2949 = vmatprep.subr.bf16.mxu0 0
    %2950 = vmatpush1.bf16.msra.mxu0 %v2930
    %2951 = vmatprep.subr.bf16.mxu0 0
    %2952 = vmatpush1.bf16.msra.mxu0 %v2931
    %2953 = vmatprep.subr.bf16.mxu0 0
    %2954 = vmatpush1.bf16.msra.mxu0 %v2932
    %2955 = vmatprep.subr.bf16.mxu0 0
    %2956 = vmatpush1.bf16.msra.mxu0 %v2933
    %2957 = vmatprep.subr.bf16.mxu0 0
    %2958 = vmatpush1.bf16.msra.mxu0 %v2934
    %2959 = vmatprep.subr.bf16.mxu0 0
    %2960 = vmatpush1.bf16.msra.mxu0 0
    %2961 = vmatprep.subr.bf16.mxu0 0
    %2962 = vmatpush1.bf16.msra.mxu0 0
    %2963 = vmatprep.subr.bf16.mxu0 0
    %2964 = vmatpush1.bf16.msra.mxu0 0
    %2965 = vmatprep.subr.bf16.mxu0 0
    %2966 = vmatpush1.bf16.msra.mxu0 0
    %2967 = vmatprep.subr.bf16.mxu0 0
    %2968 = vmatpush1.bf16.msra.mxu0 0
    %2969 = vmatprep.subr.bf16.mxu0 0
    %2970 = vmatpush1.bf16.msra.mxu0 0
    %2971 = vmatprep.subr.bf16.mxu0 0
    %2972 = vmatpush1.bf16.msra.mxu0 0
    %2973 = vmatprep.subr.bf16.mxu0 0
    %2974 = vmatpush1.bf16.msra.mxu0 0
    %2975 = vmatprep.mubr.bf16.mxu0 0
    %2976 = vmatmul.mubr.bf16.gmra.mrb[0].mxu0 %v2893
    %v2977 = vpop.f32.mrb[0].mxu0
    %v2978 = vadd.f32 0.0, %v2977
    %v2979 = vpop.f32.mrb[0].mxu0
    %v2980 = vpop.f32.mrb[0].mxu0
    %v2981 = vpop.f32.mrb[0].mxu0
    %2982 = vdwg.mxu0
    %v2983 = vadd.f32 %v2875, %v2978
    %v2984 = vpack.c.bf16 %v2768, %v2768
    %v2985 = vld [vmem:[%s4 + $0x80] sm:$0xf]
    %v2986 = vld [vmem:[%s4 + $0x84] sm:$0xf]
    %v2987 = vld [vmem:[%s4 + $0x88] sm:$0xf]
    %v2988 = vld [vmem:[%s4 + $0x8c] sm:$0xf]
    %v2989 = vld [vmem:[%s4 + $0x90] sm:$0xf]
    %v2990 = vld [vmem:[%s4 + $0x94] sm:$0xf]
    %v2991 = vld [vmem:[%s4 + $0x98] sm:$0xf]
    %v2992 = vld [vmem:[%s4 + $0x9c] sm:$0xf]
    %v2993 = vld [vmem:[%s4 + $0xa0] sm:$0xf]
    %v2994 = vld [vmem:[%s4 + $0xa4] sm:$0xf]
    %v2995 = vld [vmem:[%s4 + $0xa8] sm:$0xf]
    %v2996 = vld [vmem:[%s4 + $0xac] sm:$0xf]
    %v2997 = vld [vmem:[%s4 + $0xb0] sm:$0xf]
    %v2998 = vld [vmem:[%s4 + $0xb4] sm:$0xf]
    %v2999 = vld [vmem:[%s4 + $0xb8] sm:$0xf]
    %v3000 = vld [vmem:[%s4 + $0xbc] sm:$0xf]
    %v3017 = vunpack.c.l.b16 %v2985
    %v3018 = vunpack.c.l.b16 %v2986
    %v3019 = vunpack.c.l.b16 %v2987
    %v3020 = vunpack.c.l.b16 %v2988
    %v3021 = vunpack.c.l.b16 %v2989
    %v3022 = vunpack.c.l.b16 %v2990
    %v3023 = vunpack.c.l.b16 %v2991
    %v3024 = vunpack.c.l.b16 %v2992
    %v3025 = vunpack.c.l.b16 %v2993
    %v3026 = vunpack.c.l.b16 %v2994
    %v3027 = vunpack.c.l.b16 %v2995
    %v3028 = vunpack.c.l.b16 %v2996
    %v3029 = vunpack.c.l.b16 %v2997
    %v3030 = vunpack.c.l.b16 %v2998
    %v3031 = vunpack.c.l.b16 %v2999
    %v3032 = vunpack.c.l.b16 %v3000
    %v3033 = vpack.c.b16 %v3018, %v3017
    %v3034 = vpack.c.b16 %v3020, %v3019
    %v3035 = vpack.c.b16 %v3022, %v3021
    %v3036 = vpack.c.b16 %v3024, %v3023
    %v3037 = vpack.c.b16 %v3026, %v3025
    %v3038 = vpack.c.b16 %v3028, %v3027
    %v3039 = vpack.c.b16 %v3030, %v3029
    %v3040 = vpack.c.b16 %v3032, %v3031
    %3049 = vmatprep.subr.bf16.mxu0 0
    %3050 = vmatpush1.bf16.msra.mxu0 %v3033
    %3051 = vmatprep.subr.bf16.mxu0 0
    %3052 = vmatpush1.bf16.msra.mxu0 %v3034
    %3053 = vmatprep.subr.bf16.mxu0 0
    %3054 = vmatpush1.bf16.msra.mxu0 %v3035
    %3055 = vmatprep.subr.bf16.mxu0 0
    %3056 = vmatpush1.bf16.msra.mxu0 %v3036
    %3057 = vmatprep.subr.bf16.mxu0 0
    %3058 = vmatpush1.bf16.msra.mxu0 %v3037
    %3059 = vmatprep.subr.bf16.mxu0 0
    %3060 = vmatpush1.bf16.msra.mxu0 %v3038
    %3061 = vmatprep.subr.bf16.mxu0 0
    %3062 = vmatpush1.bf16.msra.mxu0 %v3039
    %3063 = vmatprep.subr.bf16.mxu0 0
    %3064 = vmatpush1.bf16.msra.mxu0 %v3040
    %3065 = vmatprep.subr.bf16.mxu0 0
    %3066 = vmatpush1.bf16.msra.mxu0 0
    %3067 = vmatprep.subr.bf16.mxu0 0
    %3068 = vmatpush1.bf16.msra.mxu0 0
    %3069 = vmatprep.subr.bf16.mxu0 0
    %3070 = vmatpush1.bf16.msra.mxu0 0
    %3071 = vmatprep.subr.bf16.mxu0 0
    %3072 = vmatpush1.bf16.msra.mxu0 0
    %3073 = vmatprep.subr.bf16.mxu0 0
    %3074 = vmatpush1.bf16.msra.mxu0 0
    %3075 = vmatprep.subr.bf16.mxu0 0
    %3076 = vmatpush1.bf16.msra.mxu0 0
    %3077 = vmatprep.subr.bf16.mxu0 0
    %3078 = vmatpush1.bf16.msra.mxu0 0
    %3079 = vmatprep.subr.bf16.mxu0 0
    %3080 = vmatpush1.bf16.msra.mxu0 0
    %3081 = vmatprep.mubr.bf16.mxu0 0
    %3082 = vmatmul.mubr.bf16.gmra.mrb[0].mxu0 %v2984
    %v3083 = vpop.f32.mrb[0].mxu0
    %v3084 = vadd.f32 0.0, %v3083
    %v3085 = vpop.f32.mrb[0].mxu0
    %v3086 = vpop.f32.mrb[0].mxu0
    %v3087 = vpop.f32.mrb[0].mxu0
    %3088 = vdwg.mxu0
    %v3089 = vadd.f32 %v2983, %v3084
    %v3090 = vld [vmem:[%s4 + $0xc0] sm:$0xf]
    %v3091 = vld [vmem:[%s4 + $0xc4] sm:$0xf]
    %v3092 = vld [vmem:[%s4 + $0xc8] sm:$0xf]
    %v3093 = vld [vmem:[%s4 + $0xcc] sm:$0xf]
    %v3094 = vld [vmem:[%s4 + $0xd0] sm:$0xf]
    %v3095 = vld [vmem:[%s4 + $0xd4] sm:$0xf]
    %v3096 = vld [vmem:[%s4 + $0xd8] sm:$0xf]
    %v3097 = vld [vmem:[%s4 + $0xdc] sm:$0xf]
    %v3098 = vld [vmem:[%s4 + $0xe0] sm:$0xf]
    %v3099 = vld [vmem:[%s4 + $0xe4] sm:$0xf]
    %v3100 = vld [vmem:[%s4 + $0xe8] sm:$0xf]
    %v3101 = vld [vmem:[%s4 + $0xec] sm:$0xf]
    %v3102 = vld [vmem:[%s4 + $0xf0] sm:$0xf]
    %v3103 = vld [vmem:[%s4 + $0xf4] sm:$0xf]
    %v3104 = vld [vmem:[%s4 + $0xf8] sm:$0xf]
    %v3105 = vld [vmem:[%s4 + $0xfc] sm:$0xf]
    %v3107 = vrot.slane %v2984, 2
    %v3125 = vunpack.c.l.b16 %v3090
    %v3126 = vunpack.c.l.b16 %v3091
    %v3127 = vunpack.c.l.b16 %v3092
    %v3128 = vunpack.c.l.b16 %v3093
    %v3129 = vunpack.c.l.b16 %v3094
    %v3130 = vunpack.c.l.b16 %v3095
    %v3131 = vunpack.c.l.b16 %v3096
    %v3132 = vunpack.c.l.b16 %v3097
    %v3133 = vunpack.c.l.b16 %v3098
    %v3134 = vunpack.c.l.b16 %v3099
    %v3135 = vunpack.c.l.b16 %v3100
    %v3136 = vunpack.c.l.b16 %v3101
    %v3137 = vunpack.c.l.b16 %v3102
    %v3138 = vunpack.c.l.b16 %v3103
    %v3139 = vunpack.c.l.b16 %v3104
    %v3140 = vunpack.c.l.b16 %v3105
    %v3141 = vpack.c.b16 %v3126, %v3125
    %v3142 = vpack.c.b16 %v3128, %v3127
    %v3143 = vpack.c.b16 %v3130, %v3129
    %v3144 = vpack.c.b16 %v3132, %v3131
    %v3145 = vpack.c.b16 %v3134, %v3133
    %v3146 = vpack.c.b16 %v3136, %v3135
    %v3147 = vpack.c.b16 %v3138, %v3137
    %v3148 = vpack.c.b16 %v3140, %v3139
    %3157 = vmatprep.subr.bf16.mxu0 0
    %3158 = vmatpush1.bf16.msra.mxu0 %v3141
    %3159 = vmatprep.subr.bf16.mxu0 0
    %3160 = vmatpush1.bf16.msra.mxu0 %v3142
    %3161 = vmatprep.subr.bf16.mxu0 0
    %3162 = vmatpush1.bf16.msra.mxu0 %v3143
    %3163 = vmatprep.subr.bf16.mxu0 0
    %3164 = vmatpush1.bf16.msra.mxu0 %v3144
    %3165 = vmatprep.subr.bf16.mxu0 0
    %3166 = vmatpush1.bf16.msra.mxu0 %v3145
    %3167 = vmatprep.subr.bf16.mxu0 0
    %3168 = vmatpush1.bf16.msra.mxu0 %v3146
    %3169 = vmatprep.subr.bf16.mxu0 0
    %3170 = vmatpush1.bf16.msra.mxu0 %v3147
    %3171 = vmatprep.subr.bf16.mxu0 0
    %3172 = vmatpush1.bf16.msra.mxu0 %v3148
    %3173 = vmatprep.subr.bf16.mxu0 0
    %3174 = vmatpush1.bf16.msra.mxu0 0
    %3175 = vmatprep.subr.bf16.mxu0 0
    %3176 = vmatpush1.bf16.msra.mxu0 0
    %3177 = vmatprep.subr.bf16.mxu0 0
    %3178 = vmatpush1.bf16.msra.mxu0 0
    %3179 = vmatprep.subr.bf16.mxu0 0
    %3180 = vmatpush1.bf16.msra.mxu0 0
    %3181 = vmatprep.subr.bf16.mxu0 0
    %3182 = vmatpush1.bf16.msra.mxu0 0
    %3183 = vmatprep.subr.bf16.mxu0 0
    %3184 = vmatpush1.bf16.msra.mxu0 0
    %3185 = vmatprep.subr.bf16.mxu0 0
    %3186 = vmatpush1.bf16.msra.mxu0 0
    %3187 = vmatprep.subr.bf16.mxu0 0
    %3188 = vmatpush1.bf16.msra.mxu0 0
    %3189 = vmatprep.mubr.bf16.mxu0 0
    %3190 = vmatmul.mubr.bf16.gmra.mrb[0].mxu0 %v3107
    %v3191 = vpop.f32.mrb[0].mxu0
    %v3192 = vadd.f32 0.0, %v3191
    %v3193 = vpop.f32.mrb[0].mxu0
    %v3194 = vpop.f32.mrb[0].mxu0
    %v3195 = vpop.f32.mrb[0].mxu0
    %3196 = vdwg.mxu0
    %v3197 = vadd.f32 %v3089, %v3192
    %v3198 = vmax.f32 %v3197, 0.0
    %v3199 = vpack.c.bf16 %v3198, %v3198
    %v3200 = vld [vmem:[%s1] sm:$0x3]
    %v3201 = vld [vmem:[%s4 + $0x1c0] sm:$0xf]
    %v3202 = vld [vmem:[%s4 + $0x1c4] sm:$0xf]
    %v3203 = vld [vmem:[%s6 + $0x2] ss:$0 sm:$0xff]
    %v3206 = vunpack.c.l.b16 %v3201
    %v3207 = vunpack.c.l.b16 %v3202
    %v3208 = vpack.c.b16 %v3207, %v3206
    %vm3210 = vcmask 130048
    %v3212 = vsel %vm3210, %v3200, 0
    %3214 = vmatprep.subr.bf16.mxu0 0
    %3215 = vmatpush1.bf16.msra.mxu0 %v3208
    %3216 = vmatprep.subr.bf16.mxu0 0
    %3217 = vmatpush1.bf16.msra.mxu0 0
    %3218 = vmatprep.subr.bf16.mxu0 0
    %3219 = vmatpush1.bf16.msra.mxu0 0
    %3220 = vmatprep.subr.bf16.mxu0 0
    %3221 = vmatpush1.bf16.msra.mxu0 0
    %3222 = vmatprep.subr.bf16.mxu0 0
    %3223 = vmatpush1.bf16.msra.mxu0 0
    %3224 = vmatprep.subr.bf16.mxu0 0
    %3225 = vmatpush1.bf16.msra.mxu0 0
    %3226 = vmatprep.subr.bf16.mxu0 0
    %3227 = vmatpush1.bf16.msra.mxu0 0
    %3228 = vmatprep.subr.bf16.mxu0 0
    %3229 = vmatpush1.bf16.msra.mxu0 0
    %3230 = vmatprep.subr.bf16.mxu0 0
    %3231 = vmatpush1.bf16.msra.mxu0 0
    %3232 = vmatprep.subr.bf16.mxu0 0
    %3233 = vmatpush1.bf16.msra.mxu0 0
    %3234 = vmatprep.subr.bf16.mxu0 0
    %3235 = vmatpush1.bf16.msra.mxu0 0
    %3236 = vmatprep.subr.bf16.mxu0 0
    %3237 = vmatpush1.bf16.msra.mxu0 0
    %3238 = vmatprep.subr.bf16.mxu0 0
    %3239 = vmatpush1.bf16.msra.mxu0 0
    %3240 = vmatprep.subr.bf16.mxu0 0
    %3241 = vmatpush1.bf16.msra.mxu0 0
    %3242 = vmatprep.subr.bf16.mxu0 0
    %3243 = vmatpush1.bf16.msra.mxu0 0
    %3244 = vmatprep.subr.bf16.mxu0 0
    %3245 = vmatpush1.bf16.msra.mxu0 0
    %3246 = vmatprep.mubr.bf16.mxu0 0
    %3247 = vmatmul.mubr.bf16.gmra.mrb[0].mxu0 %v3212
    %v3248 = vpop.f32.mrb[0].mxu0
    %v3249 = vadd.f32 %v3203, %v3248
    %v3250 = vpop.f32.mrb[0].mxu0
    %v3251 = vpop.f32.mrb[0].mxu0
    %v3252 = vpop.f32.mrb[0].mxu0
    %3253 = vdwg.mxu0
    %v3254 = vmax.f32 %v3249, 0.0
    %v3255 = vpack.c.bf16 %v3254, %v3254
    %v3256 = vld [vmem:[%s4 + $0x100] sm:$0xf]
    %v3257 = vld [vmem:[%s4 + $0x104] sm:$0xf]
    %v3258 = vld [vmem:[%s4 + $0x108] sm:$0xf]
    %v3259 = vld [vmem:[%s4 + $0x10c] sm:$0xf]
    %v3260 = vld [vmem:[%s4 + $0x110] sm:$0xf]
    %v3261 = vld [vmem:[%s4 + $0x114] sm:$0xf]
    %v3262 = vld [vmem:[%s4 + $0x118] sm:$0xf]
    %v3263 = vld [vmem:[%s4 + $0x11c] sm:$0xf]
    %v3264 = vld [vmem:[%s4 + $0x120] sm:$0xf]
    %v3265 = vld [vmem:[%s4 + $0x124] sm:$0xf]
    %v3266 = vld [vmem:[%s4 + $0x128] sm:$0xf]
    %v3267 = vld [vmem:[%s4 + $0x12c] sm:$0xf]
    %v3268 = vld [vmem:[%s4 + $0x130] sm:$0xf]
    %v3269 = vld [vmem:[%s4 + $0x134] sm:$0xf]
    %v3270 = vld [vmem:[%s4 + $0x138] sm:$0xf]
    %v3271 = vld [vmem:[%s4 + $0x13c] sm:$0xf]
    %v3272 = vld [vmem:[%s4 + $0x140] sm:$0xf]
    %v3273 = vld [vmem:[%s4 + $0x144] sm:$0xf]
    %v3274 = vld [vmem:[%s4 + $0x148] sm:$0xf]
    %v3275 = vld [vmem:[%s4 + $0x14c] sm:$0xf]
    %v3276 = vld [vmem:[%s4 + $0x150] sm:$0xf]
    %v3277 = vld [vmem:[%s4 + $0x154] sm:$0xf]
    %v3278 = vld [vmem:[%s4 + $0x158] sm:$0xf]
    %v3279 = vld [vmem:[%s4 + $0x15c] sm:$0xf]
    %v3280 = vld [vmem:[%s4 + $0x160] sm:$0xf]
    %v3281 = vld [vmem:[%s4 + $0x164] sm:$0xf]
    %v3282 = vld [vmem:[%s4 + $0x168] sm:$0xf]
    %v3283 = vld [vmem:[%s4 + $0x16c] sm:$0xf]
    %v3284 = vld [vmem:[%s4 + $0x170] sm:$0xf]
    %v3285 = vld [vmem:[%s4 + $0x174] sm:$0xf]
    %v3286 = vld [vmem:[%s4 + $0x178] sm:$0xf]
    %v3287 = vld [vmem:[%s4 + $0x17c] sm:$0xf]
    %v3304 = vunpack.c.l.b16 %v3272
    %v3305 = vunpack.c.l.b16 %v3273
    %v3306 = vunpack.c.l.b16 %v3274
    %v3307 = vunpack.c.l.b16 %v3275
    %v3308 = vunpack.c.l.b16 %v3276
    %v3309 = vunpack.c.l.b16 %v3277
    %v3310 = vunpack.c.l.b16 %v3278
    %v3311 = vunpack.c.l.b16 %v3279
    %v3312 = vunpack.c.l.b16 %v3280
    %v3313 = vunpack.c.l.b16 %v3281
    %v3314 = vunpack.c.l.b16 %v3282
    %v3315 = vunpack.c.l.b16 %v3283
    %v3316 = vunpack.c.l.b16 %v3284
    %v3317 = vunpack.c.l.b16 %v3285
    %v3318 = vunpack.c.l.b16 %v3286
    %v3319 = vunpack.c.l.b16 %v3287
    %v3320 = vpack.c.b16 %v3305, %v3304
    %v3321 = vpack.c.b16 %v3307, %v3306
    %v3322 = vpack.c.b16 %v3309, %v3308
    %v3323 = vpack.c.b16 %v3311, %v3310
    %v3324 = vpack.c.b16 %v3313, %v3312
    %v3325 = vpack.c.b16 %v3315, %v3314
    %v3326 = vpack.c.b16 %v3317, %v3316
    %v3327 = vpack.c.b16 %v3319, %v3318
    %3336 = vmatprep.subr.bf16.mxu0 0
    %3337 = vmatpush1.bf16.msra.mxu0 %v3320
    %3338 = vmatprep.subr.bf16.mxu0 0
    %3339 = vmatpush1.bf16.msra.mxu0 %v3321
    %3340 = vmatprep.subr.bf16.mxu0 0
    %3341 = vmatpush1.bf16.msra.mxu0 %v3322
    %3342 = vmatprep.subr.bf16.mxu0 0
    %3343 = vmatpush1.bf16.msra.mxu0 %v3323
    %3344 = vmatprep.subr.bf16.mxu0 0
    %3345 = vmatpush1.bf16.msra.mxu0 %v3324
    %3346 = vmatprep.subr.bf16.mxu0 0
    %3347 = vmatpush1.bf16.msra.mxu0 %v3325
    %3348 = vmatprep.subr.bf16.mxu0 0
    %3349 = vmatpush1.bf16.msra.mxu0 %v3326
    %3350 = vmatprep.subr.bf16.mxu0 0
    %3351 = vmatpush1.bf16.msra.mxu0 %v3327
    %3352 = vmatprep.subr.bf16.mxu0 0
    %3353 = vmatpush1.bf16.msra.mxu0 0
    %3354 = vmatprep.subr.bf16.mxu0 0
    %3355 = vmatpush1.bf16.msra.mxu0 0
    %3356 = vmatprep.subr.bf16.mxu0 0
    %3357 = vmatpush1.bf16.msra.mxu0 0
    %3358 = vmatprep.subr.bf16.mxu0 0
    %3359 = vmatpush1.bf16.msra.mxu0 0
    %3360 = vmatprep.subr.bf16.mxu0 0
    %3361 = vmatpush1.bf16.msra.mxu0 0
    %3362 = vmatprep.subr.bf16.mxu0 0
    %3363 = vmatpush1.bf16.msra.mxu0 0
    %3364 = vmatprep.subr.bf16.mxu0 0
    %3365 = vmatpush1.bf16.msra.mxu0 0
    %3366 = vmatprep.subr.bf16.mxu0 0
    %3367 = vmatpush1.bf16.msra.mxu0 0
    %3368 = vmatprep.mubr.bf16.mxu0 0
    %3369 = vmatmul.mubr.bf16.gmra.mrb[0].mxu0 %v3255
    %v3370 = vpop.f32.mrb[0].mxu0
    %v3371 = vadd.f32 0.0, %v3370
    %v3372 = vpop.f32.mrb[0].mxu0
    %v3373 = vpop.f32.mrb[0].mxu0
    %v3374 = vpop.f32.mrb[0].mxu0
    %3375 = vdwg.mxu0
    %v3392 = vunpack.c.l.b16 %v3256
    %v3393 = vunpack.c.l.b16 %v3257
    %v3394 = vunpack.c.l.b16 %v3258
    %v3395 = vunpack.c.l.b16 %v3259
    %v3396 = vunpack.c.l.b16 %v3260
    %v3397 = vunpack.c.l.b16 %v3261
    %v3398 = vunpack.c.l.b16 %v3262
    %v3399 = vunpack.c.l.b16 %v3263
    %v3400 = vunpack.c.l.b16 %v3264
    %v3401 = vunpack.c.l.b16 %v3265
    %v3402 = vunpack.c.l.b16 %v3266
    %v3403 = vunpack.c.l.b16 %v3267
    %v3404 = vunpack.c.l.b16 %v3268
    %v3405 = vunpack.c.l.b16 %v3269
    %v3406 = vunpack.c.l.b16 %v3270
    %v3407 = vunpack.c.l.b16 %v3271
    %v3408 = vpack.c.b16 %v3393, %v3392
    %v3409 = vpack.c.b16 %v3395, %v3394
    %v3410 = vpack.c.b16 %v3397, %v3396
    %v3411 = vpack.c.b16 %v3399, %v3398
    %v3412 = vpack.c.b16 %v3401, %v3400
    %v3413 = vpack.c.b16 %v3403, %v3402
    %v3414 = vpack.c.b16 %v3405, %v3404
    %v3415 = vpack.c.b16 %v3407, %v3406
    %3424 = vmatprep.subr.bf16.mxu0 0
    %3425 = vmatpush1.bf16.msra.mxu0 %v3408
    %3426 = vmatprep.subr.bf16.mxu0 0
    %3427 = vmatpush1.bf16.msra.mxu0 %v3409
    %3428 = vmatprep.subr.bf16.mxu0 0
    %3429 = vmatpush1.bf16.msra.mxu0 %v3410
    %3430 = vmatprep.subr.bf16.mxu0 0
    %3431 = vmatpush1.bf16.msra.mxu0 %v3411
    %3432 = vmatprep.subr.bf16.mxu0 0
    %3433 = vmatpush1.bf16.msra.mxu0 %v3412
    %3434 = vmatprep.subr.bf16.mxu0 0
    %3435 = vmatpush1.bf16.msra.mxu0 %v3413
    %3436 = vmatprep.subr.bf16.mxu0 0
    %3437 = vmatpush1.bf16.msra.mxu0 %v3414
    %3438 = vmatprep.subr.bf16.mxu0 0
    %3439 = vmatpush1.bf16.msra.mxu0 %v3415
    %3440 = vmatprep.subr.bf16.mxu0 0
    %3441 = vmatpush1.bf16.msra.mxu0 0
    %3442 = vmatprep.subr.bf16.mxu0 0
    %3443 = vmatpush1.bf16.msra.mxu0 0
    %3444 = vmatprep.subr.bf16.mxu0 0
    %3445 = vmatpush1.bf16.msra.mxu0 0
    %3446 = vmatprep.subr.bf16.mxu0 0
    %3447 = vmatpush1.bf16.msra.mxu0 0
    %3448 = vmatprep.subr.bf16.mxu0 0
    %3449 = vmatpush1.bf16.msra.mxu0 0
    %3450 = vmatprep.subr.bf16.mxu0 0
    %3451 = vmatpush1.bf16.msra.mxu0 0
    %3452 = vmatprep.subr.bf16.mxu0 0
    %3453 = vmatpush1.bf16.msra.mxu0 0
    %3454 = vmatprep.subr.bf16.mxu0 0
    %3455 = vmatpush1.bf16.msra.mxu0 0
    %3456 = vmatprep.mubr.bf16.mxu0 0
    %3457 = vmatmul.mubr.bf16.gmra.mrb[0].mxu0 %v3199
    %v3458 = vpop.f32.mrb[0].mxu0
    %v3459 = vadd.f32 %v3371, %v3458
    %v3460 = vpop.f32.mrb[0].mxu0
    %v3461 = vpop.f32.mrb[0].mxu0
    %v3462 = vpop.f32.mrb[0].mxu0
    %3463 = vdwg.mxu0
    %v3464 = vld [vmem:[%s6 + $0x3] ss:$0 sm:$0xff]
    %v3465 = vadd.f32 %v3459, %v3464
    %v3466 = vmax.f32 %v3465, 0.0
    %v3467 = vpack.c.bf16 %v3466, %v3466
    %v3468 = vld [vmem:[%s4 + $0x180] sm:$0xf]
    %v3469 = vld [vmem:[%s4 + $0x184] sm:$0xf]
    %v3470 = vld [vmem:[%s4 + $0x188] sm:$0xf]
    %v3471 = vld [vmem:[%s4 + $0x18c] sm:$0xf]
    %v3472 = vld [vmem:[%s4 + $0x190] sm:$0xf]
    %v3473 = vld [vmem:[%s4 + $0x194] sm:$0xf]
    %v3474 = vld [vmem:[%s4 + $0x198] sm:$0xf]
    %v3475 = vld [vmem:[%s4 + $0x19c] sm:$0xf]
    %v3476 = vld [vmem:[%s4 + $0x1a0] sm:$0xf]
    %v3477 = vld [vmem:[%s4 + $0x1a4] sm:$0xf]
    %v3478 = vld [vmem:[%s4 + $0x1a8] sm:$0xf]
    %v3479 = vld [vmem:[%s4 + $0x1ac] sm:$0xf]
    %v3480 = vld [vmem:[%s4 + $0x1b0] sm:$0xf]
    %v3481 = vld [vmem:[%s4 + $0x1b4] sm:$0xf]
    %v3482 = vld [vmem:[%s4 + $0x1b8] sm:$0xf]
    %v3483 = vld [vmem:[%s4 + $0x1bc] sm:$0xf]
    %v3484 = vld [vmem:[%s6 + $0x4] ss:$0 sm:$0xff]
    %v3501 = vunpack.c.l.b16 %v3468
    %v3502 = vunpack.c.l.b16 %v3469
    %v3503 = vunpack.c.l.b16 %v3470
    %v3504 = vunpack.c.l.b16 %v3471
    %v3505 = vunpack.c.l.b16 %v3472
    %v3506 = vunpack.c.l.b16 %v3473
    %v3507 = vunpack.c.l.b16 %v3474
    %v3508 = vunpack.c.l.b16 %v3475
    %v3509 = vunpack.c.l.b16 %v3476
    %v3510 = vunpack.c.l.b16 %v3477
    %v3511 = vunpack.c.l.b16 %v3478
    %v3512 = vunpack.c.l.b16 %v3479
    %v3513 = vunpack.c.l.b16 %v3480
    %v3514 = vunpack.c.l.b16 %v3481
    %v3515 = vunpack.c.l.b16 %v3482
    %v3516 = vunpack.c.l.b16 %v3483
    %v3517 = vpack.c.b16 %v3502, %v3501
    %v3518 = vpack.c.b16 %v3504, %v3503
    %v3519 = vpack.c.b16 %v3506, %v3505
    %v3520 = vpack.c.b16 %v3508, %v3507
    %v3521 = vpack.c.b16 %v3510, %v3509
    %v3522 = vpack.c.b16 %v3512, %v3511
    %v3523 = vpack.c.b16 %v3514, %v3513
    %v3524 = vpack.c.b16 %v3516, %v3515
    %3533 = vmatprep.subr.bf16.mxu0 0
    %3534 = vmatpush1.bf16.msra.mxu0 %v3517
    %3535 = vmatprep.subr.bf16.mxu0 0
    %3536 = vmatpush1.bf16.msra.mxu0 %v3518
    %3537 = vmatprep.subr.bf16.mxu0 0
    %3538 = vmatpush1.bf16.msra.mxu0 %v3519
    %3539 = vmatprep.subr.bf16.mxu0 0
    %3540 = vmatpush1.bf16.msra.mxu0 %v3520
    %3541 = vmatprep.subr.bf16.mxu0 0
    %3542 = vmatpush1.bf16.msra.mxu0 %v3521
    %3543 = vmatprep.subr.bf16.mxu0 0
    %3544 = vmatpush1.bf16.msra.mxu0 %v3522
    %3545 = vmatprep.subr.bf16.mxu0 0
    %3546 = vmatpush1.bf16.msra.mxu0 %v3523
    %3547 = vmatprep.subr.bf16.mxu0 0
    %3548 = vmatpush1.bf16.msra.mxu0 %v3524
    %3549 = vmatprep.subr.bf16.mxu0 0
    %3550 = vmatpush1.bf16.msra.mxu0 0
    %3551 = vmatprep.subr.bf16.mxu0 0
    %3552 = vmatpush1.bf16.msra.mxu0 0
    %3553 = vmatprep.subr.bf16.mxu0 0
    %3554 = vmatpush1.bf16.msra.mxu0 0
    %3555 = vmatprep.subr.bf16.mxu0 0
    %3556 = vmatpush1.bf16.msra.mxu0 0
    %3557 = vmatprep.subr.bf16.mxu0 0
    %3558 = vmatpush1.bf16.msra.mxu0 0
    %3559 = vmatprep.subr.bf16.mxu0 0
    %3560 = vmatpush1.bf16.msra.mxu0 0
    %3561 = vmatprep.subr.bf16.mxu0 0
    %3562 = vmatpush1.bf16.msra.mxu0 0
    %3563 = vmatprep.subr.bf16.mxu0 0
    %3564 = vmatpush1.bf16.msra.mxu0 0
    %3565 = vmatprep.mubr.bf16.mxu0 0
    %3566 = vmatmul.mubr.bf16.gmra.mrb[0].mxu0 %v3467
    %v3567 = vpop.f32.mrb[0].mxu0
    %v3568 = vadd.f32 %v3484, %v3567
    %v3569 = vpop.f32.mrb[0].mxu0
    %v3570 = vpop.f32.mrb[0].mxu0
    %v3571 = vpop.f32.mrb[0].mxu0
    %3572 = vdwg.mxu0
    %v3573 = vsub.f32 0.0, %v3568
    %v3574 = vmul.f32 %v3573, 1.442695
    %v3575 = vpow.pop %v3574
    %v3576 = vadd.f32 %v3575, 1.0
    %v3577 = vrcp.pop %v3576
    %v3578 = vlaneseq
    %v3579 = vand.u32 %v3578, 127
    %vm3580 = vcmp.eq.s32.totalorder %v3579, 0
    %v3581 = vsel %vm3580, %v3568, %v3577
    %3582 = vst [vmem:[%s7] sm:$0xf] %v3581
    // Predicated region
    $region34: #{a2c_forward.1} parent=1 // pred_check
      _
    $region35: #{a2c_forward.1} parent=1 // pred_check_branch
      %3584 = sbr.rel (0) target = $region37
    $region36: #{a2c_forward.1} parent=1 // pred_region
      _
    $region37: #{a2c_forward.1} parent=1 // pred_fallthru
      _
    // Predicated region
    $region38: #{a2c_forward.1} parent=1 // pred_check
      _
    $region39: #{a2c_forward.1} parent=1 // pred_check_branch
      %3586 = sbr.rel (0) target = $region41
    $region40: #{a2c_forward.1} parent=1 // pred_region
      _
    $region41: #{a2c_forward.1} parent=1 // pred_fallthru
      _
    %3587 = vsyncpa [#allocation3], 1

</llo_original>
